<compile_context>
chip_gen: v7x
topology: tpu7x:2x2x1
jax: 0.10.0
libtpu: 0.0.40
codegen_flags: <defaults>
</compile_context>

<pallas_src>
import functools

import jax
import jax.numpy as jnp
from jax import lax
from jax.experimental import pallas as pl
from jax.experimental.pallas import tpu as pltpu


# --------------------------------------------------------------------------
# helpers
# --------------------------------------------------------------------------

def _round_up(x, m):
    return -(-x // m) * m


def _physical_vmem_bytes():
    """Chip VMEM capacity; conservative (v7x-sized) fallback if unknown."""
    try:
        info = pltpu.get_tpu_info()
        return int(getattr(info, "vmem_capacity_bytes", 64 << 20))
    except Exception:
        return 64 << 20


def _padded_bytes(shape, dtype):
    """VMEM footprint of one buffer after (8, 128) tiling."""
    shape = tuple(shape)
    if len(shape) < 2:
        shape = (1,) * (2 - len(shape)) + shape
    lead = 1
    for d in shape[:-2]:
        lead *= d
    return (lead * _round_up(shape[-2], 8) * _round_up(shape[-1], 128)
            * jnp.dtype(dtype).itemsize)


def _vmem_limit(blocks, phys):
    """Scoped-VMEM budget from (shape, dtype, n_buffers) blocks.

    Cap ~100 MiB on 128 MiB parts (v5e/v6e), ~48 MiB on v7x (64 MiB physical).
    If the (conservative) estimate is larger than the cap, hand the compiler
    as much as is physically plausible instead of guaranteeing failure.
    """
    est = sum(n * _padded_bytes(s, d) for s, d, n in blocks) + (4 << 20)
    cap = (100 << 20) if phys >= (120 << 20) else (48 << 20)
    limit = min(max(est, 32 << 20), cap)
    if est > cap:
        limit = min(est, int(phys * 0.95))
    return int(limit)


def _conv_row_tile(Ho, Wo, N, out_itemsize, phys):
    """Largest divisor t of Ho whose im2col tile L = t*(Wo+1) fits the row
    budget and keeps the output block sublane-aligned (L % 8 == 0) unless the
    block is the full extent (t == Ho, always a legal block shape)."""
    budget = (16 << 20) if phys >= (96 << 20) else (8 << 20)
    per_row = N * 4 + 2 * N * out_itemsize        # f32 acc + dbl-buffered out
    max_rows = max(256, min(budget // per_row,
                            4096 if phys >= (96 << 20) else 2048))
    cand = [t for t in range(1, Ho + 1)
            if Ho % t == 0 and (t == Ho or (t * (Wo + 1)) % 8 == 0)]
    ok = [t for t in cand if t * (Wo + 1) <= max_rows]
    return max(ok) if ok else min(cand)


def _pool_row_tile(R, W, Wo, itemsize, phys):
    """Pooled-row tile from a byte budget (multiple of 8), or all of R if it
    already fits one block (a full-extent block needs no alignment)."""
    budget = (8 << 20) if phys >= (96 << 20) else (4 << 20)
    per_row = (2 * (2 * _round_up(W, 128) * itemsize)
               + 2 * (_round_up(Wo, 128) * itemsize))
    tr = max(8, (budget // per_row) // 8 * 8)
    return R if R <= tr else tr


# --------------------------------------------------------------------------
# conv path: pad (0,1,0,1) + 3x3 stride-2 conv, im2col done inside the kernel
# --------------------------------------------------------------------------

def _conv_tap_matmul_kernel(xe_ref, xo_ref, w_ref, b_ref, o_ref, acc_ref,
                            *, tho, Wo, Wp2):
    # xe_ref/xo_ref : [(Ho+2)*Wp2, C]  even / odd padded-image rows, flattened
    # w_ref         : [9, C, N]        per-tap weights (tap = 3*kh + kw)
    # b_ref         : [1, N]           f32 bias (channel-padded)
    # o_ref         : [L, N]           L = tho*(Wo+1) im2col rows; every
    #                                  (Wo+1)-th row is junk, dropped outside
    # acc_ref       : [L, N] f32       VMEM scratch accumulator (MXU +=)
    #
    # Padded row 2*ho + kh lives in plane kh%2 at plane-row ho + kh//2.  Since
    # Wp2 == 2*(Wo+1), the flat plane index advances by exactly 2 per im2col
    # row, so a whole tile of one tap is ONE stride-2 sublane read:
    #   flat = (ho0 + kh//2)*Wp2 + kw + 2*(r*(Wo+1) + wo)
    i = pl.program_id(1)
    ho0 = i * tho
    L = o_ref.shape[0]
    planes = (xe_ref, xo_ref)
    first = True
    for kh in range(3):
        src = planes[kh % 2]
        dh = kh // 2
        for kw in range(3):
            start = (ho0 + dh) * Wp2 + kw
            lhs = src[pl.ds(start, L, stride=2), :]                  # [L, C]
            tap = jnp.dot(lhs, w_ref[3 * kh + kw],
                          preferred_element_type=jnp.float32)
            if first:
                acc_ref[...] = tap
                first = False
            else:
                acc_ref[...] += tap
    o_ref[...] = (acc_ref[...] + b_ref[...]).astype(o_ref.dtype)


def conv_downsample(x, weight, bias, *, mxu_dtype=None):
    """x: [B, C, H, W]; weight: [Cout, Cin, 3, 3] (OIHW); bias: [Cout].

    mxu_dtype=jnp.bfloat16 halves operand DMA/VMEM bytes and uses the native
    bf16 MXU path on v6e/v7x (f32 accumulation kept).  Default None keeps
    full-f32 operands (bit-tight vs the PyTorch module).
    """
    B, C, H, W = x.shape
    C_out = weight.shape[0]
    Ho = (H - 2) // 2 + 1                  # after F.pad(x, (0,1,0,1)), k=3, s=2
    Wo = (W - 2) // 2 + 1
    Hp2, Wp2 = 2 * Ho + 4, 2 * Wo + 2      # zero-pad target; Wp2 == 2*(Wo+1)
    P = (Ho + 2) * Wp2
    N = _round_up(C_out, 128)              # lane-dense output stores
    op_dtype = mxu_dtype if mxu_dtype is not None else x.dtype

    # NCHW -> zero-padded NHWC -> even/odd row-parity planes, rows flattened.
    # TODO(synk): keep the model in NHWC around Downsample so this transpose
    # (and the output one below) disappear; the kernel itself is layout-ready.
    x_nhwc = jnp.transpose(x, (0, 2, 3, 1)).astype(op_dtype)
    x_nhwc = jnp.pad(x_nhwc, ((0, 0), (0, Hp2 - H), (0, Wp2 - W), (0, 0)))
    x_even = x_nhwc[:, 0::2].reshape(B, P, C)     # padded rows 0,2,4,...
    x_odd = x_nhwc[:, 1::2].reshape(B, P, C)      # padded rows 1,3,5,...

    # OIHW -> [tap, Cin, N] (tap = 3*kh + kw), output channels padded to N.
    w_taps = jnp.transpose(weight, (2, 3, 1, 0)).reshape(9, C, C_out)
    w_taps = jnp.pad(w_taps, ((0, 0), (0, 0), (0, N - C_out))).astype(op_dtype)
    b_pad = jnp.pad(bias, (0, N - C_out)).reshape(1, N).astype(jnp.float32)

    phys = _physical_vmem_bytes()
    tho = _conv_row_tile(Ho, Wo, N, jnp.dtype(x.dtype).itemsize, phys)
    L = tho * (Wo + 1)
    n_tiles = Ho // tho

    # Conservative (double-buffered) estimate so the limit always covers the
    # fallback path; single-buffering just leaves headroom.
    vmem = _vmem_limit(
        [((P, C), op_dtype, 2), ((P, C), op_dtype, 2),
         ((9, C, N), op_dtype, 2), ((1, N), jnp.float32, 2),
         ((L, N), x.dtype, 2), ((L, N), jnp.float32, 1)],
        phys)

    kernel = functools.partial(_conv_tap_matmul_kernel,
                               tho=tho, Wo=Wo, Wp2=Wp2)

    def _run(single_buffer):
        def resident(shape, imap):
            # Constant / batch-only-varying operands: single-buffer to halve
            # their VMEM (perf feedback); plain spec if unsupported.
            if single_buffer:
                return pl.BlockSpec(shape, imap, pipeline_mode=pl.Buffered(1))
            return pl.BlockSpec(shape, imap)

        return pl.pallas_call(
            kernel,
            out_shape=jax.ShapeDtypeStruct((B, Ho * (Wo + 1), N), x.dtype),
            grid_spec=pltpu.PrefetchScalarGridSpec(
                num_scalar_prefetch=0,
                grid=(B, n_tiles),
                in_specs=[
                    # Whole parity planes of batch b stay resident across its
                    # row tiles (fetched from HBM once per batch element).
                    resident((None, P, C), lambda b, i: (b, 0, 0)),
                    resident((None, P, C), lambda b, i: (b, 0, 0)),
                    resident((9, C, N), lambda b, i: (0, 0, 0)),
                    resident((1, N), lambda b, i: (0, 0)),
                ],
                out_specs=pl.BlockSpec((None, L, N), lambda b, i: (b, i, 0)),
                scratch_shapes=[pltpu.VMEM((L, N), jnp.float32)],
            ),
            compiler_params=pltpu.CompilerParams(
                # Batch axis first: megacore shards whole images (disjoint
                # input DMA per core) when B >= 2, row tiles when B == 1.
                dimension_semantics=("parallel", "parallel"),
                vmem_limit_bytes=vmem,
            ),
        )(x_even, x_odd, w_taps, b_pad)

    try:
        out_flat = _run(True)
    except Exception:
        # pipeline_mode / Buffered(1) unavailable in this build -> default
        # double buffering (correct, just uses more VMEM).
        out_flat = _run(False)

    # Drop the junk (Wo+1)-th column and the padded channels; back to NCHW.
    out = out_flat.reshape(B, Ho, Wo + 1, N)[:, :, :Wo, :C_out]
    return jnp.transpose(out, (0, 3, 1, 2))


# --------------------------------------------------------------------------
# avg-pool path: 2x2 / stride-2, done fully in-kernel
# --------------------------------------------------------------------------

def _avgpool_kernel(x_ref, sel_ref, o_ref):
    # x_ref: [2*tr, W] raw input rows; sel_ref: [W, Wo] 0/1 column-pairing
    # matrix (hoisted to a constant, VMEM-resident input); o_ref: [tr, Wo].
    tr = o_ref.shape[0]
    even = x_ref[pl.ds(0, tr, stride=2), :].astype(jnp.float32)
    odd = x_ref[pl.ds(1, tr, stride=2), :].astype(jnp.float32)
    rows = (even + odd).astype(sel_ref.dtype)            # H-pooled, [tr, W]
    # Column pairing as a matmul on the (idle) MXU -- no lane-strided gather.
    # An odd trailing input column is never selected (PyTorch floors).
    pooled = jnp.dot(rows, sel_ref[...], preferred_element_type=jnp.float32)
    o_ref[...] = (0.25 * pooled).astype(o_ref.dtype)


def avgpool_downsample(x, *, pair_dtype=jnp.float32):
    """F.avg_pool2d(x, kernel_size=2, stride=2) on an NCHW input.

    pair_dtype=jnp.bfloat16 makes the pairing matmul single-pass on v5e's MXU
    (worth it at large W); default f32 keeps results bit-tight.
    """
    B, C, H, W = x.shape
    Ho, Wo = H // 2, W // 2
    if H != 2 * Ho:                    # PyTorch floors: drop the odd last row
        x = x[:, :, :2 * Ho, :]
    R = B * C * Ho
    x2d = x.reshape(R * 2, W)          # contiguous reshape; no strided views

    phys = _physical_vmem_bytes()
    tr = _pool_row_tile(R, W, Wo, jnp.dtype(x.dtype).itemsize, phys)
    n_tiles = -(-R // tr)
    R_pad = n_tiles * tr
    if R_pad != R:                     # ragged tail -> pad rows, slice after
        x2d = jnp.pad(x2d, ((0, 2 * (R_pad - R)), (0, 0)))

    # 0/1 column-pairing matrix, built ONCE in the wrapper and kept resident
    # (constant index map) instead of re-materialised by the VPU every step.
    src = jnp.arange(W)[:, None]
    dst = jnp.arange(Wo)[None, :]
    sel = ((src == 2 * dst) | (src == 2 * dst + 1)).astype(pair_dtype)

    vmem = _vmem_limit(
        [((2 * tr, W), x.dtype, 2),
         ((W, Wo), pair_dtype, 2),
         ((tr, Wo), x.dtype, 2)],
        phys)

    out2d = pl.pallas_call(
        _avgpool_kernel,
        out_shape=jax.ShapeDtypeStruct((R_pad, Wo), x.dtype),
        grid_spec=pltpu.PrefetchScalarGridSpec(
            num_scalar_prefetch=0,
            grid=(n_tiles,),
            in_specs=[
                pl.BlockSpec((2 * tr, W), lambda i: (i, 0)),
                pl.BlockSpec((W, Wo), lambda i: (0, 0)),
            ],
            out_specs=pl.BlockSpec((tr, Wo), lambda i: (i, 0)),
        ),
        compiler_params=pltpu.CompilerParams(
            dimension_semantics=("parallel",),
            vmem_limit_bytes=vmem,
        ),
    )(x2d, sel)
    # TODO(synk): when Wo < 128, pack ceil(128/Wo) pooled-row groups into the
    # lane axis so the output store is lane-dense (avoids masked vst.msk).
    if R_pad != R:
        out2d = out2d[:R]
    return out2d.reshape(B, C, Ho, Wo)


# --------------------------------------------------------------------------
# module wrapper
# --------------------------------------------------------------------------

class DownsamplePallas:
    def __init__(self, in_channels, with_conv, key):
        self.with_conv = with_conv
        if with_conv:
            k_w, k_b = jax.random.split(key)
            fan_in = in_channels * 3 * 3
            bound = 1.0 / (fan_in ** 0.5)
            # Deterministic init matching nn.Conv2d's default uniform ranges.
            self.weight = jax.random.uniform(
                k_w, (in_channels, in_channels, 3, 3),
                minval=-bound, maxval=bound, dtype=jnp.float32)
            self.bias = jax.random.uniform(
                k_b, (in_channels,),
                minval=-bound, maxval=bound, dtype=jnp.float32)

    def __call__(self, x):
        if self.with_conv:
            return conv_downsample(x, self.weight, self.bias)
        return avgpool_downsample(x)


# --------------------------------------------------------------------------
# main
# --------------------------------------------------------------------------

if __name__ == "__main__":
    key = jax.random.PRNGKey(0)
    k_x, k_mod, k_x2, k_mod2 = jax.random.split(key, 4)

    # ---- with_conv=True (f32 MXU operands) ------------------------------
    B, C, H, W = 2, 4, 16, 16
    x = jax.random.normal(k_x, (B, C, H, W), dtype=jnp.float32)
    mod = DownsamplePallas(C, with_conv=True, key=k_mod)
    y_conv = jax.block_until_ready(mod(x))

    xp = jnp.pad(x, ((0, 0), (0, 0), (0, 1), (0, 1)))
    y_ref = lax.conv_general_dilated(
        xp, mod.weight, window_strides=(2, 2), padding="VALID",
        dimension_numbers=("NCHW", "OIHW", "NCHW"),
        precision=lax.Precision.HIGHEST) + mod.bias[None, :, None, None]
    assert y_conv.shape == (B, C, 8, 8), y_conv.shape
    assert jnp.allclose(y_conv, y_ref, atol=1e-4, rtol=1e-4), (
        float(jnp.max(jnp.abs(y_conv - y_ref))))

    # bf16 MXU operands (halved operand DMA bytes); looser tolerance.
    y_bf16 = jax.block_until_ready(
        conv_downsample(x, mod.weight, mod.bias, mxu_dtype=jnp.bfloat16))
    assert y_bf16.shape == (B, C, 8, 8), y_bf16.shape
    assert jnp.allclose(y_bf16, y_ref, atol=1e-1, rtol=1e-1)

    # conv path at awkward sizes (B=1, C=3, 10x10 -> 5x5 outputs)
    x2 = jax.random.normal(k_x2, (1, 3, 10, 10), dtype=jnp.float32)
    mod3 = DownsamplePallas(3, with_conv=True, key=k_mod2)
    y2 = jax.block_until_ready(mod3(x2))
    xp2 = jnp.pad(x2, ((0, 0), (0, 0), (0, 1), (0, 1)))
    y2_ref = lax.conv_general_dilated(
        xp2, mod3.weight, window_strides=(2, 2), padding="VALID",
        dimension_numbers=("NCHW", "OIHW", "NCHW"),
        precision=lax.Precision.HIGHEST) + mod3.bias[None, :, None, None]
    assert y2.shape == (1, 3, 5, 5), y2.shape
    assert jnp.allclose(y2, y2_ref, atol=1e-4, rtol=1e-4), (
        float(jnp.max(jnp.abs(y2 - y2_ref))))

    # ---- with_conv=False -------------------------------------------------
    mod2 = DownsamplePallas(C, with_conv=False, key=k_mod)
    y_pool = jax.block_until_ready(mod2(x))
    y_pool_ref = x.reshape(B, C, H // 2, 2, W // 2, 2).mean(axis=(3, 5))
    assert y_pool.shape == (B, C, 8, 8), y_pool.shape
    assert jnp.allclose(y_pool, y_pool_ref, atol=1e-4, rtol=1e-4)

    # avg-pool with odd spatial size (PyTorch floors)
    x3 = jax.random.normal(k_x, (2, 3, 7, 7), dtype=jnp.float32)
    y3 = jax.block_until_ready(avgpool_downsample(x3))
    y3_ref = x3[:, :, :6, :6].reshape(2, 3, 3, 2, 3, 2).mean(axis=(3, 5))
    assert y3.shape == (2, 3, 3, 3), y3.shape
    assert jnp.allclose(y3, y3_ref, atol=1e-4, rtol=1e-4)

    print("KERNEL_OK")
</pallas_src>

<mosaic_0001>
module attributes {stable_mosaic.version = 11 : i64} {
  func.func @_conv_tap_matmul_kernel(%arg0: i32, %arg1: i32, %arg2: memref<1x180x4xf32, #tpu.memory_space<vmem>>, %arg3: memref<1x180x4xf32, #tpu.memory_space<vmem>>, %arg4: memref<9x4x128xf32, #tpu.memory_space<vmem>>, %arg5: memref<1x128xf32, #tpu.memory_space<vmem>>, %arg6: memref<1x72x128xf32, #tpu.memory_space<vmem>>, %arg7: memref<72x128xf32, #tpu.memory_space<vmem>>) attributes {dimension_semantics = [#tpu.dimension_semantics<parallel>, #tpu.dimension_semantics<parallel>], iteration_bounds = array<i64: 2, 1>, scalar_prefetch = 0 : i64, scratch_operands = 1 : i64, tpu.core_type = #tpu.core_type<tc>, window_params = [{pipeline_mode = #tpu.pipeline_mode<synchronous>, transform_indices = @transform_0, window_bounds = array<i64: 1, 180, 4>}, {pipeline_mode = #tpu.pipeline_mode<synchronous>, transform_indices = @transform_1, window_bounds = array<i64: 1, 180, 4>}, {pipeline_mode = #tpu.pipeline_mode<synchronous>, transform_indices = @transform_2, window_bounds = array<i64: 9, 4, 128>}, {pipeline_mode = #tpu.pipeline_mode<synchronous>, transform_indices = @transform_3, window_bounds = array<i64: 1, 128>}, {transform_indices = @transform_4, window_bounds = array<i64: 1, 72, 128>}]} {
    %c8_i32 = arith.constant 8 : i32
    %0 = arith.muli %arg1, %c8_i32 : i32
    %c0_i32 = arith.constant 0 : i32
    %1 = arith.addi %0, %c0_i32 : i32
    %c18_i32 = arith.constant 18 : i32
    %2 = arith.muli %1, %c18_i32 : i32
    %c0_i32_0 = arith.constant 0 : i32
    %3 = arith.addi %2, %c0_i32_0 : i32
    %c0 = arith.constant 0 : index
    %4 = arith.index_cast %3 : i32 to index
    %c0_1 = arith.constant 0 : index
    %5 = tpu.strided_load %arg2[%c0, %4, %c0_1] {strides = array<i32: 1, 2, 1>} : memref<1x180x4xf32, #tpu.memory_space<vmem>>, vector<1x72x4xf32>
    %6 = vector.shape_cast %5 : vector<1x72x4xf32> to vector<72x4xf32>
    %c0_2 = arith.constant 0 : index
    %c0_3 = arith.constant 0 : index
    %c0_4 = arith.constant 0 : index
    %7 = vector.load %arg4[%c0_2, %c0_3, %c0_4] : memref<9x4x128xf32, #tpu.memory_space<vmem>>, vector<1x4x128xf32>
    %8 = vector.shape_cast %7 : vector<1x4x128xf32> to vector<4x128xf32>
    %cst = arith.constant dense<0.000000e+00> : vector<72x128xf32>
    %9 = tpu.matmul %6, %8, %cst {dimension_numbers = #tpu.dot_dimension_numbers<[1], [0], [0], [1], [0, 0, 1, 1], [], []>} : vector<72x4xf32>, vector<4x128xf32>, vector<72x128xf32> -> vector<72x128xf32>
    %c0_5 = arith.constant 0 : index
    %c0_6 = arith.constant 0 : index
    %10 = vector.load %arg7[%c0_5, %c0_6] : memref<72x128xf32, #tpu.memory_space<vmem>>, vector<72x128xf32>
    tpu.vector_store %arg7[%c0_5, %c0_6], %9 {strides = array<i32>} : memref<72x128xf32, #tpu.memory_space<vmem>>, vector<72x128xf32>,
    %c0_i32_7 = arith.constant 0 : i32
    %11 = arith.addi %0, %c0_i32_7 : i32
    %c18_i32_8 = arith.constant 18 : i32
    %12 = arith.muli %11, %c18_i32_8 : i32
    %c1_i32 = arith.constant 1 : i32
    %13 = arith.addi %12, %c1_i32 : i32
    %c0_9 = arith.constant 0 : index
    %14 = arith.index_cast %13 : i32 to index
    %c0_10 = arith.constant 0 : index
    %15 = tpu.strided_load %arg2[%c0_9, %14, %c0_10] {strides = array<i32: 1, 2, 1>} : memref<1x180x4xf32, #tpu.memory_space<vmem>>, vector<1x72x4xf32>
    %16 = vector.shape_cast %15 : vector<1x72x4xf32> to vector<72x4xf32>
    %c1 = arith.constant 1 : index
    %c0_11 = arith.constant 0 : index
    %c0_12 = arith.constant 0 : index
    %17 = vector.load %arg4[%c1, %c0_11, %c0_12] : memref<9x4x128xf32, #tpu.memory_space<vmem>>, vector<1x4x128xf32>
    %18 = vector.shape_cast %17 : vector<1x4x128xf32> to vector<4x128xf32>
    %cst_13 = arith.constant dense<0.000000e+00> : vector<72x128xf32>
    %19 = tpu.matmul %16, %18, %cst_13 {dimension_numbers = #tpu.dot_dimension_numbers<[1], [0], [0], [1], [0, 0, 1, 1], [], []>} : vector<72x4xf32>, vector<4x128xf32>, vector<72x128xf32> -> vector<72x128xf32>
    %c0_14 = arith.constant 0 : index
    %c0_15 = arith.constant 0 : index
    %20 = vector.load %arg7[%c0_14, %c0_15] : memref<72x128xf32, #tpu.memory_space<vmem>>, vector<72x128xf32>
    %21 = arith.addf %20, %19 : vector<72x128xf32>
    %c0_16 = arith.constant 0 : index
    %c0_17 = arith.constant 0 : index
    %22 = vector.load %arg7[%c0_16, %c0_17] : memref<72x128xf32, #tpu.memory_space<vmem>>, vector<72x128xf32>
    tpu.vector_store %arg7[%c0_16, %c0_17], %21 {strides = array<i32>} : memref<72x128xf32, #tpu.memory_space<vmem>>, vector<72x128xf32>,
    %c0_i32_18 = arith.constant 0 : i32
    %23 = arith.addi %0, %c0_i32_18 : i32
    %c18_i32_19 = arith.constant 18 : i32
    %24 = arith.muli %23, %c18_i32_19 : i32
    %c2_i32 = arith.constant 2 : i32
    %25 = arith.addi %24, %c2_i32 : i32
    %c0_20 = arith.constant 0 : index
    %26 = arith.index_cast %25 : i32 to index
    %c0_21 = arith.constant 0 : index
    %27 = tpu.strided_load %arg2[%c0_20, %26, %c0_21] {strides = array<i32: 1, 2, 1>} : memref<1x180x4xf32, #tpu.memory_space<vmem>>, vector<1x72x4xf32>
    %28 = vector.shape_cast %27 : vector<1x72x4xf32> to vector<72x4xf32>
    %c2 = arith.constant 2 : index
    %c0_22 = arith.constant 0 : index
    %c0_23 = arith.constant 0 : index
    %29 = vector.load %arg4[%c2, %c0_22, %c0_23] : memref<9x4x128xf32, #tpu.memory_space<vmem>>, vector<1x4x128xf32>
    %30 = vector.shape_cast %29 : vector<1x4x128xf32> to vector<4x128xf32>
    %cst_24 = arith.constant dense<0.000000e+00> : vector<72x128xf32>
    %31 = tpu.matmul %28, %30, %cst_24 {dimension_numbers = #tpu.dot_dimension_numbers<[1], [0], [0], [1], [0, 0, 1, 1], [], []>} : vector<72x4xf32>, vector<4x128xf32>, vector<72x128xf32> -> vector<72x128xf32>
    %c0_25 = arith.constant 0 : index
    %c0_26 = arith.constant 0 : index
    %32 = vector.load %arg7[%c0_25, %c0_26] : memref<72x128xf32, #tpu.memory_space<vmem>>, vector<72x128xf32>
    %33 = arith.addf %32, %31 : vector<72x128xf32>
    %c0_27 = arith.constant 0 : index
    %c0_28 = arith.constant 0 : index
    %34 = vector.load %arg7[%c0_27, %c0_28] : memref<72x128xf32, #tpu.memory_space<vmem>>, vector<72x128xf32>
    tpu.vector_store %arg7[%c0_27, %c0_28], %33 {strides = array<i32>} : memref<72x128xf32, #tpu.memory_space<vmem>>, vector<72x128xf32>,
    %c0_i32_29 = arith.constant 0 : i32
    %35 = arith.addi %0, %c0_i32_29 : i32
    %c18_i32_30 = arith.constant 18 : i32
    %36 = arith.muli %35, %c18_i32_30 : i32
    %c0_i32_31 = arith.constant 0 : i32
    %37 = arith.addi %36, %c0_i32_31 : i32
    %c0_32 = arith.constant 0 : index
    %38 = arith.index_cast %37 : i32 to index
    %c0_33 = arith.constant 0 : index
    %39 = tpu.strided_load %arg3[%c0_32, %38, %c0_33] {strides = array<i32: 1, 2, 1>} : memref<1x180x4xf32, #tpu.memory_space<vmem>>, vector<1x72x4xf32>
    %40 = vector.shape_cast %39 : vector<1x72x4xf32> to vector<72x4xf32>
    %c3 = arith.constant 3 : index
    %c0_34 = arith.constant 0 : index
    %c0_35 = arith.constant 0 : index
    %41 = vector.load %arg4[%c3, %c0_34, %c0_35] : memref<9x4x128xf32, #tpu.memory_space<vmem>>, vector<1x4x128xf32>
    %42 = vector.shape_cast %41 : vector<1x4x128xf32> to vector<4x128xf32>
    %cst_36 = arith.constant dense<0.000000e+00> : vector<72x128xf32>
    %43 = tpu.matmul %40, %42, %cst_36 {dimension_numbers = #tpu.dot_dimension_numbers<[1], [0], [0], [1], [0, 0, 1, 1], [], []>} : vector<72x4xf32>, vector<4x128xf32>, vector<72x128xf32> -> vector<72x128xf32>
    %c0_37 = arith.constant 0 : index
    %c0_38 = arith.constant 0 : index
    %44 = vector.load %arg7[%c0_37, %c0_38] : memref<72x128xf32, #tpu.memory_space<vmem>>, vector<72x128xf32>
    %45 = arith.addf %44, %43 : vector<72x128xf32>
    %c0_39 = arith.constant 0 : index
    %c0_40 = arith.constant 0 : index
    %46 = vector.load %arg7[%c0_39, %c0_40] : memref<72x128xf32, #tpu.memory_space<vmem>>, vector<72x128xf32>
    tpu.vector_store %arg7[%c0_39, %c0_40], %45 {strides = array<i32>} : memref<72x128xf32, #tpu.memory_space<vmem>>, vector<72x128xf32>,
    %c0_i32_41 = arith.constant 0 : i32
    %47 = arith.addi %0, %c0_i32_41 : i32
    %c18_i32_42 = arith.constant 18 : i32
    %48 = arith.muli %47, %c18_i32_42 : i32
    %c1_i32_43 = arith.constant 1 : i32
    %49 = arith.addi %48, %c1_i32_43 : i32
    %c0_44 = arith.constant 0 : index
    %50 = arith.index_cast %49 : i32 to index
    %c0_45 = arith.constant 0 : index
    %51 = tpu.strided_load %arg3[%c0_44, %50, %c0_45] {strides = array<i32: 1, 2, 1>} : memref<1x180x4xf32, #tpu.memory_space<vmem>>, vector<1x72x4xf32>
    %52 = vector.shape_cast %51 : vector<1x72x4xf32> to vector<72x4xf32>
    %c4 = arith.constant 4 : index
    %c0_46 = arith.constant 0 : index
    %c0_47 = arith.constant 0 : index
    %53 = vector.load %arg4[%c4, %c0_46, %c0_47] : memref<9x4x128xf32, #tpu.memory_space<vmem>>, vector<1x4x128xf32>
    %54 = vector.shape_cast %53 : vector<1x4x128xf32> to vector<4x128xf32>
    %cst_48 = arith.constant dense<0.000000e+00> : vector<72x128xf32>
    %55 = tpu.matmul %52, %54, %cst_48 {dimension_numbers = #tpu.dot_dimension_numbers<[1], [0], [0], [1], [0, 0, 1, 1], [], []>} : vector<72x4xf32>, vector<4x128xf32>, vector<72x128xf32> -> vector<72x128xf32>
    %c0_49 = arith.constant 0 : index
    %c0_50 = arith.constant 0 : index
    %56 = vector.load %arg7[%c0_49, %c0_50] : memref<72x128xf32, #tpu.memory_space<vmem>>, vector<72x128xf32>
    %57 = arith.addf %56, %55 : vector<72x128xf32>
    %c0_51 = arith.constant 0 : index
    %c0_52 = arith.constant 0 : index
    %58 = vector.load %arg7[%c0_51, %c0_52] : memref<72x128xf32, #tpu.memory_space<vmem>>, vector<72x128xf32>
    tpu.vector_store %arg7[%c0_51, %c0_52], %57 {strides = array<i32>} : memref<72x128xf32, #tpu.memory_space<vmem>>, vector<72x128xf32>,
    %c0_i32_53 = arith.constant 0 : i32
    %59 = arith.addi %0, %c0_i32_53 : i32
    %c18_i32_54 = arith.constant 18 : i32
    %60 = arith.muli %59, %c18_i32_54 : i32
    %c2_i32_55 = arith.constant 2 : i32
    %61 = arith.addi %60, %c2_i32_55 : i32
    %c0_56 = arith.constant 0 : index
    %62 = arith.index_cast %61 : i32 to index
    %c0_57 = arith.constant 0 : index
    %63 = tpu.strided_load %arg3[%c0_56, %62, %c0_57] {strides = array<i32: 1, 2, 1>} : memref<1x180x4xf32, #tpu.memory_space<vmem>>, vector<1x72x4xf32>
    %64 = vector.shape_cast %63 : vector<1x72x4xf32> to vector<72x4xf32>
    %c5 = arith.constant 5 : index
    %c0_58 = arith.constant 0 : index
    %c0_59 = arith.constant 0 : index
    %65 = vector.load %arg4[%c5, %c0_58, %c0_59] : memref<9x4x128xf32, #tpu.memory_space<vmem>>, vector<1x4x128xf32>
    %66 = vector.shape_cast %65 : vector<1x4x128xf32> to vector<4x128xf32>
    %cst_60 = arith.constant dense<0.000000e+00> : vector<72x128xf32>
    %67 = tpu.matmul %64, %66, %cst_60 {dimension_numbers = #tpu.dot_dimension_numbers<[1], [0], [0], [1], [0, 0, 1, 1], [], []>} : vector<72x4xf32>, vector<4x128xf32>, vector<72x128xf32> -> vector<72x128xf32>
    %c0_61 = arith.constant 0 : index
    %c0_62 = arith.constant 0 : index
    %68 = vector.load %arg7[%c0_61, %c0_62] : memref<72x128xf32, #tpu.memory_space<vmem>>, vector<72x128xf32>
    %69 = arith.addf %68, %67 : vector<72x128xf32>
    %c0_63 = arith.constant 0 : index
    %c0_64 = arith.constant 0 : index
    %70 = vector.load %arg7[%c0_63, %c0_64] : memref<72x128xf32, #tpu.memory_space<vmem>>, vector<72x128xf32>
    tpu.vector_store %arg7[%c0_63, %c0_64], %69 {strides = array<i32>} : memref<72x128xf32, #tpu.memory_space<vmem>>, vector<72x128xf32>,
    %c1_i32_65 = arith.constant 1 : i32
    %71 = arith.addi %0, %c1_i32_65 : i32
    %c18_i32_66 = arith.constant 18 : i32
    %72 = arith.muli %71, %c18_i32_66 : i32
    %c0_i32_67 = arith.constant 0 : i32
    %73 = arith.addi %72, %c0_i32_67 : i32
    %c0_68 = arith.constant 0 : index
    %74 = arith.index_cast %73 : i32 to index
    %c0_69 = arith.constant 0 : index
    %75 = tpu.strided_load %arg2[%c0_68, %74, %c0_69] {strides = array<i32: 1, 2, 1>} : memref<1x180x4xf32, #tpu.memory_space<vmem>>, vector<1x72x4xf32>
    %76 = vector.shape_cast %75 : vector<1x72x4xf32> to vector<72x4xf32>
    %c6 = arith.constant 6 : index
    %c0_70 = arith.constant 0 : index
    %c0_71 = arith.constant 0 : index
    %77 = vector.load %arg4[%c6, %c0_70, %c0_71] : memref<9x4x128xf32, #tpu.memory_space<vmem>>, vector<1x4x128xf32>
    %78 = vector.shape_cast %77 : vector<1x4x128xf32> to vector<4x128xf32>
    %cst_72 = arith.constant dense<0.000000e+00> : vector<72x128xf32>
    %79 = tpu.matmul %76, %78, %cst_72 {dimension_numbers = #tpu.dot_dimension_numbers<[1], [0], [0], [1], [0, 0, 1, 1], [], []>} : vector<72x4xf32>, vector<4x128xf32>, vector<72x128xf32> -> vector<72x128xf32>
    %c0_73 = arith.constant 0 : index
    %c0_74 = arith.constant 0 : index
    %80 = vector.load %arg7[%c0_73, %c0_74] : memref<72x128xf32, #tpu.memory_space<vmem>>, vector<72x128xf32>
    %81 = arith.addf %80, %79 : vector<72x128xf32>
    %c0_75 = arith.constant 0 : index
    %c0_76 = arith.constant 0 : index
    %82 = vector.load %arg7[%c0_75, %c0_76] : memref<72x128xf32, #tpu.memory_space<vmem>>, vector<72x128xf32>
    tpu.vector_store %arg7[%c0_75, %c0_76], %81 {strides = array<i32>} : memref<72x128xf32, #tpu.memory_space<vmem>>, vector<72x128xf32>,
    %c1_i32_77 = arith.constant 1 : i32
    %83 = arith.addi %0, %c1_i32_77 : i32
    %c18_i32_78 = arith.constant 18 : i32
    %84 = arith.muli %83, %c18_i32_78 : i32
    %c1_i32_79 = arith.constant 1 : i32
    %85 = arith.addi %84, %c1_i32_79 : i32
    %c0_80 = arith.constant 0 : index
    %86 = arith.index_cast %85 : i32 to index
    %c0_81 = arith.constant 0 : index
    %87 = tpu.strided_load %arg2[%c0_80, %86, %c0_81] {strides = array<i32: 1, 2, 1>} : memref<1x180x4xf32, #tpu.memory_space<vmem>>, vector<1x72x4xf32>
    %88 = vector.shape_cast %87 : vector<1x72x4xf32> to vector<72x4xf32>
    %c7 = arith.constant 7 : index
    %c0_82 = arith.constant 0 : index
    %c0_83 = arith.constant 0 : index
    %89 = vector.load %arg4[%c7, %c0_82, %c0_83] : memref<9x4x128xf32, #tpu.memory_space<vmem>>, vector<1x4x128xf32>
    %90 = vector.shape_cast %89 : vector<1x4x128xf32> to vector<4x128xf32>
    %cst_84 = arith.constant dense<0.000000e+00> : vector<72x128xf32>
    %91 = tpu.matmul %88, %90, %cst_84 {dimension_numbers = #tpu.dot_dimension_numbers<[1], [0], [0], [1], [0, 0, 1, 1], [], []>} : vector<72x4xf32>, vector<4x128xf32>, vector<72x128xf32> -> vector<72x128xf32>
    %c0_85 = arith.constant 0 : index
    %c0_86 = arith.constant 0 : index
    %92 = vector.load %arg7[%c0_85, %c0_86] : memref<72x128xf32, #tpu.memory_space<vmem>>, vector<72x128xf32>
    %93 = arith.addf %92, %91 : vector<72x128xf32>
    %c0_87 = arith.constant 0 : index
    %c0_88 = arith.constant 0 : index
    %94 = vector.load %arg7[%c0_87, %c0_88] : memref<72x128xf32, #tpu.memory_space<vmem>>, vector<72x128xf32>
    tpu.vector_store %arg7[%c0_87, %c0_88], %93 {strides = array<i32>} : memref<72x128xf32, #tpu.memory_space<vmem>>, vector<72x128xf32>,
    %c1_i32_89 = arith.constant 1 : i32
    %95 = arith.addi %0, %c1_i32_89 : i32
    %c18_i32_90 = arith.constant 18 : i32
    %96 = arith.muli %95, %c18_i32_90 : i32
    %c2_i32_91 = arith.constant 2 : i32
    %97 = arith.addi %96, %c2_i32_91 : i32
    %c0_92 = arith.constant 0 : index
    %98 = arith.index_cast %97 : i32 to index
    %c0_93 = arith.constant 0 : index
    %99 = tpu.strided_load %arg2[%c0_92, %98, %c0_93] {strides = array<i32: 1, 2, 1>} : memref<1x180x4xf32, #tpu.memory_space<vmem>>, vector<1x72x4xf32>
    %100 = vector.shape_cast %99 : vector<1x72x4xf32> to vector<72x4xf32>
    %c8 = arith.constant 8 : index
    %c0_94 = arith.constant 0 : index
    %c0_95 = arith.constant 0 : index
    %101 = vector.load %arg4[%c8, %c0_94, %c0_95] : memref<9x4x128xf32, #tpu.memory_space<vmem>>, vector<1x4x128xf32>
    %102 = vector.shape_cast %101 : vector<1x4x128xf32> to vector<4x128xf32>
    %cst_96 = arith.constant dense<0.000000e+00> : vector<72x128xf32>
    %103 = tpu.matmul %100, %102, %cst_96 {dimension_numbers = #tpu.dot_dimension_numbers<[1], [0], [0], [1], [0, 0, 1, 1], [], []>} : vector<72x4xf32>, vector<4x128xf32>, vector<72x128xf32> -> vector<72x128xf32>
    %c0_97 = arith.constant 0 : index
    %c0_98 = arith.constant 0 : index
    %104 = vector.load %arg7[%c0_97, %c0_98] : memref<72x128xf32, #tpu.memory_space<vmem>>, vector<72x128xf32>
    %105 = arith.addf %104, %103 : vector<72x128xf32>
    %c0_99 = arith.constant 0 : index
    %c0_100 = arith.constant 0 : index
    %106 = vector.load %arg7[%c0_99, %c0_100] : memref<72x128xf32, #tpu.memory_space<vmem>>, vector<72x128xf32>
    tpu.vector_store %arg7[%c0_99, %c0_100], %105 {strides = array<i32>} : memref<72x128xf32, #tpu.memory_space<vmem>>, vector<72x128xf32>,
    %c0_101 = arith.constant 0 : index
    %c0_102 = arith.constant 0 : index
    %107 = vector.load %arg7[%c0_101, %c0_102] : memref<72x128xf32, #tpu.memory_space<vmem>>, vector<72x128xf32>
    %c0_103 = arith.constant 0 : index
    %c0_104 = arith.constant 0 : index
    %108 = vector.load %arg5[%c0_103, %c0_104] : memref<1x128xf32, #tpu.memory_space<vmem>>, vector<1x128xf32>
    %109 = vector.broadcast %108 : vector<1x128xf32> to vector<72x128xf32>
    %110 = arith.addf %107, %109 : vector<72x128xf32>
    %c0_105 = arith.constant 0 : index
    %c0_106 = arith.constant 0 : index
    %c0_107 = arith.constant 0 : index
    %111 = vector.load %arg6[%c0_105, %c0_106, %c0_107] : memref<1x72x128xf32, #tpu.memory_space<vmem>>, vector<1x72x128xf32>
    %112 = vector.shape_cast %111 : vector<1x72x128xf32> to vector<72x128xf32>
    %113 = vector.shape_cast %110 : vector<72x128xf32> to vector<1x72x128xf32>
    tpu.vector_store %arg6[%c0_105, %c0_106, %c0_107], %113 {strides = array<i32>} : memref<1x72x128xf32, #tpu.memory_space<vmem>>, vector<1x72x128xf32>,
    return
  }
  func.func @transform_0(%arg0: i32, %arg1: i32) -> (i32, i32, i32) {
    %c0_i32 = arith.constant 0 : i32
    %c0_i32_0 = arith.constant 0 : i32
    %c0_i32_1 = arith.constant 0 : i32
    return %arg0, %c0_i32, %c0_i32_0 : i32, i32, i32
  }
  func.func @transform_1(%arg0: i32, %arg1: i32) -> (i32, i32, i32) {
    %c0_i32 = arith.constant 0 : i32
    %c0_i32_0 = arith.constant 0 : i32
    %c0_i32_1 = arith.constant 0 : i32
    return %arg0, %c0_i32, %c0_i32_0 : i32, i32, i32
  }
  func.func @transform_2(%arg0: i32, %arg1: i32) -> (i32, i32, i32) {
    %c0_i32 = arith.constant 0 : i32
    %c0_i32_0 = arith.constant 0 : i32
    %c0_i32_1 = arith.constant 0 : i32
    %c0_i32_2 = arith.constant 0 : i32
    return %c0_i32, %c0_i32_0, %c0_i32_1 : i32, i32, i32
  }
  func.func @transform_3(%arg0: i32, %arg1: i32) -> (i32, i32) {
    %c0_i32 = arith.constant 0 : i32
    %c0_i32_0 = arith.constant 0 : i32
    %c0_i32_1 = arith.constant 0 : i32
    return %c0_i32, %c0_i32_0 : i32, i32
  }
  func.func @transform_4(%arg0: i32, %arg1: i32) -> (i32, i32, i32) {
    %c0_i32 = arith.constant 0 : i32
    %c0_i32_0 = arith.constant 0 : i32
    return %arg0, %arg1, %c0_i32 : i32, i32, i32
  }
}

module attributes {stable_mosaic.version = 11 : i64} {
  func.func @_conv_tap_matmul_kernel(%arg0: i32, %arg1: i32, %arg2: memref<1x180x4xf32, #tpu.memory_space<vmem>>, %arg3: memref<1x180x4xf32, #tpu.memory_space<vmem>>, %arg4: memref<9x4x128xf32, #tpu.memory_space<vmem>>, %arg5: memref<1x128xf32, #tpu.memory_space<vmem>>, %arg6: memref<1x72x128xf32, #tpu.memory_space<vmem>>, %arg7: memref<72x128xf32, #tpu.memory_space<vmem>>) attributes {dimension_semantics = [#tpu.dimension_semantics<parallel>, #tpu.dimension_semantics<parallel>], iteration_bounds = array<i64: 2, 1>, scalar_prefetch = 0 : i64, scratch_operands = 1 : i64, tpu.core_type = #tpu.core_type<tc>, window_params = [{transform_indices = @transform_0, window_bounds = array<i64: 1, 180, 4>}, {transform_indices = @transform_1, window_bounds = array<i64: 1, 180, 4>}, {pipeline_mode = #tpu.pipeline_mode<synchronous>, transform_indices = @transform_2, window_bounds = array<i64: 9, 4, 128>}, {pipeline_mode = #tpu.pipeline_mode<synchronous>, transform_indices = @transform_3, window_bounds = array<i64: 1, 128>}, {transform_indices = @transform_4, window_bounds = array<i64: 1, 72, 128>}]} {
    %c8_i32 = arith.constant 8 : i32
    %0 = arith.muli %arg1, %c8_i32 : i32
    %c0_i32 = arith.constant 0 : i32
    %1 = arith.addi %0, %c0_i32 : i32
    %c18_i32 = arith.constant 18 : i32
    %2 = arith.muli %1, %c18_i32 : i32
    %c0_i32_0 = arith.constant 0 : i32
    %3 = arith.addi %2, %c0_i32_0 : i32
    %c0 = arith.constant 0 : index
    %4 = arith.index_cast %3 : i32 to index
    %c0_1 = arith.constant 0 : index
    %5 = tpu.strided_load %arg2[%c0, %4, %c0_1] {strides = array<i32: 1, 2, 1>} : memref<1x180x4xf32, #tpu.memory_space<vmem>>, vector<1x72x4xf32>
    %6 = vector.shape_cast %5 : vector<1x72x4xf32> to vector<72x4xf32>
    %c0_2 = arith.constant 0 : index
    %c0_3 = arith.constant 0 : index
    %c0_4 = arith.constant 0 : index
    %7 = vector.load %arg4[%c0_2, %c0_3, %c0_4] : memref<9x4x128xf32, #tpu.memory_space<vmem>>, vector<1x4x128xf32>
    %8 = vector.shape_cast %7 : vector<1x4x128xf32> to vector<4x128xf32>
    %cst = arith.constant dense<0.000000e+00> : vector<72x128xf32>
    %9 = tpu.matmul %6, %8, %cst {dimension_numbers = #tpu.dot_dimension_numbers<[1], [0], [0], [1], [0, 0, 1, 1], [], []>} : vector<72x4xf32>, vector<4x128xf32>, vector<72x128xf32> -> vector<72x128xf32>
    %c0_5 = arith.constant 0 : index
    %c0_6 = arith.constant 0 : index
    %10 = vector.load %arg7[%c0_5, %c0_6] : memref<72x128xf32, #tpu.memory_space<vmem>>, vector<72x128xf32>
    tpu.vector_store %arg7[%c0_5, %c0_6], %9 {strides = array<i32>} : memref<72x128xf32, #tpu.memory_space<vmem>>, vector<72x128xf32>,
    %c0_i32_7 = arith.constant 0 : i32
    %11 = arith.addi %0, %c0_i32_7 : i32
    %c18_i32_8 = arith.constant 18 : i32
    %12 = arith.muli %11, %c18_i32_8 : i32
    %c1_i32 = arith.constant 1 : i32
    %13 = arith.addi %12, %c1_i32 : i32
    %c0_9 = arith.constant 0 : index
    %14 = arith.index_cast %13 : i32 to index
    %c0_10 = arith.constant 0 : index
    %15 = tpu.strided_load %arg2[%c0_9, %14, %c0_10] {strides = array<i32: 1, 2, 1>} : memref<1x180x4xf32, #tpu.memory_space<vmem>>, vector<1x72x4xf32>
    %16 = vector.shape_cast %15 : vector<1x72x4xf32> to vector<72x4xf32>
    %c1 = arith.constant 1 : index
    %c0_11 = arith.constant 0 : index
    %c0_12 = arith.constant 0 : index
    %17 = vector.load %arg4[%c1, %c0_11, %c0_12] : memref<9x4x128xf32, #tpu.memory_space<vmem>>, vector<1x4x128xf32>
    %18 = vector.shape_cast %17 : vector<1x4x128xf32> to vector<4x128xf32>
    %cst_13 = arith.constant dense<0.000000e+00> : vector<72x128xf32>
    %19 = tpu.matmul %16, %18, %cst_13 {dimension_numbers = #tpu.dot_dimension_numbers<[1], [0], [0], [1], [0, 0, 1, 1], [], []>} : vector<72x4xf32>, vector<4x128xf32>, vector<72x128xf32> -> vector<72x128xf32>
    %c0_14 = arith.constant 0 : index
    %c0_15 = arith.constant 0 : index
    %20 = vector.load %arg7[%c0_14, %c0_15] : memref<72x128xf32, #tpu.memory_space<vmem>>, vector<72x128xf32>
    %21 = arith.addf %20, %19 : vector<72x128xf32>
    %c0_16 = arith.constant 0 : index
    %c0_17 = arith.constant 0 : index
    %22 = vector.load %arg7[%c0_16, %c0_17] : memref<72x128xf32, #tpu.memory_space<vmem>>, vector<72x128xf32>
    tpu.vector_store %arg7[%c0_16, %c0_17], %21 {strides = array<i32>} : memref<72x128xf32, #tpu.memory_space<vmem>>, vector<72x128xf32>,
    %c0_i32_18 = arith.constant 0 : i32
    %23 = arith.addi %0, %c0_i32_18 : i32
    %c18_i32_19 = arith.constant 18 : i32
    %24 = arith.muli %23, %c18_i32_19 : i32
    %c2_i32 = arith.constant 2 : i32
    %25 = arith.addi %24, %c2_i32 : i32
    %c0_20 = arith.constant 0 : index
    %26 = arith.index_cast %25 : i32 to index
    %c0_21 = arith.constant 0 : index
    %27 = tpu.strided_load %arg2[%c0_20, %26, %c0_21] {strides = array<i32: 1, 2, 1>} : memref<1x180x4xf32, #tpu.memory_space<vmem>>, vector<1x72x4xf32>
    %28 = vector.shape_cast %27 : vector<1x72x4xf32> to vector<72x4xf32>
    %c2 = arith.constant 2 : index
    %c0_22 = arith.constant 0 : index
    %c0_23 = arith.constant 0 : index
    %29 = vector.load %arg4[%c2, %c0_22, %c0_23] : memref<9x4x128xf32, #tpu.memory_space<vmem>>, vector<1x4x128xf32>
    %30 = vector.shape_cast %29 : vector<1x4x128xf32> to vector<4x128xf32>
    %cst_24 = arith.constant dense<0.000000e+00> : vector<72x128xf32>
    %31 = tpu.matmul %28, %30, %cst_24 {dimension_numbers = #tpu.dot_dimension_numbers<[1], [0], [0], [1], [0, 0, 1, 1], [], []>} : vector<72x4xf32>, vector<4x128xf32>, vector<72x128xf32> -> vector<72x128xf32>
    %c0_25 = arith.constant 0 : index
    %c0_26 = arith.constant 0 : index
    %32 = vector.load %arg7[%c0_25, %c0_26] : memref<72x128xf32, #tpu.memory_space<vmem>>, vector<72x128xf32>
    %33 = arith.addf %32, %31 : vector<72x128xf32>
    %c0_27 = arith.constant 0 : index
    %c0_28 = arith.constant 0 : index
    %34 = vector.load %arg7[%c0_27, %c0_28] : memref<72x128xf32, #tpu.memory_space<vmem>>, vector<72x128xf32>
    tpu.vector_store %arg7[%c0_27, %c0_28], %33 {strides = array<i32>} : memref<72x128xf32, #tpu.memory_space<vmem>>, vector<72x128xf32>,
    %c0_i32_29 = arith.constant 0 : i32
    %35 = arith.addi %0, %c0_i32_29 : i32
    %c18_i32_30 = arith.constant 18 : i32
    %36 = arith.muli %35, %c18_i32_30 : i32
    %c0_i32_31 = arith.constant 0 : i32
    %37 = arith.addi %36, %c0_i32_31 : i32
    %c0_32 = arith.constant 0 : index
    %38 = arith.index_cast %37 : i32 to index
    %c0_33 = arith.constant 0 : index
    %39 = tpu.strided_load %arg3[%c0_32, %38, %c0_33] {strides = array<i32: 1, 2, 1>} : memref<1x180x4xf32, #tpu.memory_space<vmem>>, vector<1x72x4xf32>
    %40 = vector.shape_cast %39 : vector<1x72x4xf32> to vector<72x4xf32>
    %c3 = arith.constant 3 : index
    %c0_34 = arith.constant 0 : index
    %c0_35 = arith.constant 0 : index
    %41 = vector.load %arg4[%c3, %c0_34, %c0_35] : memref<9x4x128xf32, #tpu.memory_space<vmem>>, vector<1x4x128xf32>
    %42 = vector.shape_cast %41 : vector<1x4x128xf32> to vector<4x128xf32>
    %cst_36 = arith.constant dense<0.000000e+00> : vector<72x128xf32>
    %43 = tpu.matmul %40, %42, %cst_36 {dimension_numbers = #tpu.dot_dimension_numbers<[1], [0], [0], [1], [0, 0, 1, 1], [], []>} : vector<72x4xf32>, vector<4x128xf32>, vector<72x128xf32> -> vector<72x128xf32>
    %c0_37 = arith.constant 0 : index
    %c0_38 = arith.constant 0 : index
    %44 = vector.load %arg7[%c0_37, %c0_38] : memref<72x128xf32, #tpu.memory_space<vmem>>, vector<72x128xf32>
    %45 = arith.addf %44, %43 : vector<72x128xf32>
    %c0_39 = arith.constant 0 : index
    %c0_40 = arith.constant 0 : index
    %46 = vector.load %arg7[%c0_39, %c0_40] : memref<72x128xf32, #tpu.memory_space<vmem>>, vector<72x128xf32>
    tpu.vector_store %arg7[%c0_39, %c0_40], %45 {strides = array<i32>} : memref<72x128xf32, #tpu.memory_space<vmem>>, vector<72x128xf32>,
    %c0_i32_41 = arith.constant 0 : i32
    %47 = arith.addi %0, %c0_i32_41 : i32
    %c18_i32_42 = arith.constant 18 : i32
    %48 = arith.muli %47, %c18_i32_42 : i32
    %c1_i32_43 = arith.constant 1 : i32
    %49 = arith.addi %48, %c1_i32_43 : i32
    %c0_44 = arith.constant 0 : index
    %50 = arith.index_cast %49 : i32 to index
    %c0_45 = arith.constant 0 : index
    %51 = tpu.strided_load %arg3[%c0_44, %50, %c0_45] {strides = array<i32: 1, 2, 1>} : memref<1x180x4xf32, #tpu.memory_space<vmem>>, vector<1x72x4xf32>
    %52 = vector.shape_cast %51 : vector<1x72x4xf32> to vector<72x4xf32>
    %c4 = arith.constant 4 : index
    %c0_46 = arith.constant 0 : index
    %c0_47 = arith.constant 0 : index
    %53 = vector.load %arg4[%c4, %c0_46, %c0_47] : memref<9x4x128xf32, #tpu.memory_space<vmem>>, vector<1x4x128xf32>
    %54 = vector.shape_cast %53 : vector<1x4x128xf32> to vector<4x128xf32>
    %cst_48 = arith.constant dense<0.000000e+00> : vector<72x128xf32>
    %55 = tpu.matmul %52, %54, %cst_48 {dimension_numbers = #tpu.dot_dimension_numbers<[1], [0], [0], [1], [0, 0, 1, 1], [], []>} : vector<72x4xf32>, vector<4x128xf32>, vector<72x128xf32> -> vector<72x128xf32>
    %c0_49 = arith.constant 0 : index
    %c0_50 = arith.constant 0 : index
    %56 = vector.load %arg7[%c0_49, %c0_50] : memref<72x128xf32, #tpu.memory_space<vmem>>, vector<72x128xf32>
    %57 = arith.addf %56, %55 : vector<72x128xf32>
    %c0_51 = arith.constant 0 : index
    %c0_52 = arith.constant 0 : index
    %58 = vector.load %arg7[%c0_51, %c0_52] : memref<72x128xf32, #tpu.memory_space<vmem>>, vector<72x128xf32>
    tpu.vector_store %arg7[%c0_51, %c0_52], %57 {strides = array<i32>} : memref<72x128xf32, #tpu.memory_space<vmem>>, vector<72x128xf32>,
    %c0_i32_53 = arith.constant 0 : i32
    %59 = arith.addi %0, %c0_i32_53 : i32
    %c18_i32_54 = arith.constant 18 : i32
    %60 = arith.muli %59, %c18_i32_54 : i32
    %c2_i32_55 = arith.constant 2 : i32
    %61 = arith.addi %60, %c2_i32_55 : i32
    %c0_56 = arith.constant 0 : index
    %62 = arith.index_cast %61 : i32 to index
    %c0_57 = arith.constant 0 : index
    %63 = tpu.strided_load %arg3[%c0_56, %62, %c0_57] {strides = array<i32: 1, 2, 1>} : memref<1x180x4xf32, #tpu.memory_space<vmem>>, vector<1x72x4xf32>
    %64 = vector.shape_cast %63 : vector<1x72x4xf32> to vector<72x4xf32>
    %c5 = arith.constant 5 : index
    %c0_58 = arith.constant 0 : index
    %c0_59 = arith.constant 0 : index
    %65 = vector.load %arg4[%c5, %c0_58, %c0_59] : memref<9x4x128xf32, #tpu.memory_space<vmem>>, vector<1x4x128xf32>
    %66 = vector.shape_cast %65 : vector<1x4x128xf32> to vector<4x128xf32>
    %cst_60 = arith.constant dense<0.000000e+00> : vector<72x128xf32>
    %67 = tpu.matmul %64, %66, %cst_60 {dimension_numbers = #tpu.dot_dimension_numbers<[1], [0], [0], [1], [0, 0, 1, 1], [], []>} : vector<72x4xf32>, vector<4x128xf32>, vector<72x128xf32> -> vector<72x128xf32>
    %c0_61 = arith.constant 0 : index
    %c0_62 = arith.constant 0 : index
    %68 = vector.load %arg7[%c0_61, %c0_62] : memref<72x128xf32, #tpu.memory_space<vmem>>, vector<72x128xf32>
    %69 = arith.addf %68, %67 : vector<72x128xf32>
    %c0_63 = arith.constant 0 : index
    %c0_64 = arith.constant 0 : index
    %70 = vector.load %arg7[%c0_63, %c0_64] : memref<72x128xf32, #tpu.memory_space<vmem>>, vector<72x128xf32>
    tpu.vector_store %arg7[%c0_63, %c0_64], %69 {strides = array<i32>} : memref<72x128xf32, #tpu.memory_space<vmem>>, vector<72x128xf32>,
    %c1_i32_65 = arith.constant 1 : i32
    %71 = arith.addi %0, %c1_i32_65 : i32
    %c18_i32_66 = arith.constant 18 : i32
    %72 = arith.muli %71, %c18_i32_66 : i32
    %c0_i32_67 = arith.constant 0 : i32
    %73 = arith.addi %72, %c0_i32_67 : i32
    %c0_68 = arith.constant 0 : index
    %74 = arith.index_cast %73 : i32 to index
    %c0_69 = arith.constant 0 : index
    %75 = tpu.strided_load %arg2[%c0_68, %74, %c0_69] {strides = array<i32: 1, 2, 1>} : memref<1x180x4xf32, #tpu.memory_space<vmem>>, vector<1x72x4xf32>
    %76 = vector.shape_cast %75 : vector<1x72x4xf32> to vector<72x4xf32>
    %c6 = arith.constant 6 : index
    %c0_70 = arith.constant 0 : index
    %c0_71 = arith.constant 0 : index
    %77 = vector.load %arg4[%c6, %c0_70, %c0_71] : memref<9x4x128xf32, #tpu.memory_space<vmem>>, vector<1x4x128xf32>
    %78 = vector.shape_cast %77 : vector<1x4x128xf32> to vector<4x128xf32>
    %cst_72 = arith.constant dense<0.000000e+00> : vector<72x128xf32>
    %79 = tpu.matmul %76, %78, %cst_72 {dimension_numbers = #tpu.dot_dimension_numbers<[1], [0], [0], [1], [0, 0, 1, 1], [], []>} : vector<72x4xf32>, vector<4x128xf32>, vector<72x128xf32> -> vector<72x128xf32>
    %c0_73 = arith.constant 0 : index
    %c0_74 = arith.constant 0 : index
    %80 = vector.load %arg7[%c0_73, %c0_74] : memref<72x128xf32, #tpu.memory_space<vmem>>, vector<72x128xf32>
    %81 = arith.addf %80, %79 : vector<72x128xf32>
    %c0_75 = arith.constant 0 : index
    %c0_76 = arith.constant 0 : index
    %82 = vector.load %arg7[%c0_75, %c0_76] : memref<72x128xf32, #tpu.memory_space<vmem>>, vector<72x128xf32>
    tpu.vector_store %arg7[%c0_75, %c0_76], %81 {strides = array<i32>} : memref<72x128xf32, #tpu.memory_space<vmem>>, vector<72x128xf32>,
    %c1_i32_77 = arith.constant 1 : i32
    %83 = arith.addi %0, %c1_i32_77 : i32
    %c18_i32_78 = arith.constant 18 : i32
    %84 = arith.muli %83, %c18_i32_78 : i32
    %c1_i32_79 = arith.constant 1 : i32
    %85 = arith.addi %84, %c1_i32_79 : i32
    %c0_80 = arith.constant 0 : index
    %86 = arith.index_cast %85 : i32 to index
    %c0_81 = arith.constant 0 : index
    %87 = tpu.strided_load %arg2[%c0_80, %86, %c0_81] {strides = array<i32: 1, 2, 1>} : memref<1x180x4xf32, #tpu.memory_space<vmem>>, vector<1x72x4xf32>
    %88 = vector.shape_cast %87 : vector<1x72x4xf32> to vector<72x4xf32>
    %c7 = arith.constant 7 : index
    %c0_82 = arith.constant 0 : index
    %c0_83 = arith.constant 0 : index
    %89 = vector.load %arg4[%c7, %c0_82, %c0_83] : memref<9x4x128xf32, #tpu.memory_space<vmem>>, vector<1x4x128xf32>
    %90 = vector.shape_cast %89 : vector<1x4x128xf32> to vector<4x128xf32>
    %cst_84 = arith.constant dense<0.000000e+00> : vector<72x128xf32>
    %91 = tpu.matmul %88, %90, %cst_84 {dimension_numbers = #tpu.dot_dimension_numbers<[1], [0], [0], [1], [0, 0, 1, 1], [], []>} : vector<72x4xf32>, vector<4x128xf32>, vector<72x128xf32> -> vector<72x128xf32>
    %c0_85 = arith.constant 0 : index
    %c0_86 = arith.constant 0 : index
    %92 = vector.load %arg7[%c0_85, %c0_86] : memref<72x128xf32, #tpu.memory_space<vmem>>, vector<72x128xf32>
    %93 = arith.addf %92, %91 : vector<72x128xf32>
    %c0_87 = arith.constant 0 : index
    %c0_88 = arith.constant 0 : index
    %94 = vector.load %arg7[%c0_87, %c0_88] : memref<72x128xf32, #tpu.memory_space<vmem>>, vector<72x128xf32>
    tpu.vector_store %arg7[%c0_87, %c0_88], %93 {strides = array<i32>} : memref<72x128xf32, #tpu.memory_space<vmem>>, vector<72x128xf32>,
    %c1_i32_89 = arith.constant 1 : i32
    %95 = arith.addi %0, %c1_i32_89 : i32
    %c18_i32_90 = arith.constant 18 : i32
    %96 = arith.muli %95, %c18_i32_90 : i32
    %c2_i32_91 = arith.constant 2 : i32
    %97 = arith.addi %96, %c2_i32_91 : i32
    %c0_92 = arith.constant 0 : index
    %98 = arith.index_cast %97 : i32 to index
    %c0_93 = arith.constant 0 : index
    %99 = tpu.strided_load %arg2[%c0_92, %98, %c0_93] {strides = array<i32: 1, 2, 1>} : memref<1x180x4xf32, #tpu.memory_space<vmem>>, vector<1x72x4xf32>
    %100 = vector.shape_cast %99 : vector<1x72x4xf32> to vector<72x4xf32>
    %c8 = arith.constant 8 : index
    %c0_94 = arith.constant 0 : index
    %c0_95 = arith.constant 0 : index
    %101 = vector.load %arg4[%c8, %c0_94, %c0_95] : memref<9x4x128xf32, #tpu.memory_space<vmem>>, vector<1x4x128xf32>
    %102 = vector.shape_cast %101 : vector<1x4x128xf32> to vector<4x128xf32>
    %cst_96 = arith.constant dense<0.000000e+00> : vector<72x128xf32>
    %103 = tpu.matmul %100, %102, %cst_96 {dimension_numbers = #tpu.dot_dimension_numbers<[1], [0], [0], [1], [0, 0, 1, 1], [], []>} : vector<72x4xf32>, vector<4x128xf32>, vector<72x128xf32> -> vector<72x128xf32>
    %c0_97 = arith.constant 0 : index
    %c0_98 = arith.constant 0 : index
    %104 = vector.load %arg7[%c0_97, %c0_98] : memref<72x128xf32, #tpu.memory_space<vmem>>, vector<72x128xf32>
    %105 = arith.addf %104, %103 : vector<72x128xf32>
    %c0_99 = arith.constant 0 : index
    %c0_100 = arith.constant 0 : index
    %106 = vector.load %arg7[%c0_99, %c0_100] : memref<72x128xf32, #tpu.memory_space<vmem>>, vector<72x128xf32>
    tpu.vector_store %arg7[%c0_99, %c0_100], %105 {strides = array<i32>} : memref<72x128xf32, #tpu.memory_space<vmem>>, vector<72x128xf32>,
    %c0_101 = arith.constant 0 : index
    %c0_102 = arith.constant 0 : index
    %107 = vector.load %arg7[%c0_101, %c0_102] : memref<72x128xf32, #tpu.memory_space<vmem>>, vector<72x128xf32>
    %c0_103 = arith.constant 0 : index
    %c0_104 = arith.constant 0 : index
    %108 = vector.load %arg5[%c0_103, %c0_104] : memref<1x128xf32, #tpu.memory_space<vmem>>, vector<1x128xf32>
    %109 = vector.broadcast %108 : vector<1x128xf32> to vector<72x128xf32>
    %110 = arith.addf %107, %109 : vector<72x128xf32>
    %c0_105 = arith.constant 0 : index
    %c0_106 = arith.constant 0 : index
    %c0_107 = arith.constant 0 : index
    %111 = vector.load %arg6[%c0_105, %c0_106, %c0_107] : memref<1x72x128xf32, #tpu.memory_space<vmem>>, vector<1x72x128xf32>
    %112 = vector.shape_cast %111 : vector<1x72x128xf32> to vector<72x128xf32>
    %113 = vector.shape_cast %110 : vector<72x128xf32> to vector<1x72x128xf32>
    tpu.vector_store %arg6[%c0_105, %c0_106, %c0_107], %113 {strides = array<i32>} : memref<1x72x128xf32, #tpu.memory_space<vmem>>, vector<1x72x128xf32>,
    return
  }
  func.func @transform_0(%arg0: i32, %arg1: i32) -> (i32, i32, i32) {
    %c0_i32 = arith.constant 0 : i32
    %c0_i32_0 = arith.constant 0 : i32
    %c0_i32_1 = arith.constant 0 : i32
    return %arg0, %c0_i32, %c0_i32_0 : i32, i32, i32
  }
  func.func @transform_1(%arg0: i32, %arg1: i32) -> (i32, i32, i32) {
    %c0_i32 = arith.constant 0 : i32
    %c0_i32_0 = arith.constant 0 : i32
    %c0_i32_1 = arith.constant 0 : i32
    return %arg0, %c0_i32, %c0_i32_0 : i32, i32, i32
  }
  func.func @transform_2(%arg0: i32, %arg1: i32) -> (i32, i32, i32) {
    %c0_i32 = arith.constant 0 : i32
    %c0_i32_0 = arith.constant 0 : i32
    %c0_i32_1 = arith.constant 0 : i32
    %c0_i32_2 = arith.constant 0 : i32
    return %c0_i32, %c0_i32_0, %c0_i32_1 : i32, i32, i32
  }
  func.func @transform_3(%arg0: i32, %arg1: i32) -> (i32, i32) {
    %c0_i32 = arith.constant 0 : i32
    %c0_i32_0 = arith.constant 0 : i32
    %c0_i32_1 = arith.constant 0 : i32
    return %c0_i32, %c0_i32_0 : i32, i32
  }
  func.func @transform_4(%arg0: i32, %arg1: i32) -> (i32, i32, i32) {
    %c0_i32 = arith.constant 0 : i32
    %c0_i32_0 = arith.constant 0 : i32
    return %arg0, %arg1, %c0_i32 : i32, i32, i32
  }
}

</mosaic_0001>

<llo_original>
// kernel: tpu_custom_call.1
$region0: #{tpu_custom_call.1}
  #allocation0 [shape = 'u32[]', space=smem, size = 0x4, offset = 0x4, fixed_abs, tag = 'smem constant byte address 0x4 - core index']
  #allocation1 [shape = 'u32[144,128]{1,0:T(1,128)}', space=vmem, size = 0x12000, scoped, tag = 'internal scratch']
  #allocation2 [shape = 'f32[72,128]{1,0:T(8,128)}', space=vmem, size = 0x9000, scoped, tag = 'scratch operand']
  %s0 = inlined_call_operand.vmem [shape: f32[2,180,4], index: 0, kind: input, shape index: {}]
  %s1 = inlined_call_operand.vmem [shape: f32[2,180,4], index: 1, kind: input, shape index: {}]
  %s2 = inlined_call_operand.vmem [shape: f32[9,4,128], index: 2, kind: input, shape index: {}]
  %s3 = inlined_call_operand.vmem [shape: f32[1,128], index: 3, kind: input, shape index: {}]
  %s4 = inlined_call_operand.hbm [shape: f32[2,72,128], index: 4, kind: output, shape index: {}]
  %s5 = sld [smem:[#allocation0]]
  $region49: #{tpu_custom_call.1} parent=0
    _
  %s7 = ssub.s32 1, %s5
  %s8 = scalar_select 0, %s7, %s5
  $region1: #{tpu_custom_call.1} parent=0
    #allocation3 [shape = 'u8[73728]{0}', space=vmem, size = 0x12000, scoped, tag = 'output window, operand 0']
    #allocation4 [shape = 's32[2]{0}', space=sflag, size = 0x8, scoped, tag = 'scoped memory for tpu_custom_call.1']
    %9 = vsyncpa [#allocation4], 0
    %s10 = scalar_lea.sflag [#allocation4], 1
    %11 = vsyncpa %s10, 0
    loop: start=0, step=1, limit=4
    $region2: #{tpu_custom_call.1} parent=1 // loop_pre_header
      _
    $region3: #{tpu_custom_call.1} parent=1 // loop_header
      %s13 = sphi 0, %s17
      %p14 = scmp.ge.s32.totalorder %s13, 4
      %s20 = sphi 0, %s32
      %s21 = sphi 0, %s28
      %s22 = sphi 0, %s20
      %s23 = sphi 0, %s21
      %s24 = sphi 0, %s22
      %s25 = sphi 0, %s23
      %s35 = sphi 0, %s37
      %s38 = sphi 0, %s35
      %s39 = sphi 0, %s38
      %s55 = sphi 0, %s39
      %s61 = sphi 0, %s63
      %s64 = sphi 0, %s61
      %s65 = sphi 0, %s64
      %s81 = sphi 0, %s65
      %s85 = sphi 0, %s85
      %s87 = sphi 0, %s85
      %s88 = sphi 0, %s87
      %s102 = sphi 0, %s88
      %s106 = sphi 0, %s106
      %s108 = sphi 0, %s106
      %s109 = sphi 0, %s108
      %s123 = sphi 0, %s109
      %s131 = sphi 0, %s133
      %s134 = sphi 0, %s131
      %s135 = sphi 0, %s134
      %s151 = sphi 0, %s135
    $region4: #{tpu_custom_call.1} parent=1 // loop_header_branch
      %16 = sbr.rel (%p14) target = $region8
    $region5: #{tpu_custom_call.1} parent=1 // loop_body
      %s18 = ssub.s32 %s13, 1
      %s19 = ssub.s32 %s13, 2
      %s26 = sadd.s32 1, %s21
      %p27 = scmp.ge.s32.totalorder %s26, 1
      %s28 = scalar_select %p27, 0, %s26
      %s29 = sadd.s32 1, %s20
      %s30 = scalar_select %p27, %s29, %s20
      %p31 = scmp.ge.s32.totalorder %s30, 2
      %s32 = scalar_select %p31, 0, %s30
      %s33 = ssub.s32 %s20, %s32
      %p34 = scmp.eq.s32.totalorder %s33, 0
      %s36 = sadd.s32 %s35, 1
      %s37 = scalar_select %p34, %s35, %s36
      %p40 = pneg %p34
      %p41 = scmp.eq.s32.totalorder %s13, 1
      %p42 = por %p40, %p41
      %p43 = scmp.ne.s32.totalorder %s35, %s38
      %p44 = scmp.eq.s32.totalorder %s13, 0
      %p45 = por %p43, %p44
      %p46 = scmp.ne.s32.totalorder %s35, %s38
      %p47 = scmp.eq.s32.totalorder %s18, 1
      %p48 = por %p46, %p47
      %p49 = scmp.ne.s32.totalorder %s38, %s39
      %p50 = scmp.eq.s32.totalorder %s18, 0
      %p51 = por %p49, %p50
      %p52 = scmp.ne.s32.totalorder %s38, %s39
      %p53 = scmp.eq.s32.totalorder %s19, 1
      %p54 = por %p52, %p53
      %p56 = scmp.ne.s32.totalorder %s39, %s55
      %p57 = scmp.eq.s32.totalorder %s19, 0
      %p58 = por %p56, %p57
      %s59 = ssub.s32 %s20, %s32
      %p60 = scmp.eq.s32.totalorder %s59, 0
      %s62 = sadd.s32 %s61, 1
      %s63 = scalar_select %p60, %s61, %s62
      %p66 = pneg %p60
      %p67 = scmp.eq.s32.totalorder %s13, 1
      %p68 = por %p66, %p67
      %p69 = scmp.ne.s32.totalorder %s61, %s64
      %p70 = scmp.eq.s32.totalorder %s13, 0
      %p71 = por %p69, %p70
      %p72 = scmp.ne.s32.totalorder %s61, %s64
      %p73 = scmp.eq.s32.totalorder %s18, 1
      %p74 = por %p72, %p73
      %p75 = scmp.ne.s32.totalorder %s64, %s65
      %p76 = scmp.eq.s32.totalorder %s18, 0
      %p77 = por %p75, %p76
      %p78 = scmp.ne.s32.totalorder %s64, %s65
      %p79 = scmp.eq.s32.totalorder %s19, 1
      %p80 = por %p78, %p79
      %p82 = scmp.ne.s32.totalorder %s65, %s81
      %p83 = scmp.eq.s32.totalorder %s19, 0
      %p84 = por %p82, %p83
      %s86 = sadd.s32 %s85, 1
      %p89 = scmp.eq.s32.totalorder %s13, 1
      %p90 = scmp.ne.s32.totalorder %s85, %s87
      %p91 = scmp.eq.s32.totalorder %s13, 0
      %p92 = por %p90, %p91
      %p93 = scmp.ne.s32.totalorder %s85, %s87
      %p94 = scmp.eq.s32.totalorder %s18, 1
      %p95 = por %p93, %p94
      %p96 = scmp.ne.s32.totalorder %s87, %s88
      %p97 = scmp.eq.s32.totalorder %s18, 0
      %p98 = por %p96, %p97
      %p99 = scmp.ne.s32.totalorder %s87, %s88
      %p100 = scmp.eq.s32.totalorder %s19, 1
      %p101 = por %p99, %p100
      %p103 = scmp.ne.s32.totalorder %s88, %s102
      %p104 = scmp.eq.s32.totalorder %s19, 0
      %p105 = por %p103, %p104
      %s107 = sadd.s32 %s106, 1
      %p110 = scmp.eq.s32.totalorder %s13, 1
      %p111 = scmp.ne.s32.totalorder %s106, %s108
      %p112 = scmp.eq.s32.totalorder %s13, 0
      %p113 = por %p111, %p112
      %p114 = scmp.ne.s32.totalorder %s106, %s108
      %p115 = scmp.eq.s32.totalorder %s18, 1
      %p116 = por %p114, %p115
      %p117 = scmp.ne.s32.totalorder %s108, %s109
      %p118 = scmp.eq.s32.totalorder %s18, 0
      %p119 = por %p117, %p118
      %p120 = scmp.ne.s32.totalorder %s108, %s109
      %p121 = scmp.eq.s32.totalorder %s19, 1
      %p122 = por %p120, %p121
      %p124 = scmp.ne.s32.totalorder %s109, %s123
      %p125 = scmp.eq.s32.totalorder %s19, 0
      %p126 = por %p124, %p125
      %s127 = ssub.s32 %s20, %s32
      %s128 = ssub.s32 %s21, %s28
      %s129 = sor.u32 %s127, %s128
      %p130 = scmp.eq.s32.totalorder %s129, 0
      %s132 = sadd.s32 %s131, 1
      %s133 = scalar_select %p130, %s131, %s132
      %p136 = pneg %p130
      %p137 = scmp.eq.s32.totalorder %s13, 1
      %p138 = por %p136, %p137
      %p139 = scmp.ne.s32.totalorder %s131, %s134
      %p140 = scmp.eq.s32.totalorder %s13, 0
      %p141 = por %p139, %p140
      %p142 = scmp.ne.s32.totalorder %s131, %s134
      %p143 = scmp.eq.s32.totalorder %s18, 1
      %p144 = por %p142, %p143
      %p145 = scmp.ne.s32.totalorder %s134, %s135
      %p146 = scmp.eq.s32.totalorder %s18, 0
      %p147 = por %p145, %p146
      %p148 = scmp.ne.s32.totalorder %s134, %s135
      %p149 = scmp.eq.s32.totalorder %s19, 1
      %p150 = por %p148, %p149
      %p152 = scmp.ne.s32.totalorder %s135, %s151
      %p153 = scmp.eq.s32.totalorder %s19, 0
      %p154 = por %p152, %p153
      %p155 = scmp.le.s32.totalorder 1, %s13
      %p156 = scmp.lt.s32.totalorder %s13, 3
      %p157 = pnand %p155, %p156
      %p158 = pneg %p157
      // Predicated region
      $region9: #{tpu_custom_call.1} parent=5 // pred_check
        _
      $region10: #{tpu_custom_call.1} parent=5 // pred_check_branch
        %160 = sbr.rel (%p157) target = $region12
      $region11: #{tpu_custom_call.1} parent=5 // pred_region
        %s161 = ssub.s32 %s13, 1
        // Predicated region
        $region13: #{tpu_custom_call.1} parent=11 // pred_check
          %p162 = pneg %p51
        $region14: #{tpu_custom_call.1} parent=11 // pred_check_branch
          %164 = sbr.rel (%p162) target = $region16
        $region15: #{tpu_custom_call.1} parent=11 // pred_region
          %p165 = scmp.lt.s32.totalorder %s22, 1
          %s166 = scalar_select %p165, %s22, 1
          %s167 = smul.addr %s166, 23
          %s168 = smul.addr %s167, 8
          %s169 = scalar_lea.vmem %s0, %s168
        $region16: #{tpu_custom_call.1} parent=11 // pred_fallthru
          _
        // Predicated region
        $region17: #{tpu_custom_call.1} parent=11 // pred_check
          %p170 = pneg %p77
        $region18: #{tpu_custom_call.1} parent=11 // pred_check_branch
          %172 = sbr.rel (%p170) target = $region20
        $region19: #{tpu_custom_call.1} parent=11 // pred_region
          %p173 = scmp.lt.s32.totalorder %s22, 1
          %s174 = scalar_select %p173, %s22, 1
          %s175 = smul.addr %s174, 23
          %s176 = smul.addr %s175, 8
          %s177 = scalar_lea.vmem %s1, %s176
        $region20: #{tpu_custom_call.1} parent=11 // pred_fallthru
          _
        // Predicated region
        $region21: #{tpu_custom_call.1} parent=11 // pred_check
          %p178 = pneg %p98
        $region22: #{tpu_custom_call.1} parent=11 // pred_check_branch
          %180 = sbr.rel (%p178) target = $region24
        $region23: #{tpu_custom_call.1} parent=11 // pred_region
          _
        $region24: #{tpu_custom_call.1} parent=11 // pred_fallthru
          _
        // Predicated region
        $region25: #{tpu_custom_call.1} parent=11 // pred_check
          %p181 = pneg %p119
        $region26: #{tpu_custom_call.1} parent=11 // pred_check_branch
          %183 = sbr.rel (%p181) target = $region28
        $region27: #{tpu_custom_call.1} parent=11 // pred_region
          _
        $region28: #{tpu_custom_call.1} parent=11 // pred_fallthru
          _
      $region12: #{tpu_custom_call.1} parent=5 // pred_fallthru
        _
      %p184 = scmp.lt.s32.totalorder %s13, 2
      // Predicated region
      $region29: #{tpu_custom_call.1} parent=5 // pred_check
        %p185 = pneg %p184
      $region30: #{tpu_custom_call.1} parent=5 // pred_check_branch
        %187 = sbr.rel (%p185) target = $region32
      $region31: #{tpu_custom_call.1} parent=5 // pred_region
        _
      $region32: #{tpu_custom_call.1} parent=5 // pred_fallthru
        _
      %p188 = scmp.le.s32.totalorder 1, %s13
      %p189 = scmp.lt.s32.totalorder %s13, 3
      %p190 = pnand %p188, %p189
      %p191 = pneg %p190
      // Predicated region
      $region33: #{tpu_custom_call.1} parent=5 // pred_check
        _
      $region34: #{tpu_custom_call.1} parent=5 // pred_check_branch
        %193 = sbr.rel (%p190) target = $region36
      $region35: #{tpu_custom_call.1} parent=5 // pred_region
        %s194 = ssub.s32 %s13, 1
        %p195 = scmp.lt.s32.totalorder %s22, 1
        %s196 = scalar_select %p195, %s22, 1
        %s197 = smul.addr %s196, 23
        %s198 = smul.addr %s197, 8
        %s199 = scalar_lea.vmem %s0, %s198
        %p200 = pneg %p51
        %p201 = pneg %p48
        %p202 = scmp.lt.s32.totalorder %s22, 1
        %s203 = scalar_select %p202, %s22, 1
        %s204 = smul.addr %s203, 23
        %s205 = smul.addr %s204, 8
        %s206 = scalar_lea.vmem %s1, %s205
        %p207 = pneg %p77
        %p208 = pneg %p74
        %p209 = pneg %p98
        %p210 = pneg %p95
        %p211 = pneg %p119
        %p212 = pneg %p116
        %p213 = pneg %p147
        %p214 = pneg %p144
        %s215 = sand.u32 %s134, 1
        %s216 = scalar_lea.sflag [#allocation4], %s215
        %s217 = sand.u32 %s134, 1
        %s218 = smul.addr %s217, 72
        %s219 = scalar_lea.vmem [#allocation3], %s218
        %p220 = scmp.lt.s32.totalorder %s22, 1
        %s221 = scalar_select %p220, %s22, 1
        %s222 = smul.addr %s221, 23
        %s223 = smul.addr %s222, 8
        %s224 = scalar_lea.vmem %s0, %s223
        %p225 = scmp.lt.s32.totalorder %s22, 1
        %s226 = scalar_select %p225, %s22, 1
        %s227 = smul.addr %s226, 23
        %s228 = smul.addr %s227, 8
        %s229 = scalar_lea.vmem %s1, %s228
        %s230 = smul.u32 9, %s23
        %s231 = smul.u32 %s23, 8
        %s232 = smul.u32 %s23, 144
        %s233 = scalar_lea.vmem %s224, %s232
        %v234 = vld [vmem:[%s233] ss:$2 sm:$0xff]
        %s235 = scalar_lea.vmem %s233, 16
        %v236 = vld [vmem:[%s235] ss:$2 sm:$0xff]
        %s237 = scalar_lea.vmem %s233, 32
        %v238 = vld [vmem:[%s237] ss:$2 sm:$0xff]
        %s239 = scalar_lea.vmem %s233, 48
        %v240 = vld [vmem:[%s239] ss:$2 sm:$0xff]
        %s241 = scalar_lea.vmem %s233, 64
        %v242 = vld [vmem:[%s241] ss:$2 sm:$0xff]
        %s243 = scalar_lea.vmem %s233, 80
        %v244 = vld [vmem:[%s243] ss:$2 sm:$0xff]
        %s245 = scalar_lea.vmem %s233, 96
        %v246 = vld [vmem:[%s245] ss:$2 sm:$0xff]
        %s247 = scalar_lea.vmem %s233, 112
        %v248 = vld [vmem:[%s247] ss:$2 sm:$0xff]
        %s249 = scalar_lea.vmem %s233, 128
        %v250 = vld [vmem:[%s249] ss:$2 sm:$0xff]
        %v251 = vld [vmem:[%s2] sm:$0xf]
        %vm252 = vcmask 31744
        %v254 = vsel %vm252, %v234, 0
        %v257 = vsel %vm252, %v236, 0
        %v260 = vsel %vm252, %v238, 0
        %v263 = vsel %vm252, %v240, 0
        %v266 = vsel %vm252, %v242, 0
        %v269 = vsel %vm252, %v244, 0
        %v272 = vsel %vm252, %v246, 0
        %v275 = vsel %vm252, %v248, 0
        %v278 = vsel %vm252, %v250, 0
        %vm280 = vcmask 1043456
        %v282 = vsel %vm280, %v251, 0
        %284 = vmatprep.subr.mxu0 0.0
        %285 = vmatpush1.msra.mxu0 %v282
        %286 = vmatprep.subr.mxu0 0.0
        %287 = vmatpush1.msra.mxu0 0.0
        %288 = vmatprep.subr.mxu0 0.0
        %289 = vmatpush1.msra.mxu0 0.0
        %290 = vmatprep.subr.mxu0 0.0
        %291 = vmatpush1.msra.mxu0 0.0
        %292 = vmatprep.subr.mxu0 0.0
        %293 = vmatpush1.msra.mxu0 0.0
        %294 = vmatprep.subr.mxu0 0.0
        %295 = vmatpush1.msra.mxu0 0.0
        %296 = vmatprep.subr.mxu0 0.0
        %297 = vmatpush1.msra.mxu0 0.0
        %298 = vmatprep.subr.mxu0 0.0
        %299 = vmatpush1.msra.mxu0 0.0
        %300 = vmatprep.subr.mxu0 0.0
        %301 = vmatpush1.msra.mxu0 0.0
        %302 = vmatprep.subr.mxu0 0.0
        %303 = vmatpush1.msra.mxu0 0.0
        %304 = vmatprep.subr.mxu0 0.0
        %305 = vmatpush1.msra.mxu0 0.0
        %306 = vmatprep.subr.mxu0 0.0
        %307 = vmatpush1.msra.mxu0 0.0
        %308 = vmatprep.subr.mxu0 0.0
        %309 = vmatpush1.msra.mxu0 0.0
        %310 = vmatprep.subr.mxu0 0.0
        %311 = vmatpush1.msra.mxu0 0.0
        %312 = vmatprep.subr.mxu0 0.0
        %313 = vmatpush1.msra.mxu0 0.0
        %314 = vmatprep.subr.mxu0 0.0
        %315 = vmatpush1.msra.mxu0 0.0
        %316 = vmatprep.subr.mxu0 0.0
        %317 = vmatpush1.msra.mxu0 0.0
        %318 = vmatprep.subr.mxu0 0.0
        %319 = vmatpush1.msra.mxu0 0.0
        %320 = vmatprep.subr.mxu0 0.0
        %321 = vmatpush1.msra.mxu0 0.0
        %322 = vmatprep.subr.mxu0 0.0
        %323 = vmatpush1.msra.mxu0 0.0
        %324 = vmatprep.subr.mxu0 0.0
        %325 = vmatpush1.msra.mxu0 0.0
        %326 = vmatprep.subr.mxu0 0.0
        %327 = vmatpush1.msra.mxu0 0.0
        %328 = vmatprep.subr.mxu0 0.0
        %329 = vmatpush1.msra.mxu0 0.0
        %330 = vmatprep.subr.mxu0 0.0
        %331 = vmatpush1.msra.mxu0 0.0
        %332 = vmatprep.subr.mxu0 0.0
        %333 = vmatpush1.msra.mxu0 0.0
        %334 = vmatprep.subr.mxu0 0.0
        %335 = vmatpush1.msra.mxu0 0.0
        %336 = vmatprep.subr.mxu0 0.0
        %337 = vmatpush1.msra.mxu0 0.0
        %338 = vmatprep.subr.mxu0 0.0
        %339 = vmatpush1.msra.mxu0 0.0
        %340 = vmatprep.subr.mxu0 0.0
        %341 = vmatpush1.msra.mxu0 0.0
        %342 = vmatprep.subr.mxu0 0.0
        %343 = vmatpush1.msra.mxu0 0.0
        %344 = vmatprep.subr.mxu0 0.0
        %345 = vmatpush1.msra.mxu0 0.0
        %346 = vmatprep.subr.mxu0 0.0
        %347 = vmatpush1.msra.mxu0 0.0
        %348 = vmatprep.mubr.f32.mxu0 0.0
        %349 = vmatmul.mubr.f32.gmra.mrb[0].mxu0 %v254
        %v350 = vpop.f32.mrb[0].mxu0
        %v351 = vadd.f32 0.0, %v350
        %v352 = vpop.f32.mrb[0].mxu0
        %353 = vmatprep.mubr.f32.mxu0 0.0
        %354 = vmatmul.mubr.f32.gmra.mrb[0].mxu0 %v257
        %v355 = vpop.f32.mrb[0].mxu0
        %v356 = vadd.f32 0.0, %v355
        %v357 = vpop.f32.mrb[0].mxu0
        %358 = vmatprep.mubr.f32.mxu0 0.0
        %359 = vmatmul.mubr.f32.gmra.mrb[0].mxu0 %v260
        %v360 = vpop.f32.mrb[0].mxu0
        %v361 = vadd.f32 0.0, %v360
        %v362 = vpop.f32.mrb[0].mxu0
        %363 = vmatprep.mubr.f32.mxu0 0.0
        %364 = vmatmul.mubr.f32.gmra.mrb[0].mxu0 %v263
        %v365 = vpop.f32.mrb[0].mxu0
        %v366 = vadd.f32 0.0, %v365
        %v367 = vpop.f32.mrb[0].mxu0
        %368 = vmatprep.mubr.f32.mxu0 0.0
        %369 = vmatmul.mubr.f32.gmra.mrb[0].mxu0 %v266
        %v370 = vpop.f32.mrb[0].mxu0
        %v371 = vadd.f32 0.0, %v370
        %v372 = vpop.f32.mrb[0].mxu0
        %373 = vmatprep.mubr.f32.mxu0 0.0
        %374 = vmatmul.mubr.f32.gmra.mrb[0].mxu0 %v269
        %v375 = vpop.f32.mrb[0].mxu0
        %v376 = vadd.f32 0.0, %v375
        %v377 = vpop.f32.mrb[0].mxu0
        %378 = vmatprep.mubr.f32.mxu0 0.0
        %379 = vmatmul.mubr.f32.gmra.mrb[0].mxu0 %v272
        %v380 = vpop.f32.mrb[0].mxu0
        %v381 = vadd.f32 0.0, %v380
        %v382 = vpop.f32.mrb[0].mxu0
        %383 = vmatprep.mubr.f32.mxu0 0.0
        %384 = vmatmul.mubr.f32.gmra.mrb[0].mxu0 %v275
        %v385 = vpop.f32.mrb[0].mxu0
        %v386 = vadd.f32 0.0, %v385
        %v387 = vpop.f32.mrb[0].mxu0
        %388 = vmatprep.mubr.f32.mxu0 0.0
        %389 = vmatmul.mubr.f32.gmra.mrb[0].mxu0 %v278
        %v390 = vpop.f32.mrb[0].mxu0
        %v391 = vadd.f32 0.0, %v390
        %v392 = vpop.f32.mrb[0].mxu0
        %393 = vdwg.mxu0
        %394 = vst [vmem:[#allocation2] sm:$0xff] %v351
        %395 = vst [vmem:[#allocation2 + $0x8] sm:$0xff] %v356
        %396 = vst [vmem:[#allocation2 + $0x10] sm:$0xff] %v361
        %397 = vst [vmem:[#allocation2 + $0x18] sm:$0xff] %v366
        %398 = vst [vmem:[#allocation2 + $0x20] sm:$0xff] %v371
        %399 = vst [vmem:[#allocation2 + $0x28] sm:$0xff] %v376
        %400 = vst [vmem:[#allocation2 + $0x30] sm:$0xff] %v381
        %401 = vst [vmem:[#allocation2 + $0x38] sm:$0xff] %v386
        %402 = vst [vmem:[#allocation2 + $0x40] sm:$0xff] %v391
        %s403 = sadd.s32 %s232, 1
        %s404 = scalar_lea.vmem %s224, %s403
        %v405 = vld [vmem:[%s404] ss:$2 sm:$0xff]
        %s406 = scalar_lea.vmem %s404, 16
        %v407 = vld [vmem:[%s406] ss:$2 sm:$0xff]
        %s408 = scalar_lea.vmem %s404, 32
        %v409 = vld [vmem:[%s408] ss:$2 sm:$0xff]
        %s410 = scalar_lea.vmem %s404, 48
        %v411 = vld [vmem:[%s410] ss:$2 sm:$0xff]
        %s412 = scalar_lea.vmem %s404, 64
        %v413 = vld [vmem:[%s412] ss:$2 sm:$0xff]
        %s414 = scalar_lea.vmem %s404, 80
        %v415 = vld [vmem:[%s414] ss:$2 sm:$0xff]
        %s416 = scalar_lea.vmem %s404, 96
        %v417 = vld [vmem:[%s416] ss:$2 sm:$0xff]
        %s418 = scalar_lea.vmem %s404, 112
        %v419 = vld [vmem:[%s418] ss:$2 sm:$0xff]
        %s420 = scalar_lea.vmem %s404, 128
        %v421 = vld [vmem:[%s420] ss:$2 sm:$0xff]
        %s422 = scalar_lea.vmem %s2, 4
        %v423 = vld [vmem:[%s422] sm:$0xf]
        %v425 = vsel %vm252, %v405, 0
        %v428 = vsel %vm252, %v407, 0
        %v431 = vsel %vm252, %v409, 0
        %v434 = vsel %vm252, %v411, 0
        %v437 = vsel %vm252, %v413, 0
        %v440 = vsel %vm252, %v415, 0
        %v443 = vsel %vm252, %v417, 0
        %v446 = vsel %vm252, %v419, 0
        %v449 = vsel %vm252, %v421, 0
        %v452 = vsel %vm280, %v423, 0
        %454 = vmatprep.subr.mxu0 0.0
        %455 = vmatpush1.msra.mxu0 %v452
        %456 = vmatprep.subr.mxu0 0.0
        %457 = vmatpush1.msra.mxu0 0.0
        %458 = vmatprep.subr.mxu0 0.0
        %459 = vmatpush1.msra.mxu0 0.0
        %460 = vmatprep.subr.mxu0 0.0
        %461 = vmatpush1.msra.mxu0 0.0
        %462 = vmatprep.subr.mxu0 0.0
        %463 = vmatpush1.msra.mxu0 0.0
        %464 = vmatprep.subr.mxu0 0.0
        %465 = vmatpush1.msra.mxu0 0.0
        %466 = vmatprep.subr.mxu0 0.0
        %467 = vmatpush1.msra.mxu0 0.0
        %468 = vmatprep.subr.mxu0 0.0
        %469 = vmatpush1.msra.mxu0 0.0
        %470 = vmatprep.subr.mxu0 0.0
        %471 = vmatpush1.msra.mxu0 0.0
        %472 = vmatprep.subr.mxu0 0.0
        %473 = vmatpush1.msra.mxu0 0.0
        %474 = vmatprep.subr.mxu0 0.0
        %475 = vmatpush1.msra.mxu0 0.0
        %476 = vmatprep.subr.mxu0 0.0
        %477 = vmatpush1.msra.mxu0 0.0
        %478 = vmatprep.subr.mxu0 0.0
        %479 = vmatpush1.msra.mxu0 0.0
        %480 = vmatprep.subr.mxu0 0.0
        %481 = vmatpush1.msra.mxu0 0.0
        %482 = vmatprep.subr.mxu0 0.0
        %483 = vmatpush1.msra.mxu0 0.0
        %484 = vmatprep.subr.mxu0 0.0
        %485 = vmatpush1.msra.mxu0 0.0
        %486 = vmatprep.subr.mxu0 0.0
        %487 = vmatpush1.msra.mxu0 0.0
        %488 = vmatprep.subr.mxu0 0.0
        %489 = vmatpush1.msra.mxu0 0.0
        %490 = vmatprep.subr.mxu0 0.0
        %491 = vmatpush1.msra.mxu0 0.0
        %492 = vmatprep.subr.mxu0 0.0
        %493 = vmatpush1.msra.mxu0 0.0
        %494 = vmatprep.subr.mxu0 0.0
        %495 = vmatpush1.msra.mxu0 0.0
        %496 = vmatprep.subr.mxu0 0.0
        %497 = vmatpush1.msra.mxu0 0.0
        %498 = vmatprep.subr.mxu0 0.0
        %499 = vmatpush1.msra.mxu0 0.0
        %500 = vmatprep.subr.mxu0 0.0
        %501 = vmatpush1.msra.mxu0 0.0
        %502 = vmatprep.subr.mxu0 0.0
        %503 = vmatpush1.msra.mxu0 0.0
        %504 = vmatprep.subr.mxu0 0.0
        %505 = vmatpush1.msra.mxu0 0.0
        %506 = vmatprep.subr.mxu0 0.0
        %507 = vmatpush1.msra.mxu0 0.0
        %508 = vmatprep.subr.mxu0 0.0
        %509 = vmatpush1.msra.mxu0 0.0
        %510 = vmatprep.subr.mxu0 0.0
        %511 = vmatpush1.msra.mxu0 0.0
        %512 = vmatprep.subr.mxu0 0.0
        %513 = vmatpush1.msra.mxu0 0.0
        %514 = vmatprep.subr.mxu0 0.0
        %515 = vmatpush1.msra.mxu0 0.0
        %516 = vmatprep.subr.mxu0 0.0
        %517 = vmatpush1.msra.mxu0 0.0
        %518 = vmatprep.mubr.f32.mxu0 0.0
        %519 = vmatmul.mubr.f32.gmra.mrb[0].mxu0 %v425
        %v520 = vpop.f32.mrb[0].mxu0
        %v521 = vadd.f32 0.0, %v520
        %v522 = vpop.f32.mrb[0].mxu0
        %523 = vmatprep.mubr.f32.mxu0 0.0
        %524 = vmatmul.mubr.f32.gmra.mrb[0].mxu0 %v428
        %v525 = vpop.f32.mrb[0].mxu0
        %v526 = vadd.f32 0.0, %v525
        %v527 = vpop.f32.mrb[0].mxu0
        %528 = vmatprep.mubr.f32.mxu0 0.0
        %529 = vmatmul.mubr.f32.gmra.mrb[0].mxu0 %v431
        %v530 = vpop.f32.mrb[0].mxu0
        %v531 = vadd.f32 0.0, %v530
        %v532 = vpop.f32.mrb[0].mxu0
        %533 = vmatprep.mubr.f32.mxu0 0.0
        %534 = vmatmul.mubr.f32.gmra.mrb[0].mxu0 %v434
        %v535 = vpop.f32.mrb[0].mxu0
        %v536 = vadd.f32 0.0, %v535
        %v537 = vpop.f32.mrb[0].mxu0
        %538 = vmatprep.mubr.f32.mxu0 0.0
        %539 = vmatmul.mubr.f32.gmra.mrb[0].mxu0 %v437
        %v540 = vpop.f32.mrb[0].mxu0
        %v541 = vadd.f32 0.0, %v540
        %v542 = vpop.f32.mrb[0].mxu0
        %543 = vmatprep.mubr.f32.mxu0 0.0
        %544 = vmatmul.mubr.f32.gmra.mrb[0].mxu0 %v440
        %v545 = vpop.f32.mrb[0].mxu0
        %v546 = vadd.f32 0.0, %v545
        %v547 = vpop.f32.mrb[0].mxu0
        %548 = vmatprep.mubr.f32.mxu0 0.0
        %549 = vmatmul.mubr.f32.gmra.mrb[0].mxu0 %v443
        %v550 = vpop.f32.mrb[0].mxu0
        %v551 = vadd.f32 0.0, %v550
        %v552 = vpop.f32.mrb[0].mxu0
        %553 = vmatprep.mubr.f32.mxu0 0.0
        %554 = vmatmul.mubr.f32.gmra.mrb[0].mxu0 %v446
        %v555 = vpop.f32.mrb[0].mxu0
        %v556 = vadd.f32 0.0, %v555
        %v557 = vpop.f32.mrb[0].mxu0
        %558 = vmatprep.mubr.f32.mxu0 0.0
        %559 = vmatmul.mubr.f32.gmra.mrb[0].mxu0 %v449
        %v560 = vpop.f32.mrb[0].mxu0
        %v561 = vadd.f32 0.0, %v560
        %v562 = vpop.f32.mrb[0].mxu0
        %563 = vdwg.mxu0
        %v564 = vld [vmem:[#allocation2] sm:$0xff]
        %v565 = vld [vmem:[#allocation2 + $0x8] sm:$0xff]
        %v566 = vld [vmem:[#allocation2 + $0x10] sm:$0xff]
        %v567 = vld [vmem:[#allocation2 + $0x18] sm:$0xff]
        %v568 = vld [vmem:[#allocation2 + $0x20] sm:$0xff]
        %v569 = vld [vmem:[#allocation2 + $0x28] sm:$0xff]
        %v570 = vld [vmem:[#allocation2 + $0x30] sm:$0xff]
        %v571 = vld [vmem:[#allocation2 + $0x38] sm:$0xff]
        %v572 = vld [vmem:[#allocation2 + $0x40] sm:$0xff]
        %v573 = vadd.f32 %v564, %v521
        %v574 = vadd.f32 %v565, %v526
        %v575 = vadd.f32 %v566, %v531
        %v576 = vadd.f32 %v567, %v536
        %v577 = vadd.f32 %v568, %v541
        %v578 = vadd.f32 %v569, %v546
        %v579 = vadd.f32 %v570, %v551
        %v580 = vadd.f32 %v571, %v556
        %v581 = vadd.f32 %v572, %v561
        %582 = vst [vmem:[#allocation2] sm:$0xff] %v573
        %583 = vst [vmem:[#allocation2 + $0x8] sm:$0xff] %v574
        %584 = vst [vmem:[#allocation2 + $0x10] sm:$0xff] %v575
        %585 = vst [vmem:[#allocation2 + $0x18] sm:$0xff] %v576
        %586 = vst [vmem:[#allocation2 + $0x20] sm:$0xff] %v577
        %587 = vst [vmem:[#allocation2 + $0x28] sm:$0xff] %v578
        %588 = vst [vmem:[#allocation2 + $0x30] sm:$0xff] %v579
        %589 = vst [vmem:[#allocation2 + $0x38] sm:$0xff] %v580
        %590 = vst [vmem:[#allocation2 + $0x40] sm:$0xff] %v581
        %s591 = sadd.s32 %s232, 2
        %s592 = scalar_lea.vmem %s224, %s591
        %v593 = vld [vmem:[%s592] ss:$2 sm:$0xff]
        %s594 = scalar_lea.vmem %s592, 16
        %v595 = vld [vmem:[%s594] ss:$2 sm:$0xff]
        %s596 = scalar_lea.vmem %s592, 32
        %v597 = vld [vmem:[%s596] ss:$2 sm:$0xff]
        %s598 = scalar_lea.vmem %s592, 48
        %v599 = vld [vmem:[%s598] ss:$2 sm:$0xff]
        %s600 = scalar_lea.vmem %s592, 64
        %v601 = vld [vmem:[%s600] ss:$2 sm:$0xff]
        %s602 = scalar_lea.vmem %s592, 80
        %v603 = vld [vmem:[%s602] ss:$2 sm:$0xff]
        %s604 = scalar_lea.vmem %s592, 96
        %v605 = vld [vmem:[%s604] ss:$2 sm:$0xff]
        %s606 = scalar_lea.vmem %s592, 112
        %v607 = vld [vmem:[%s606] ss:$2 sm:$0xff]
        %s608 = scalar_lea.vmem %s592, 128
        %v609 = vld [vmem:[%s608] ss:$2 sm:$0xff]
        %s610 = scalar_lea.vmem %s2, 8
        %v611 = vld [vmem:[%s610] sm:$0xf]
        %v613 = vsel %vm252, %v593, 0
        %v616 = vsel %vm252, %v595, 0
        %v619 = vsel %vm252, %v597, 0
        %v622 = vsel %vm252, %v599, 0
        %v625 = vsel %vm252, %v601, 0
        %v628 = vsel %vm252, %v603, 0
        %v631 = vsel %vm252, %v605, 0
        %v634 = vsel %vm252, %v607, 0
        %v637 = vsel %vm252, %v609, 0
        %v640 = vsel %vm280, %v611, 0
        %642 = vmatprep.subr.mxu0 0.0
        %643 = vmatpush1.msra.mxu0 %v640
        %644 = vmatprep.subr.mxu0 0.0
        %645 = vmatpush1.msra.mxu0 0.0
        %646 = vmatprep.subr.mxu0 0.0
        %647 = vmatpush1.msra.mxu0 0.0
        %648 = vmatprep.subr.mxu0 0.0
        %649 = vmatpush1.msra.mxu0 0.0
        %650 = vmatprep.subr.mxu0 0.0
        %651 = vmatpush1.msra.mxu0 0.0
        %652 = vmatprep.subr.mxu0 0.0
        %653 = vmatpush1.msra.mxu0 0.0
        %654 = vmatprep.subr.mxu0 0.0
        %655 = vmatpush1.msra.mxu0 0.0
        %656 = vmatprep.subr.mxu0 0.0
        %657 = vmatpush1.msra.mxu0 0.0
        %658 = vmatprep.subr.mxu0 0.0
        %659 = vmatpush1.msra.mxu0 0.0
        %660 = vmatprep.subr.mxu0 0.0
        %661 = vmatpush1.msra.mxu0 0.0
        %662 = vmatprep.subr.mxu0 0.0
        %663 = vmatpush1.msra.mxu0 0.0
        %664 = vmatprep.subr.mxu0 0.0
        %665 = vmatpush1.msra.mxu0 0.0
        %666 = vmatprep.subr.mxu0 0.0
        %667 = vmatpush1.msra.mxu0 0.0
        %668 = vmatprep.subr.mxu0 0.0
        %669 = vmatpush1.msra.mxu0 0.0
        %670 = vmatprep.subr.mxu0 0.0
        %671 = vmatpush1.msra.mxu0 0.0
        %672 = vmatprep.subr.mxu0 0.0
        %673 = vmatpush1.msra.mxu0 0.0
        %674 = vmatprep.subr.mxu0 0.0
        %675 = vmatpush1.msra.mxu0 0.0
        %676 = vmatprep.subr.mxu0 0.0
        %677 = vmatpush1.msra.mxu0 0.0
        %678 = vmatprep.subr.mxu0 0.0
        %679 = vmatpush1.msra.mxu0 0.0
        %680 = vmatprep.subr.mxu0 0.0
        %681 = vmatpush1.msra.mxu0 0.0
        %682 = vmatprep.subr.mxu0 0.0
        %683 = vmatpush1.msra.mxu0 0.0
        %684 = vmatprep.subr.mxu0 0.0
        %685 = vmatpush1.msra.mxu0 0.0
        %686 = vmatprep.subr.mxu0 0.0
        %687 = vmatpush1.msra.mxu0 0.0
        %688 = vmatprep.subr.mxu0 0.0
        %689 = vmatpush1.msra.mxu0 0.0
        %690 = vmatprep.subr.mxu0 0.0
        %691 = vmatpush1.msra.mxu0 0.0
        %692 = vmatprep.subr.mxu0 0.0
        %693 = vmatpush1.msra.mxu0 0.0
        %694 = vmatprep.subr.mxu0 0.0
        %695 = vmatpush1.msra.mxu0 0.0
        %696 = vmatprep.subr.mxu0 0.0
        %697 = vmatpush1.msra.mxu0 0.0
        %698 = vmatprep.subr.mxu0 0.0
        %699 = vmatpush1.msra.mxu0 0.0
        %700 = vmatprep.subr.mxu0 0.0
        %701 = vmatpush1.msra.mxu0 0.0
        %702 = vmatprep.subr.mxu0 0.0
        %703 = vmatpush1.msra.mxu0 0.0
        %704 = vmatprep.subr.mxu0 0.0
        %705 = vmatpush1.msra.mxu0 0.0
        %706 = vmatprep.mubr.f32.mxu0 0.0
        %707 = vmatmul.mubr.f32.gmra.mrb[0].mxu0 %v613
        %v708 = vpop.f32.mrb[0].mxu0
        %v709 = vadd.f32 0.0, %v708
        %v710 = vpop.f32.mrb[0].mxu0
        %711 = vmatprep.mubr.f32.mxu0 0.0
        %712 = vmatmul.mubr.f32.gmra.mrb[0].mxu0 %v616
        %v713 = vpop.f32.mrb[0].mxu0
        %v714 = vadd.f32 0.0, %v713
        %v715 = vpop.f32.mrb[0].mxu0
        %716 = vmatprep.mubr.f32.mxu0 0.0
        %717 = vmatmul.mubr.f32.gmra.mrb[0].mxu0 %v619
        %v718 = vpop.f32.mrb[0].mxu0
        %v719 = vadd.f32 0.0, %v718
        %v720 = vpop.f32.mrb[0].mxu0
        %721 = vmatprep.mubr.f32.mxu0 0.0
        %722 = vmatmul.mubr.f32.gmra.mrb[0].mxu0 %v622
        %v723 = vpop.f32.mrb[0].mxu0
        %v724 = vadd.f32 0.0, %v723
        %v725 = vpop.f32.mrb[0].mxu0
        %726 = vmatprep.mubr.f32.mxu0 0.0
        %727 = vmatmul.mubr.f32.gmra.mrb[0].mxu0 %v625
        %v728 = vpop.f32.mrb[0].mxu0
        %v729 = vadd.f32 0.0, %v728
        %v730 = vpop.f32.mrb[0].mxu0
        %731 = vmatprep.mubr.f32.mxu0 0.0
        %732 = vmatmul.mubr.f32.gmra.mrb[0].mxu0 %v628
        %v733 = vpop.f32.mrb[0].mxu0
        %v734 = vadd.f32 0.0, %v733
        %v735 = vpop.f32.mrb[0].mxu0
        %736 = vmatprep.mubr.f32.mxu0 0.0
        %737 = vmatmul.mubr.f32.gmra.mrb[0].mxu0 %v631
        %v738 = vpop.f32.mrb[0].mxu0
        %v739 = vadd.f32 0.0, %v738
        %v740 = vpop.f32.mrb[0].mxu0
        %741 = vmatprep.mubr.f32.mxu0 0.0
        %742 = vmatmul.mubr.f32.gmra.mrb[0].mxu0 %v634
        %v743 = vpop.f32.mrb[0].mxu0
        %v744 = vadd.f32 0.0, %v743
        %v745 = vpop.f32.mrb[0].mxu0
        %746 = vmatprep.mubr.f32.mxu0 0.0
        %747 = vmatmul.mubr.f32.gmra.mrb[0].mxu0 %v637
        %v748 = vpop.f32.mrb[0].mxu0
        %v749 = vadd.f32 0.0, %v748
        %v750 = vpop.f32.mrb[0].mxu0
        %751 = vdwg.mxu0
        %v752 = vld [vmem:[#allocation2] sm:$0xff]
        %v753 = vld [vmem:[#allocation2 + $0x8] sm:$0xff]
        %v754 = vld [vmem:[#allocation2 + $0x10] sm:$0xff]
        %v755 = vld [vmem:[#allocation2 + $0x18] sm:$0xff]
        %v756 = vld [vmem:[#allocation2 + $0x20] sm:$0xff]
        %v757 = vld [vmem:[#allocation2 + $0x28] sm:$0xff]
        %v758 = vld [vmem:[#allocation2 + $0x30] sm:$0xff]
        %v759 = vld [vmem:[#allocation2 + $0x38] sm:$0xff]
        %v760 = vld [vmem:[#allocation2 + $0x40] sm:$0xff]
        %v761 = vadd.f32 %v752, %v709
        %v762 = vadd.f32 %v753, %v714
        %v763 = vadd.f32 %v754, %v719
        %v764 = vadd.f32 %v755, %v724
        %v765 = vadd.f32 %v756, %v729
        %v766 = vadd.f32 %v757, %v734
        %v767 = vadd.f32 %v758, %v739
        %v768 = vadd.f32 %v759, %v744
        %v769 = vadd.f32 %v760, %v749
        %770 = vst [vmem:[#allocation2] sm:$0xff] %v761
        %771 = vst [vmem:[#allocation2 + $0x8] sm:$0xff] %v762
        %772 = vst [vmem:[#allocation2 + $0x10] sm:$0xff] %v763
        %773 = vst [vmem:[#allocation2 + $0x18] sm:$0xff] %v764
        %774 = vst [vmem:[#allocation2 + $0x20] sm:$0xff] %v765
        %775 = vst [vmem:[#allocation2 + $0x28] sm:$0xff] %v766
        %776 = vst [vmem:[#allocation2 + $0x30] sm:$0xff] %v767
        %777 = vst [vmem:[#allocation2 + $0x38] sm:$0xff] %v768
        %778 = vst [vmem:[#allocation2 + $0x40] sm:$0xff] %v769
        %s779 = scalar_lea.vmem %s229, %s232
        %v780 = vld [vmem:[%s779] ss:$2 sm:$0xff]
        %s781 = scalar_lea.vmem %s779, 16
        %v782 = vld [vmem:[%s781] ss:$2 sm:$0xff]
        %s783 = scalar_lea.vmem %s779, 32
        %v784 = vld [vmem:[%s783] ss:$2 sm:$0xff]
        %s785 = scalar_lea.vmem %s779, 48
        %v786 = vld [vmem:[%s785] ss:$2 sm:$0xff]
        %s787 = scalar_lea.vmem %s779, 64
        %v788 = vld [vmem:[%s787] ss:$2 sm:$0xff]
        %s789 = scalar_lea.vmem %s779, 80
        %v790 = vld [vmem:[%s789] ss:$2 sm:$0xff]
        %s791 = scalar_lea.vmem %s779, 96
        %v792 = vld [vmem:[%s791] ss:$2 sm:$0xff]
        %s793 = scalar_lea.vmem %s779, 112
        %v794 = vld [vmem:[%s793] ss:$2 sm:$0xff]
        %s795 = scalar_lea.vmem %s779, 128
        %v796 = vld [vmem:[%s795] ss:$2 sm:$0xff]
        %s797 = scalar_lea.vmem %s2, 12
        %v798 = vld [vmem:[%s797] sm:$0xf]
        %v800 = vsel %vm252, %v780, 0
        %v803 = vsel %vm252, %v782, 0
        %v806 = vsel %vm252, %v784, 0
        %v809 = vsel %vm252, %v786, 0
        %v812 = vsel %vm252, %v788, 0
        %v815 = vsel %vm252, %v790, 0
        %v818 = vsel %vm252, %v792, 0
        %v821 = vsel %vm252, %v794, 0
        %v824 = vsel %vm252, %v796, 0
        %v827 = vsel %vm280, %v798, 0
        %829 = vmatprep.subr.mxu0 0.0
        %830 = vmatpush1.msra.mxu0 %v827
        %831 = vmatprep.subr.mxu0 0.0
        %832 = vmatpush1.msra.mxu0 0.0
        %833 = vmatprep.subr.mxu0 0.0
        %834 = vmatpush1.msra.mxu0 0.0
        %835 = vmatprep.subr.mxu0 0.0
        %836 = vmatpush1.msra.mxu0 0.0
        %837 = vmatprep.subr.mxu0 0.0
        %838 = vmatpush1.msra.mxu0 0.0
        %839 = vmatprep.subr.mxu0 0.0
        %840 = vmatpush1.msra.mxu0 0.0
        %841 = vmatprep.subr.mxu0 0.0
        %842 = vmatpush1.msra.mxu0 0.0
        %843 = vmatprep.subr.mxu0 0.0
        %844 = vmatpush1.msra.mxu0 0.0
        %845 = vmatprep.subr.mxu0 0.0
        %846 = vmatpush1.msra.mxu0 0.0
        %847 = vmatprep.subr.mxu0 0.0
        %848 = vmatpush1.msra.mxu0 0.0
        %849 = vmatprep.subr.mxu0 0.0
        %850 = vmatpush1.msra.mxu0 0.0
        %851 = vmatprep.subr.mxu0 0.0
        %852 = vmatpush1.msra.mxu0 0.0
        %853 = vmatprep.subr.mxu0 0.0
        %854 = vmatpush1.msra.mxu0 0.0
        %855 = vmatprep.subr.mxu0 0.0
        %856 = vmatpush1.msra.mxu0 0.0
        %857 = vmatprep.subr.mxu0 0.0
        %858 = vmatpush1.msra.mxu0 0.0
        %859 = vmatprep.subr.mxu0 0.0
        %860 = vmatpush1.msra.mxu0 0.0
        %861 = vmatprep.subr.mxu0 0.0
        %862 = vmatpush1.msra.mxu0 0.0
        %863 = vmatprep.subr.mxu0 0.0
        %864 = vmatpush1.msra.mxu0 0.0
        %865 = vmatprep.subr.mxu0 0.0
        %866 = vmatpush1.msra.mxu0 0.0
        %867 = vmatprep.subr.mxu0 0.0
        %868 = vmatpush1.msra.mxu0 0.0
        %869 = vmatprep.subr.mxu0 0.0
        %870 = vmatpush1.msra.mxu0 0.0
        %871 = vmatprep.subr.mxu0 0.0
        %872 = vmatpush1.msra.mxu0 0.0
        %873 = vmatprep.subr.mxu0 0.0
        %874 = vmatpush1.msra.mxu0 0.0
        %875 = vmatprep.subr.mxu0 0.0
        %876 = vmatpush1.msra.mxu0 0.0
        %877 = vmatprep.subr.mxu0 0.0
        %878 = vmatpush1.msra.mxu0 0.0
        %879 = vmatprep.subr.mxu0 0.0
        %880 = vmatpush1.msra.mxu0 0.0
        %881 = vmatprep.subr.mxu0 0.0
        %882 = vmatpush1.msra.mxu0 0.0
        %883 = vmatprep.subr.mxu0 0.0
        %884 = vmatpush1.msra.mxu0 0.0
        %885 = vmatprep.subr.mxu0 0.0
        %886 = vmatpush1.msra.mxu0 0.0
        %887 = vmatprep.subr.mxu0 0.0
        %888 = vmatpush1.msra.mxu0 0.0
        %889 = vmatprep.subr.mxu0 0.0
        %890 = vmatpush1.msra.mxu0 0.0
        %891 = vmatprep.subr.mxu0 0.0
        %892 = vmatpush1.msra.mxu0 0.0
        %893 = vmatprep.mubr.f32.mxu0 0.0
        %894 = vmatmul.mubr.f32.gmra.mrb[0].mxu0 %v800
        %v895 = vpop.f32.mrb[0].mxu0
        %v896 = vadd.f32 0.0, %v895
        %v897 = vpop.f32.mrb[0].mxu0
        %898 = vmatprep.mubr.f32.mxu0 0.0
        %899 = vmatmul.mubr.f32.gmra.mrb[0].mxu0 %v803
        %v900 = vpop.f32.mrb[0].mxu0
        %v901 = vadd.f32 0.0, %v900
        %v902 = vpop.f32.mrb[0].mxu0
        %903 = vmatprep.mubr.f32.mxu0 0.0
        %904 = vmatmul.mubr.f32.gmra.mrb[0].mxu0 %v806
        %v905 = vpop.f32.mrb[0].mxu0
        %v906 = vadd.f32 0.0, %v905
        %v907 = vpop.f32.mrb[0].mxu0
        %908 = vmatprep.mubr.f32.mxu0 0.0
        %909 = vmatmul.mubr.f32.gmra.mrb[0].mxu0 %v809
        %v910 = vpop.f32.mrb[0].mxu0
        %v911 = vadd.f32 0.0, %v910
        %v912 = vpop.f32.mrb[0].mxu0
        %913 = vmatprep.mubr.f32.mxu0 0.0
        %914 = vmatmul.mubr.f32.gmra.mrb[0].mxu0 %v812
        %v915 = vpop.f32.mrb[0].mxu0
        %v916 = vadd.f32 0.0, %v915
        %v917 = vpop.f32.mrb[0].mxu0
        %918 = vmatprep.mubr.f32.mxu0 0.0
        %919 = vmatmul.mubr.f32.gmra.mrb[0].mxu0 %v815
        %v920 = vpop.f32.mrb[0].mxu0
        %v921 = vadd.f32 0.0, %v920
        %v922 = vpop.f32.mrb[0].mxu0
        %923 = vmatprep.mubr.f32.mxu0 0.0
        %924 = vmatmul.mubr.f32.gmra.mrb[0].mxu0 %v818
        %v925 = vpop.f32.mrb[0].mxu0
        %v926 = vadd.f32 0.0, %v925
        %v927 = vpop.f32.mrb[0].mxu0
        %928 = vmatprep.mubr.f32.mxu0 0.0
        %929 = vmatmul.mubr.f32.gmra.mrb[0].mxu0 %v821
        %v930 = vpop.f32.mrb[0].mxu0
        %v931 = vadd.f32 0.0, %v930
        %v932 = vpop.f32.mrb[0].mxu0
        %933 = vmatprep.mubr.f32.mxu0 0.0
        %934 = vmatmul.mubr.f32.gmra.mrb[0].mxu0 %v824
        %v935 = vpop.f32.mrb[0].mxu0
        %v936 = vadd.f32 0.0, %v935
        %v937 = vpop.f32.mrb[0].mxu0
        %938 = vdwg.mxu0
        %v939 = vld [vmem:[#allocation2] sm:$0xff]
        %v940 = vld [vmem:[#allocation2 + $0x8] sm:$0xff]
        %v941 = vld [vmem:[#allocation2 + $0x10] sm:$0xff]
        %v942 = vld [vmem:[#allocation2 + $0x18] sm:$0xff]
        %v943 = vld [vmem:[#allocation2 + $0x20] sm:$0xff]
        %v944 = vld [vmem:[#allocation2 + $0x28] sm:$0xff]
        %v945 = vld [vmem:[#allocation2 + $0x30] sm:$0xff]
        %v946 = vld [vmem:[#allocation2 + $0x38] sm:$0xff]
        %v947 = vld [vmem:[#allocation2 + $0x40] sm:$0xff]
        %v948 = vadd.f32 %v939, %v896
        %v949 = vadd.f32 %v940, %v901
        %v950 = vadd.f32 %v941, %v906
        %v951 = vadd.f32 %v942, %v911
        %v952 = vadd.f32 %v943, %v916
        %v953 = vadd.f32 %v944, %v921
        %v954 = vadd.f32 %v945, %v926
        %v955 = vadd.f32 %v946, %v931
        %v956 = vadd.f32 %v947, %v936
        %957 = vst [vmem:[#allocation2] sm:$0xff] %v948
        %958 = vst [vmem:[#allocation2 + $0x8] sm:$0xff] %v949
        %959 = vst [vmem:[#allocation2 + $0x10] sm:$0xff] %v950
        %960 = vst [vmem:[#allocation2 + $0x18] sm:$0xff] %v951
        %961 = vst [vmem:[#allocation2 + $0x20] sm:$0xff] %v952
        %962 = vst [vmem:[#allocation2 + $0x28] sm:$0xff] %v953
        %963 = vst [vmem:[#allocation2 + $0x30] sm:$0xff] %v954
        %964 = vst [vmem:[#allocation2 + $0x38] sm:$0xff] %v955
        %965 = vst [vmem:[#allocation2 + $0x40] sm:$0xff] %v956
        %s966 = scalar_lea.vmem %s229, %s403
        %v967 = vld [vmem:[%s966] ss:$2 sm:$0xff]
        %s968 = scalar_lea.vmem %s966, 16
        %v969 = vld [vmem:[%s968] ss:$2 sm:$0xff]
        %s970 = scalar_lea.vmem %s966, 32
        %v971 = vld [vmem:[%s970] ss:$2 sm:$0xff]
        %s972 = scalar_lea.vmem %s966, 48
        %v973 = vld [vmem:[%s972] ss:$2 sm:$0xff]
        %s974 = scalar_lea.vmem %s966, 64
        %v975 = vld [vmem:[%s974] ss:$2 sm:$0xff]
        %s976 = scalar_lea.vmem %s966, 80
        %v977 = vld [vmem:[%s976] ss:$2 sm:$0xff]
        %s978 = scalar_lea.vmem %s966, 96
        %v979 = vld [vmem:[%s978] ss:$2 sm:$0xff]
        %s980 = scalar_lea.vmem %s966, 112
        %v981 = vld [vmem:[%s980] ss:$2 sm:$0xff]
        %s982 = scalar_lea.vmem %s966, 128
        %v983 = vld [vmem:[%s982] ss:$2 sm:$0xff]
        %s984 = scalar_lea.vmem %s2, 16
        %v985 = vld [vmem:[%s984] sm:$0xf]
        %v987 = vsel %vm252, %v967, 0
        %v990 = vsel %vm252, %v969, 0
        %v993 = vsel %vm252, %v971, 0
        %v996 = vsel %vm252, %v973, 0
        %v999 = vsel %vm252, %v975, 0
        %v1002 = vsel %vm252, %v977, 0
        %v1005 = vsel %vm252, %v979, 0
        %v1008 = vsel %vm252, %v981, 0
        %v1011 = vsel %vm252, %v983, 0
        %v1014 = vsel %vm280, %v985, 0
        %1016 = vmatprep.subr.mxu0 0.0
        %1017 = vmatpush1.msra.mxu0 %v1014
        %1018 = vmatprep.subr.mxu0 0.0
        %1019 = vmatpush1.msra.mxu0 0.0
        %1020 = vmatprep.subr.mxu0 0.0
        %1021 = vmatpush1.msra.mxu0 0.0
        %1022 = vmatprep.subr.mxu0 0.0
        %1023 = vmatpush1.msra.mxu0 0.0
        %1024 = vmatprep.subr.mxu0 0.0
        %1025 = vmatpush1.msra.mxu0 0.0
        %1026 = vmatprep.subr.mxu0 0.0
        %1027 = vmatpush1.msra.mxu0 0.0
        %1028 = vmatprep.subr.mxu0 0.0
        %1029 = vmatpush1.msra.mxu0 0.0
        %1030 = vmatprep.subr.mxu0 0.0
        %1031 = vmatpush1.msra.mxu0 0.0
        %1032 = vmatprep.subr.mxu0 0.0
        %1033 = vmatpush1.msra.mxu0 0.0
        %1034 = vmatprep.subr.mxu0 0.0
        %1035 = vmatpush1.msra.mxu0 0.0
        %1036 = vmatprep.subr.mxu0 0.0
        %1037 = vmatpush1.msra.mxu0 0.0
        %1038 = vmatprep.subr.mxu0 0.0
        %1039 = vmatpush1.msra.mxu0 0.0
        %1040 = vmatprep.subr.mxu0 0.0
        %1041 = vmatpush1.msra.mxu0 0.0
        %1042 = vmatprep.subr.mxu0 0.0
        %1043 = vmatpush1.msra.mxu0 0.0
        %1044 = vmatprep.subr.mxu0 0.0
        %1045 = vmatpush1.msra.mxu0 0.0
        %1046 = vmatprep.subr.mxu0 0.0
        %1047 = vmatpush1.msra.mxu0 0.0
        %1048 = vmatprep.subr.mxu0 0.0
        %1049 = vmatpush1.msra.mxu0 0.0
        %1050 = vmatprep.subr.mxu0 0.0
        %1051 = vmatpush1.msra.mxu0 0.0
        %1052 = vmatprep.subr.mxu0 0.0
        %1053 = vmatpush1.msra.mxu0 0.0
        %1054 = vmatprep.subr.mxu0 0.0
        %1055 = vmatpush1.msra.mxu0 0.0
        %1056 = vmatprep.subr.mxu0 0.0
        %1057 = vmatpush1.msra.mxu0 0.0
        %1058 = vmatprep.subr.mxu0 0.0
        %1059 = vmatpush1.msra.mxu0 0.0
        %1060 = vmatprep.subr.mxu0 0.0
        %1061 = vmatpush1.msra.mxu0 0.0
        %1062 = vmatprep.subr.mxu0 0.0
        %1063 = vmatpush1.msra.mxu0 0.0
        %1064 = vmatprep.subr.mxu0 0.0
        %1065 = vmatpush1.msra.mxu0 0.0
        %1066 = vmatprep.subr.mxu0 0.0
        %1067 = vmatpush1.msra.mxu0 0.0
        %1068 = vmatprep.subr.mxu0 0.0
        %1069 = vmatpush1.msra.mxu0 0.0
        %1070 = vmatprep.subr.mxu0 0.0
        %1071 = vmatpush1.msra.mxu0 0.0
        %1072 = vmatprep.subr.mxu0 0.0
        %1073 = vmatpush1.msra.mxu0 0.0
        %1074 = vmatprep.subr.mxu0 0.0
        %1075 = vmatpush1.msra.mxu0 0.0
        %1076 = vmatprep.subr.mxu0 0.0
        %1077 = vmatpush1.msra.mxu0 0.0
        %1078 = vmatprep.subr.mxu0 0.0
        %1079 = vmatpush1.msra.mxu0 0.0
        %1080 = vmatprep.mubr.f32.mxu0 0.0
        %1081 = vmatmul.mubr.f32.gmra.mrb[0].mxu0 %v987
        %v1082 = vpop.f32.mrb[0].mxu0
        %v1083 = vadd.f32 0.0, %v1082
        %v1084 = vpop.f32.mrb[0].mxu0
        %1085 = vmatprep.mubr.f32.mxu0 0.0
        %1086 = vmatmul.mubr.f32.gmra.mrb[0].mxu0 %v990
        %v1087 = vpop.f32.mrb[0].mxu0
        %v1088 = vadd.f32 0.0, %v1087
        %v1089 = vpop.f32.mrb[0].mxu0
        %1090 = vmatprep.mubr.f32.mxu0 0.0
        %1091 = vmatmul.mubr.f32.gmra.mrb[0].mxu0 %v993
        %v1092 = vpop.f32.mrb[0].mxu0
        %v1093 = vadd.f32 0.0, %v1092
        %v1094 = vpop.f32.mrb[0].mxu0
        %1095 = vmatprep.mubr.f32.mxu0 0.0
        %1096 = vmatmul.mubr.f32.gmra.mrb[0].mxu0 %v996
        %v1097 = vpop.f32.mrb[0].mxu0
        %v1098 = vadd.f32 0.0, %v1097
        %v1099 = vpop.f32.mrb[0].mxu0
        %1100 = vmatprep.mubr.f32.mxu0 0.0
        %1101 = vmatmul.mubr.f32.gmra.mrb[0].mxu0 %v999
        %v1102 = vpop.f32.mrb[0].mxu0
        %v1103 = vadd.f32 0.0, %v1102
        %v1104 = vpop.f32.mrb[0].mxu0
        %1105 = vmatprep.mubr.f32.mxu0 0.0
        %1106 = vmatmul.mubr.f32.gmra.mrb[0].mxu0 %v1002
        %v1107 = vpop.f32.mrb[0].mxu0
        %v1108 = vadd.f32 0.0, %v1107
        %v1109 = vpop.f32.mrb[0].mxu0
        %1110 = vmatprep.mubr.f32.mxu0 0.0
        %1111 = vmatmul.mubr.f32.gmra.mrb[0].mxu0 %v1005
        %v1112 = vpop.f32.mrb[0].mxu0
        %v1113 = vadd.f32 0.0, %v1112
        %v1114 = vpop.f32.mrb[0].mxu0
        %1115 = vmatprep.mubr.f32.mxu0 0.0
        %1116 = vmatmul.mubr.f32.gmra.mrb[0].mxu0 %v1008
        %v1117 = vpop.f32.mrb[0].mxu0
        %v1118 = vadd.f32 0.0, %v1117
        %v1119 = vpop.f32.mrb[0].mxu0
        %1120 = vmatprep.mubr.f32.mxu0 0.0
        %1121 = vmatmul.mubr.f32.gmra.mrb[0].mxu0 %v1011
        %v1122 = vpop.f32.mrb[0].mxu0
        %v1123 = vadd.f32 0.0, %v1122
        %v1124 = vpop.f32.mrb[0].mxu0
        %1125 = vdwg.mxu0
        %v1126 = vld [vmem:[#allocation2] sm:$0xff]
        %v1127 = vld [vmem:[#allocation2 + $0x8] sm:$0xff]
        %v1128 = vld [vmem:[#allocation2 + $0x10] sm:$0xff]
        %v1129 = vld [vmem:[#allocation2 + $0x18] sm:$0xff]
        %v1130 = vld [vmem:[#allocation2 + $0x20] sm:$0xff]
        %v1131 = vld [vmem:[#allocation2 + $0x28] sm:$0xff]
        %v1132 = vld [vmem:[#allocation2 + $0x30] sm:$0xff]
        %v1133 = vld [vmem:[#allocation2 + $0x38] sm:$0xff]
        %v1134 = vld [vmem:[#allocation2 + $0x40] sm:$0xff]
        %v1135 = vadd.f32 %v1126, %v1083
        %v1136 = vadd.f32 %v1127, %v1088
        %v1137 = vadd.f32 %v1128, %v1093
        %v1138 = vadd.f32 %v1129, %v1098
        %v1139 = vadd.f32 %v1130, %v1103
        %v1140 = vadd.f32 %v1131, %v1108
        %v1141 = vadd.f32 %v1132, %v1113
        %v1142 = vadd.f32 %v1133, %v1118
        %v1143 = vadd.f32 %v1134, %v1123
        %1144 = vst [vmem:[#allocation2] sm:$0xff] %v1135
        %1145 = vst [vmem:[#allocation2 + $0x8] sm:$0xff] %v1136
        %1146 = vst [vmem:[#allocation2 + $0x10] sm:$0xff] %v1137
        %1147 = vst [vmem:[#allocation2 + $0x18] sm:$0xff] %v1138
        %1148 = vst [vmem:[#allocation2 + $0x20] sm:$0xff] %v1139
        %1149 = vst [vmem:[#allocation2 + $0x28] sm:$0xff] %v1140
        %1150 = vst [vmem:[#allocation2 + $0x30] sm:$0xff] %v1141
        %1151 = vst [vmem:[#allocation2 + $0x38] sm:$0xff] %v1142
        %1152 = vst [vmem:[#allocation2 + $0x40] sm:$0xff] %v1143
        %s1153 = scalar_lea.vmem %s229, %s591
        %v1154 = vld [vmem:[%s1153] ss:$2 sm:$0xff]
        %s1155 = scalar_lea.vmem %s1153, 16
        %v1156 = vld [vmem:[%s1155] ss:$2 sm:$0xff]
        %s1157 = scalar_lea.vmem %s1153, 32
        %v1158 = vld [vmem:[%s1157] ss:$2 sm:$0xff]
        %s1159 = scalar_lea.vmem %s1153, 48
        %v1160 = vld [vmem:[%s1159] ss:$2 sm:$0xff]
        %s1161 = scalar_lea.vmem %s1153, 64
        %v1162 = vld [vmem:[%s1161] ss:$2 sm:$0xff]
        %s1163 = scalar_lea.vmem %s1153, 80
        %v1164 = vld [vmem:[%s1163] ss:$2 sm:$0xff]
        %s1165 = scalar_lea.vmem %s1153, 96
        %v1166 = vld [vmem:[%s1165] ss:$2 sm:$0xff]
        %s1167 = scalar_lea.vmem %s1153, 112
        %v1168 = vld [vmem:[%s1167] ss:$2 sm:$0xff]
        %s1169 = scalar_lea.vmem %s1153, 128
        %v1170 = vld [vmem:[%s1169] ss:$2 sm:$0xff]
        %s1171 = scalar_lea.vmem %s2, 20
        %v1172 = vld [vmem:[%s1171] sm:$0xf]
        %v1174 = vsel %vm252, %v1154, 0
        %v1177 = vsel %vm252, %v1156, 0
        %v1180 = vsel %vm252, %v1158, 0
        %v1183 = vsel %vm252, %v1160, 0
        %v1186 = vsel %vm252, %v1162, 0
        %v1189 = vsel %vm252, %v1164, 0
        %v1192 = vsel %vm252, %v1166, 0
        %v1195 = vsel %vm252, %v1168, 0
        %v1198 = vsel %vm252, %v1170, 0
        %v1201 = vsel %vm280, %v1172, 0
        %1203 = vmatprep.subr.mxu0 0.0
        %1204 = vmatpush1.msra.mxu0 %v1201
        %1205 = vmatprep.subr.mxu0 0.0
        %1206 = vmatpush1.msra.mxu0 0.0
        %1207 = vmatprep.subr.mxu0 0.0
        %1208 = vmatpush1.msra.mxu0 0.0
        %1209 = vmatprep.subr.mxu0 0.0
        %1210 = vmatpush1.msra.mxu0 0.0
        %1211 = vmatprep.subr.mxu0 0.0
        %1212 = vmatpush1.msra.mxu0 0.0
        %1213 = vmatprep.subr.mxu0 0.0
        %1214 = vmatpush1.msra.mxu0 0.0
        %1215 = vmatprep.subr.mxu0 0.0
        %1216 = vmatpush1.msra.mxu0 0.0
        %1217 = vmatprep.subr.mxu0 0.0
        %1218 = vmatpush1.msra.mxu0 0.0
        %1219 = vmatprep.subr.mxu0 0.0
        %1220 = vmatpush1.msra.mxu0 0.0
        %1221 = vmatprep.subr.mxu0 0.0
        %1222 = vmatpush1.msra.mxu0 0.0
        %1223 = vmatprep.subr.mxu0 0.0
        %1224 = vmatpush1.msra.mxu0 0.0
        %1225 = vmatprep.subr.mxu0 0.0
        %1226 = vmatpush1.msra.mxu0 0.0
        %1227 = vmatprep.subr.mxu0 0.0
        %1228 = vmatpush1.msra.mxu0 0.0
        %1229 = vmatprep.subr.mxu0 0.0
        %1230 = vmatpush1.msra.mxu0 0.0
        %1231 = vmatprep.subr.mxu0 0.0
        %1232 = vmatpush1.msra.mxu0 0.0
        %1233 = vmatprep.subr.mxu0 0.0
        %1234 = vmatpush1.msra.mxu0 0.0
        %1235 = vmatprep.subr.mxu0 0.0
        %1236 = vmatpush1.msra.mxu0 0.0
        %1237 = vmatprep.subr.mxu0 0.0
        %1238 = vmatpush1.msra.mxu0 0.0
        %1239 = vmatprep.subr.mxu0 0.0
        %1240 = vmatpush1.msra.mxu0 0.0
        %1241 = vmatprep.subr.mxu0 0.0
        %1242 = vmatpush1.msra.mxu0 0.0
        %1243 = vmatprep.subr.mxu0 0.0
        %1244 = vmatpush1.msra.mxu0 0.0
        %1245 = vmatprep.subr.mxu0 0.0
        %1246 = vmatpush1.msra.mxu0 0.0
        %1247 = vmatprep.subr.mxu0 0.0
        %1248 = vmatpush1.msra.mxu0 0.0
        %1249 = vmatprep.subr.mxu0 0.0
        %1250 = vmatpush1.msra.mxu0 0.0
        %1251 = vmatprep.subr.mxu0 0.0
        %1252 = vmatpush1.msra.mxu0 0.0
        %1253 = vmatprep.subr.mxu0 0.0
        %1254 = vmatpush1.msra.mxu0 0.0
        %1255 = vmatprep.subr.mxu0 0.0
        %1256 = vmatpush1.msra.mxu0 0.0
        %1257 = vmatprep.subr.mxu0 0.0
        %1258 = vmatpush1.msra.mxu0 0.0
        %1259 = vmatprep.subr.mxu0 0.0
        %1260 = vmatpush1.msra.mxu0 0.0
        %1261 = vmatprep.subr.mxu0 0.0
        %1262 = vmatpush1.msra.mxu0 0.0
        %1263 = vmatprep.subr.mxu0 0.0
        %1264 = vmatpush1.msra.mxu0 0.0
        %1265 = vmatprep.subr.mxu0 0.0
        %1266 = vmatpush1.msra.mxu0 0.0
        %1267 = vmatprep.mubr.f32.mxu0 0.0
        %1268 = vmatmul.mubr.f32.gmra.mrb[0].mxu0 %v1174
        %v1269 = vpop.f32.mrb[0].mxu0
        %v1270 = vadd.f32 0.0, %v1269
        %v1271 = vpop.f32.mrb[0].mxu0
        %1272 = vmatprep.mubr.f32.mxu0 0.0
        %1273 = vmatmul.mubr.f32.gmra.mrb[0].mxu0 %v1177
        %v1274 = vpop.f32.mrb[0].mxu0
        %v1275 = vadd.f32 0.0, %v1274
        %v1276 = vpop.f32.mrb[0].mxu0
        %1277 = vmatprep.mubr.f32.mxu0 0.0
        %1278 = vmatmul.mubr.f32.gmra.mrb[0].mxu0 %v1180
        %v1279 = vpop.f32.mrb[0].mxu0
        %v1280 = vadd.f32 0.0, %v1279
        %v1281 = vpop.f32.mrb[0].mxu0
        %1282 = vmatprep.mubr.f32.mxu0 0.0
        %1283 = vmatmul.mubr.f32.gmra.mrb[0].mxu0 %v1183
        %v1284 = vpop.f32.mrb[0].mxu0
        %v1285 = vadd.f32 0.0, %v1284
        %v1286 = vpop.f32.mrb[0].mxu0
        %1287 = vmatprep.mubr.f32.mxu0 0.0
        %1288 = vmatmul.mubr.f32.gmra.mrb[0].mxu0 %v1186
        %v1289 = vpop.f32.mrb[0].mxu0
        %v1290 = vadd.f32 0.0, %v1289
        %v1291 = vpop.f32.mrb[0].mxu0
        %1292 = vmatprep.mubr.f32.mxu0 0.0
        %1293 = vmatmul.mubr.f32.gmra.mrb[0].mxu0 %v1189
        %v1294 = vpop.f32.mrb[0].mxu0
        %v1295 = vadd.f32 0.0, %v1294
        %v1296 = vpop.f32.mrb[0].mxu0
        %1297 = vmatprep.mubr.f32.mxu0 0.0
        %1298 = vmatmul.mubr.f32.gmra.mrb[0].mxu0 %v1192
        %v1299 = vpop.f32.mrb[0].mxu0
        %v1300 = vadd.f32 0.0, %v1299
        %v1301 = vpop.f32.mrb[0].mxu0
        %1302 = vmatprep.mubr.f32.mxu0 0.0
        %1303 = vmatmul.mubr.f32.gmra.mrb[0].mxu0 %v1195
        %v1304 = vpop.f32.mrb[0].mxu0
        %v1305 = vadd.f32 0.0, %v1304
        %v1306 = vpop.f32.mrb[0].mxu0
        %1307 = vmatprep.mubr.f32.mxu0 0.0
        %1308 = vmatmul.mubr.f32.gmra.mrb[0].mxu0 %v1198
        %v1309 = vpop.f32.mrb[0].mxu0
        %v1310 = vadd.f32 0.0, %v1309
        %v1311 = vpop.f32.mrb[0].mxu0
        %1312 = vdwg.mxu0
        %v1313 = vld [vmem:[#allocation2] sm:$0xff]
        %v1314 = vld [vmem:[#allocation2 + $0x8] sm:$0xff]
        %v1315 = vld [vmem:[#allocation2 + $0x10] sm:$0xff]
        %v1316 = vld [vmem:[#allocation2 + $0x18] sm:$0xff]
        %v1317 = vld [vmem:[#allocation2 + $0x20] sm:$0xff]
        %v1318 = vld [vmem:[#allocation2 + $0x28] sm:$0xff]
        %v1319 = vld [vmem:[#allocation2 + $0x30] sm:$0xff]
        %v1320 = vld [vmem:[#allocation2 + $0x38] sm:$0xff]
        %v1321 = vld [vmem:[#allocation2 + $0x40] sm:$0xff]
        %v1322 = vadd.f32 %v1313, %v1270
        %v1323 = vadd.f32 %v1314, %v1275
        %v1324 = vadd.f32 %v1315, %v1280
        %v1325 = vadd.f32 %v1316, %v1285
        %v1326 = vadd.f32 %v1317, %v1290
        %v1327 = vadd.f32 %v1318, %v1295
        %v1328 = vadd.f32 %v1319, %v1300
        %v1329 = vadd.f32 %v1320, %v1305
        %v1330 = vadd.f32 %v1321, %v1310
        %1331 = vst [vmem:[#allocation2] sm:$0xff] %v1322
        %1332 = vst [vmem:[#allocation2 + $0x8] sm:$0xff] %v1323
        %1333 = vst [vmem:[#allocation2 + $0x10] sm:$0xff] %v1324
        %1334 = vst [vmem:[#allocation2 + $0x18] sm:$0xff] %v1325
        %1335 = vst [vmem:[#allocation2 + $0x20] sm:$0xff] %v1326
        %1336 = vst [vmem:[#allocation2 + $0x28] sm:$0xff] %v1327
        %1337 = vst [vmem:[#allocation2 + $0x30] sm:$0xff] %v1328
        %1338 = vst [vmem:[#allocation2 + $0x38] sm:$0xff] %v1329
        %1339 = vst [vmem:[#allocation2 + $0x40] sm:$0xff] %v1330
        %s1340 = sadd.s32 %s231, 1
        %s1341 = smul.u32 %s1340, 18
        %s1342 = scalar_lea.vmem %s224, %s1341
        %v1343 = vld [vmem:[%s1342] ss:$2 sm:$0xff]
        %s1344 = scalar_lea.vmem %s1342, 16
        %v1345 = vld [vmem:[%s1344] ss:$2 sm:$0xff]
        %s1346 = scalar_lea.vmem %s1342, 32
        %v1347 = vld [vmem:[%s1346] ss:$2 sm:$0xff]
        %s1348 = scalar_lea.vmem %s1342, 48
        %v1349 = vld [vmem:[%s1348] ss:$2 sm:$0xff]
        %s1350 = scalar_lea.vmem %s1342, 64
        %v1351 = vld [vmem:[%s1350] ss:$2 sm:$0xff]
        %s1352 = scalar_lea.vmem %s1342, 80
        %v1353 = vld [vmem:[%s1352] ss:$2 sm:$0xff]
        %s1354 = scalar_lea.vmem %s1342, 96
        %v1355 = vld [vmem:[%s1354] ss:$2 sm:$0xff]
        %s1356 = scalar_lea.vmem %s1342, 112
        %v1357 = vld [vmem:[%s1356] ss:$2 sm:$0xff]
        %s1358 = scalar_lea.vmem %s1342, 128
        %v1359 = vld [vmem:[%s1358] ss:$2 sm:$0xff]
        %s1360 = scalar_lea.vmem %s2, 24
        %v1361 = vld [vmem:[%s1360] sm:$0xf]
        %v1363 = vsel %vm252, %v1343, 0
        %v1366 = vsel %vm252, %v1345, 0
        %v1369 = vsel %vm252, %v1347, 0
        %v1372 = vsel %vm252, %v1349, 0
        %v1375 = vsel %vm252, %v1351, 0
        %v1378 = vsel %vm252, %v1353, 0
        %v1381 = vsel %vm252, %v1355, 0
        %v1384 = vsel %vm252, %v1357, 0
        %v1387 = vsel %vm252, %v1359, 0
        %v1390 = vsel %vm280, %v1361, 0
        %1392 = vmatprep.subr.mxu0 0.0
        %1393 = vmatpush1.msra.mxu0 %v1390
        %1394 = vmatprep.subr.mxu0 0.0
        %1395 = vmatpush1.msra.mxu0 0.0
        %1396 = vmatprep.subr.mxu0 0.0
        %1397 = vmatpush1.msra.mxu0 0.0
        %1398 = vmatprep.subr.mxu0 0.0
        %1399 = vmatpush1.msra.mxu0 0.0
        %1400 = vmatprep.subr.mxu0 0.0
        %1401 = vmatpush1.msra.mxu0 0.0
        %1402 = vmatprep.subr.mxu0 0.0
        %1403 = vmatpush1.msra.mxu0 0.0
        %1404 = vmatprep.subr.mxu0 0.0
        %1405 = vmatpush1.msra.mxu0 0.0
        %1406 = vmatprep.subr.mxu0 0.0
        %1407 = vmatpush1.msra.mxu0 0.0
        %1408 = vmatprep.subr.mxu0 0.0
        %1409 = vmatpush1.msra.mxu0 0.0
        %1410 = vmatprep.subr.mxu0 0.0
        %1411 = vmatpush1.msra.mxu0 0.0
        %1412 = vmatprep.subr.mxu0 0.0
        %1413 = vmatpush1.msra.mxu0 0.0
        %1414 = vmatprep.subr.mxu0 0.0
        %1415 = vmatpush1.msra.mxu0 0.0
        %1416 = vmatprep.subr.mxu0 0.0
        %1417 = vmatpush1.msra.mxu0 0.0
        %1418 = vmatprep.subr.mxu0 0.0
        %1419 = vmatpush1.msra.mxu0 0.0
        %1420 = vmatprep.subr.mxu0 0.0
        %1421 = vmatpush1.msra.mxu0 0.0
        %1422 = vmatprep.subr.mxu0 0.0
        %1423 = vmatpush1.msra.mxu0 0.0
        %1424 = vmatprep.subr.mxu0 0.0
        %1425 = vmatpush1.msra.mxu0 0.0
        %1426 = vmatprep.subr.mxu0 0.0
        %1427 = vmatpush1.msra.mxu0 0.0
        %1428 = vmatprep.subr.mxu0 0.0
        %1429 = vmatpush1.msra.mxu0 0.0
        %1430 = vmatprep.subr.mxu0 0.0
        %1431 = vmatpush1.msra.mxu0 0.0
        %1432 = vmatprep.subr.mxu0 0.0
        %1433 = vmatpush1.msra.mxu0 0.0
        %1434 = vmatprep.subr.mxu0 0.0
        %1435 = vmatpush1.msra.mxu0 0.0
        %1436 = vmatprep.subr.mxu0 0.0
        %1437 = vmatpush1.msra.mxu0 0.0
        %1438 = vmatprep.subr.mxu0 0.0
        %1439 = vmatpush1.msra.mxu0 0.0
        %1440 = vmatprep.subr.mxu0 0.0
        %1441 = vmatpush1.msra.mxu0 0.0
        %1442 = vmatprep.subr.mxu0 0.0
        %1443 = vmatpush1.msra.mxu0 0.0
        %1444 = vmatprep.subr.mxu0 0.0
        %1445 = vmatpush1.msra.mxu0 0.0
        %1446 = vmatprep.subr.mxu0 0.0
        %1447 = vmatpush1.msra.mxu0 0.0
        %1448 = vmatprep.subr.mxu0 0.0
        %1449 = vmatpush1.msra.mxu0 0.0
        %1450 = vmatprep.subr.mxu0 0.0
        %1451 = vmatpush1.msra.mxu0 0.0
        %1452 = vmatprep.subr.mxu0 0.0
        %1453 = vmatpush1.msra.mxu0 0.0
        %1454 = vmatprep.subr.mxu0 0.0
        %1455 = vmatpush1.msra.mxu0 0.0
        %1456 = vmatprep.mubr.f32.mxu0 0.0
        %1457 = vmatmul.mubr.f32.gmra.mrb[0].mxu0 %v1363
        %v1458 = vpop.f32.mrb[0].mxu0
        %v1459 = vadd.f32 0.0, %v1458
        %v1460 = vpop.f32.mrb[0].mxu0
        %1461 = vmatprep.mubr.f32.mxu0 0.0
        %1462 = vmatmul.mubr.f32.gmra.mrb[0].mxu0 %v1366
        %v1463 = vpop.f32.mrb[0].mxu0
        %v1464 = vadd.f32 0.0, %v1463
        %v1465 = vpop.f32.mrb[0].mxu0
        %1466 = vmatprep.mubr.f32.mxu0 0.0
        %1467 = vmatmul.mubr.f32.gmra.mrb[0].mxu0 %v1369
        %v1468 = vpop.f32.mrb[0].mxu0
        %v1469 = vadd.f32 0.0, %v1468
        %v1470 = vpop.f32.mrb[0].mxu0
        %1471 = vmatprep.mubr.f32.mxu0 0.0
        %1472 = vmatmul.mubr.f32.gmra.mrb[0].mxu0 %v1372
        %v1473 = vpop.f32.mrb[0].mxu0
        %v1474 = vadd.f32 0.0, %v1473
        %v1475 = vpop.f32.mrb[0].mxu0
        %1476 = vmatprep.mubr.f32.mxu0 0.0
        %1477 = vmatmul.mubr.f32.gmra.mrb[0].mxu0 %v1375
        %v1478 = vpop.f32.mrb[0].mxu0
        %v1479 = vadd.f32 0.0, %v1478
        %v1480 = vpop.f32.mrb[0].mxu0
        %1481 = vmatprep.mubr.f32.mxu0 0.0
        %1482 = vmatmul.mubr.f32.gmra.mrb[0].mxu0 %v1378
        %v1483 = vpop.f32.mrb[0].mxu0
        %v1484 = vadd.f32 0.0, %v1483
        %v1485 = vpop.f32.mrb[0].mxu0
        %1486 = vmatprep.mubr.f32.mxu0 0.0
        %1487 = vmatmul.mubr.f32.gmra.mrb[0].mxu0 %v1381
        %v1488 = vpop.f32.mrb[0].mxu0
        %v1489 = vadd.f32 0.0, %v1488
        %v1490 = vpop.f32.mrb[0].mxu0
        %1491 = vmatprep.mubr.f32.mxu0 0.0
        %1492 = vmatmul.mubr.f32.gmra.mrb[0].mxu0 %v1384
        %v1493 = vpop.f32.mrb[0].mxu0
        %v1494 = vadd.f32 0.0, %v1493
        %v1495 = vpop.f32.mrb[0].mxu0
        %1496 = vmatprep.mubr.f32.mxu0 0.0
        %1497 = vmatmul.mubr.f32.gmra.mrb[0].mxu0 %v1387
        %v1498 = vpop.f32.mrb[0].mxu0
        %v1499 = vadd.f32 0.0, %v1498
        %v1500 = vpop.f32.mrb[0].mxu0
        %1501 = vdwg.mxu0
        %v1502 = vld [vmem:[#allocation2] sm:$0xff]
        %v1503 = vld [vmem:[#allocation2 + $0x8] sm:$0xff]
        %v1504 = vld [vmem:[#allocation2 + $0x10] sm:$0xff]
        %v1505 = vld [vmem:[#allocation2 + $0x18] sm:$0xff]
        %v1506 = vld [vmem:[#allocation2 + $0x20] sm:$0xff]
        %v1507 = vld [vmem:[#allocation2 + $0x28] sm:$0xff]
        %v1508 = vld [vmem:[#allocation2 + $0x30] sm:$0xff]
        %v1509 = vld [vmem:[#allocation2 + $0x38] sm:$0xff]
        %v1510 = vld [vmem:[#allocation2 + $0x40] sm:$0xff]
        %v1511 = vadd.f32 %v1502, %v1459
        %v1512 = vadd.f32 %v1503, %v1464
        %v1513 = vadd.f32 %v1504, %v1469
        %v1514 = vadd.f32 %v1505, %v1474
        %v1515 = vadd.f32 %v1506, %v1479
        %v1516 = vadd.f32 %v1507, %v1484
        %v1517 = vadd.f32 %v1508, %v1489
        %v1518 = vadd.f32 %v1509, %v1494
        %v1519 = vadd.f32 %v1510, %v1499
        %1520 = vst [vmem:[#allocation2] sm:$0xff] %v1511
        %1521 = vst [vmem:[#allocation2 + $0x8] sm:$0xff] %v1512
        %1522 = vst [vmem:[#allocation2 + $0x10] sm:$0xff] %v1513
        %1523 = vst [vmem:[#allocation2 + $0x18] sm:$0xff] %v1514
        %1524 = vst [vmem:[#allocation2 + $0x20] sm:$0xff] %v1515
        %1525 = vst [vmem:[#allocation2 + $0x28] sm:$0xff] %v1516
        %1526 = vst [vmem:[#allocation2 + $0x30] sm:$0xff] %v1517
        %1527 = vst [vmem:[#allocation2 + $0x38] sm:$0xff] %v1518
        %1528 = vst [vmem:[#allocation2 + $0x40] sm:$0xff] %v1519
        %s1529 = sadd.s32 %s1341, 1
        %s1530 = scalar_lea.vmem %s224, %s1529
        %v1531 = vld [vmem:[%s1530] ss:$2 sm:$0xff]
        %s1532 = scalar_lea.vmem %s1530, 16
        %v1533 = vld [vmem:[%s1532] ss:$2 sm:$0xff]
        %s1534 = scalar_lea.vmem %s1530, 32
        %v1535 = vld [vmem:[%s1534] ss:$2 sm:$0xff]
        %s1536 = scalar_lea.vmem %s1530, 48
        %v1537 = vld [vmem:[%s1536] ss:$2 sm:$0xff]
        %s1538 = scalar_lea.vmem %s1530, 64
        %v1539 = vld [vmem:[%s1538] ss:$2 sm:$0xff]
        %s1540 = scalar_lea.vmem %s1530, 80
        %v1541 = vld [vmem:[%s1540] ss:$2 sm:$0xff]
        %s1542 = scalar_lea.vmem %s1530, 96
        %v1543 = vld [vmem:[%s1542] ss:$2 sm:$0xff]
        %s1544 = scalar_lea.vmem %s1530, 112
        %v1545 = vld [vmem:[%s1544] ss:$2 sm:$0xff]
        %s1546 = scalar_lea.vmem %s1530, 128
        %v1547 = vld [vmem:[%s1546] ss:$2 sm:$0xff]
        %s1548 = scalar_lea.vmem %s2, 28
        %v1549 = vld [vmem:[%s1548] sm:$0xf]
        %v1551 = vsel %vm252, %v1531, 0
        %v1554 = vsel %vm252, %v1533, 0
        %v1557 = vsel %vm252, %v1535, 0
        %v1560 = vsel %vm252, %v1537, 0
        %v1563 = vsel %vm252, %v1539, 0
        %v1566 = vsel %vm252, %v1541, 0
        %v1569 = vsel %vm252, %v1543, 0
        %v1572 = vsel %vm252, %v1545, 0
        %v1575 = vsel %vm252, %v1547, 0
        %v1578 = vsel %vm280, %v1549, 0
        %1580 = vmatprep.subr.mxu0 0.0
        %1581 = vmatpush1.msra.mxu0 %v1578
        %1582 = vmatprep.subr.mxu0 0.0
        %1583 = vmatpush1.msra.mxu0 0.0
        %1584 = vmatprep.subr.mxu0 0.0
        %1585 = vmatpush1.msra.mxu0 0.0
        %1586 = vmatprep.subr.mxu0 0.0
        %1587 = vmatpush1.msra.mxu0 0.0
        %1588 = vmatprep.subr.mxu0 0.0
        %1589 = vmatpush1.msra.mxu0 0.0
        %1590 = vmatprep.subr.mxu0 0.0
        %1591 = vmatpush1.msra.mxu0 0.0
        %1592 = vmatprep.subr.mxu0 0.0
        %1593 = vmatpush1.msra.mxu0 0.0
        %1594 = vmatprep.subr.mxu0 0.0
        %1595 = vmatpush1.msra.mxu0 0.0
        %1596 = vmatprep.subr.mxu0 0.0
        %1597 = vmatpush1.msra.mxu0 0.0
        %1598 = vmatprep.subr.mxu0 0.0
        %1599 = vmatpush1.msra.mxu0 0.0
        %1600 = vmatprep.subr.mxu0 0.0
        %1601 = vmatpush1.msra.mxu0 0.0
        %1602 = vmatprep.subr.mxu0 0.0
        %1603 = vmatpush1.msra.mxu0 0.0
        %1604 = vmatprep.subr.mxu0 0.0
        %1605 = vmatpush1.msra.mxu0 0.0
        %1606 = vmatprep.subr.mxu0 0.0
        %1607 = vmatpush1.msra.mxu0 0.0
        %1608 = vmatprep.subr.mxu0 0.0
        %1609 = vmatpush1.msra.mxu0 0.0
        %1610 = vmatprep.subr.mxu0 0.0
        %1611 = vmatpush1.msra.mxu0 0.0
        %1612 = vmatprep.subr.mxu0 0.0
        %1613 = vmatpush1.msra.mxu0 0.0
        %1614 = vmatprep.subr.mxu0 0.0
        %1615 = vmatpush1.msra.mxu0 0.0
        %1616 = vmatprep.subr.mxu0 0.0
        %1617 = vmatpush1.msra.mxu0 0.0
        %1618 = vmatprep.subr.mxu0 0.0
        %1619 = vmatpush1.msra.mxu0 0.0
        %1620 = vmatprep.subr.mxu0 0.0
        %1621 = vmatpush1.msra.mxu0 0.0
        %1622 = vmatprep.subr.mxu0 0.0
        %1623 = vmatpush1.msra.mxu0 0.0
        %1624 = vmatprep.subr.mxu0 0.0
        %1625 = vmatpush1.msra.mxu0 0.0
        %1626 = vmatprep.subr.mxu0 0.0
        %1627 = vmatpush1.msra.mxu0 0.0
        %1628 = vmatprep.subr.mxu0 0.0
        %1629 = vmatpush1.msra.mxu0 0.0
        %1630 = vmatprep.subr.mxu0 0.0
        %1631 = vmatpush1.msra.mxu0 0.0
        %1632 = vmatprep.subr.mxu0 0.0
        %1633 = vmatpush1.msra.mxu0 0.0
        %1634 = vmatprep.subr.mxu0 0.0
        %1635 = vmatpush1.msra.mxu0 0.0
        %1636 = vmatprep.subr.mxu0 0.0
        %1637 = vmatpush1.msra.mxu0 0.0
        %1638 = vmatprep.subr.mxu0 0.0
        %1639 = vmatpush1.msra.mxu0 0.0
        %1640 = vmatprep.subr.mxu0 0.0
        %1641 = vmatpush1.msra.mxu0 0.0
        %1642 = vmatprep.subr.mxu0 0.0
        %1643 = vmatpush1.msra.mxu0 0.0
        %1644 = vmatprep.mubr.f32.mxu0 0.0
        %1645 = vmatmul.mubr.f32.gmra.mrb[0].mxu0 %v1551
        %v1646 = vpop.f32.mrb[0].mxu0
        %v1647 = vadd.f32 0.0, %v1646
        %v1648 = vpop.f32.mrb[0].mxu0
        %1649 = vmatprep.mubr.f32.mxu0 0.0
        %1650 = vmatmul.mubr.f32.gmra.mrb[0].mxu0 %v1554
        %v1651 = vpop.f32.mrb[0].mxu0
        %v1652 = vadd.f32 0.0, %v1651
        %v1653 = vpop.f32.mrb[0].mxu0
        %1654 = vmatprep.mubr.f32.mxu0 0.0
        %1655 = vmatmul.mubr.f32.gmra.mrb[0].mxu0 %v1557
        %v1656 = vpop.f32.mrb[0].mxu0
        %v1657 = vadd.f32 0.0, %v1656
        %v1658 = vpop.f32.mrb[0].mxu0
        %1659 = vmatprep.mubr.f32.mxu0 0.0
        %1660 = vmatmul.mubr.f32.gmra.mrb[0].mxu0 %v1560
        %v1661 = vpop.f32.mrb[0].mxu0
        %v1662 = vadd.f32 0.0, %v1661
        %v1663 = vpop.f32.mrb[0].mxu0
        %1664 = vmatprep.mubr.f32.mxu0 0.0
        %1665 = vmatmul.mubr.f32.gmra.mrb[0].mxu0 %v1563
        %v1666 = vpop.f32.mrb[0].mxu0
        %v1667 = vadd.f32 0.0, %v1666
        %v1668 = vpop.f32.mrb[0].mxu0
        %1669 = vmatprep.mubr.f32.mxu0 0.0
        %1670 = vmatmul.mubr.f32.gmra.mrb[0].mxu0 %v1566
        %v1671 = vpop.f32.mrb[0].mxu0
        %v1672 = vadd.f32 0.0, %v1671
        %v1673 = vpop.f32.mrb[0].mxu0
        %1674 = vmatprep.mubr.f32.mxu0 0.0
        %1675 = vmatmul.mubr.f32.gmra.mrb[0].mxu0 %v1569
        %v1676 = vpop.f32.mrb[0].mxu0
        %v1677 = vadd.f32 0.0, %v1676
        %v1678 = vpop.f32.mrb[0].mxu0
        %1679 = vmatprep.mubr.f32.mxu0 0.0
        %1680 = vmatmul.mubr.f32.gmra.mrb[0].mxu0 %v1572
        %v1681 = vpop.f32.mrb[0].mxu0
        %v1682 = vadd.f32 0.0, %v1681
        %v1683 = vpop.f32.mrb[0].mxu0
        %1684 = vmatprep.mubr.f32.mxu0 0.0
        %1685 = vmatmul.mubr.f32.gmra.mrb[0].mxu0 %v1575
        %v1686 = vpop.f32.mrb[0].mxu0
        %v1687 = vadd.f32 0.0, %v1686
        %v1688 = vpop.f32.mrb[0].mxu0
        %1689 = vdwg.mxu0
        %v1690 = vld [vmem:[#allocation2] sm:$0xff]
        %v1691 = vld [vmem:[#allocation2 + $0x8] sm:$0xff]
        %v1692 = vld [vmem:[#allocation2 + $0x10] sm:$0xff]
        %v1693 = vld [vmem:[#allocation2 + $0x18] sm:$0xff]
        %v1694 = vld [vmem:[#allocation2 + $0x20] sm:$0xff]
        %v1695 = vld [vmem:[#allocation2 + $0x28] sm:$0xff]
        %v1696 = vld [vmem:[#allocation2 + $0x30] sm:$0xff]
        %v1697 = vld [vmem:[#allocation2 + $0x38] sm:$0xff]
        %v1698 = vld [vmem:[#allocation2 + $0x40] sm:$0xff]
        %v1699 = vadd.f32 %v1690, %v1647
        %v1700 = vadd.f32 %v1691, %v1652
        %v1701 = vadd.f32 %v1692, %v1657
        %v1702 = vadd.f32 %v1693, %v1662
        %v1703 = vadd.f32 %v1694, %v1667
        %v1704 = vadd.f32 %v1695, %v1672
        %v1705 = vadd.f32 %v1696, %v1677
        %v1706 = vadd.f32 %v1697, %v1682
        %v1707 = vadd.f32 %v1698, %v1687
        %1708 = vst [vmem:[#allocation2] sm:$0xff] %v1699
        %1709 = vst [vmem:[#allocation2 + $0x8] sm:$0xff] %v1700
        %1710 = vst [vmem:[#allocation2 + $0x10] sm:$0xff] %v1701
        %1711 = vst [vmem:[#allocation2 + $0x18] sm:$0xff] %v1702
        %1712 = vst [vmem:[#allocation2 + $0x20] sm:$0xff] %v1703
        %1713 = vst [vmem:[#allocation2 + $0x28] sm:$0xff] %v1704
        %1714 = vst [vmem:[#allocation2 + $0x30] sm:$0xff] %v1705
        %1715 = vst [vmem:[#allocation2 + $0x38] sm:$0xff] %v1706
        %1716 = vst [vmem:[#allocation2 + $0x40] sm:$0xff] %v1707
        %s1717 = sadd.s32 %s1341, 2
        %s1718 = scalar_lea.vmem %s224, %s1717
        %v1719 = vld [vmem:[%s1718] ss:$2 sm:$0xff]
        %s1720 = scalar_lea.vmem %s1718, 16
        %v1721 = vld [vmem:[%s1720] ss:$2 sm:$0xff]
        %s1722 = scalar_lea.vmem %s1718, 32
        %v1723 = vld [vmem:[%s1722] ss:$2 sm:$0xff]
        %s1724 = scalar_lea.vmem %s1718, 48
        %v1725 = vld [vmem:[%s1724] ss:$2 sm:$0xff]
        %s1726 = scalar_lea.vmem %s1718, 64
        %v1727 = vld [vmem:[%s1726] ss:$2 sm:$0xff]
        %s1728 = scalar_lea.vmem %s1718, 80
        %v1729 = vld [vmem:[%s1728] ss:$2 sm:$0xff]
        %s1730 = scalar_lea.vmem %s1718, 96
        %v1731 = vld [vmem:[%s1730] ss:$2 sm:$0xff]
        %s1732 = scalar_lea.vmem %s1718, 112
        %v1733 = vld [vmem:[%s1732] ss:$2 sm:$0xff]
        %s1734 = scalar_lea.vmem %s1718, 128
        %v1735 = vld [vmem:[%s1734] ss:$2 sm:$0xff]
        %s1736 = scalar_lea.vmem %s2, 32
        %v1737 = vld [vmem:[%s1736] sm:$0xf]
        %v1739 = vsel %vm252, %v1719, 0
        %v1742 = vsel %vm252, %v1721, 0
        %v1745 = vsel %vm252, %v1723, 0
        %v1748 = vsel %vm252, %v1725, 0
        %v1751 = vsel %vm252, %v1727, 0
        %v1754 = vsel %vm252, %v1729, 0
        %v1757 = vsel %vm252, %v1731, 0
        %v1760 = vsel %vm252, %v1733, 0
        %v1763 = vsel %vm252, %v1735, 0
        %v1766 = vsel %vm280, %v1737, 0
        %1768 = vmatprep.subr.mxu0 0.0
        %1769 = vmatpush1.msra.mxu0 %v1766
        %1770 = vmatprep.subr.mxu0 0.0
        %1771 = vmatpush1.msra.mxu0 0.0
        %1772 = vmatprep.subr.mxu0 0.0
        %1773 = vmatpush1.msra.mxu0 0.0
        %1774 = vmatprep.subr.mxu0 0.0
        %1775 = vmatpush1.msra.mxu0 0.0
        %1776 = vmatprep.subr.mxu0 0.0
        %1777 = vmatpush1.msra.mxu0 0.0
        %1778 = vmatprep.subr.mxu0 0.0
        %1779 = vmatpush1.msra.mxu0 0.0
        %1780 = vmatprep.subr.mxu0 0.0
        %1781 = vmatpush1.msra.mxu0 0.0
        %1782 = vmatprep.subr.mxu0 0.0
        %1783 = vmatpush1.msra.mxu0 0.0
        %1784 = vmatprep.subr.mxu0 0.0
        %1785 = vmatpush1.msra.mxu0 0.0
        %1786 = vmatprep.subr.mxu0 0.0
        %1787 = vmatpush1.msra.mxu0 0.0
        %1788 = vmatprep.subr.mxu0 0.0
        %1789 = vmatpush1.msra.mxu0 0.0
        %1790 = vmatprep.subr.mxu0 0.0
        %1791 = vmatpush1.msra.mxu0 0.0
        %1792 = vmatprep.subr.mxu0 0.0
        %1793 = vmatpush1.msra.mxu0 0.0
        %1794 = vmatprep.subr.mxu0 0.0
        %1795 = vmatpush1.msra.mxu0 0.0
        %1796 = vmatprep.subr.mxu0 0.0
        %1797 = vmatpush1.msra.mxu0 0.0
        %1798 = vmatprep.subr.mxu0 0.0
        %1799 = vmatpush1.msra.mxu0 0.0
        %1800 = vmatprep.subr.mxu0 0.0
        %1801 = vmatpush1.msra.mxu0 0.0
        %1802 = vmatprep.subr.mxu0 0.0
        %1803 = vmatpush1.msra.mxu0 0.0
        %1804 = vmatprep.subr.mxu0 0.0
        %1805 = vmatpush1.msra.mxu0 0.0
        %1806 = vmatprep.subr.mxu0 0.0
        %1807 = vmatpush1.msra.mxu0 0.0
        %1808 = vmatprep.subr.mxu0 0.0
        %1809 = vmatpush1.msra.mxu0 0.0
        %1810 = vmatprep.subr.mxu0 0.0
        %1811 = vmatpush1.msra.mxu0 0.0
        %1812 = vmatprep.subr.mxu0 0.0
        %1813 = vmatpush1.msra.mxu0 0.0
        %1814 = vmatprep.subr.mxu0 0.0
        %1815 = vmatpush1.msra.mxu0 0.0
        %1816 = vmatprep.subr.mxu0 0.0
        %1817 = vmatpush1.msra.mxu0 0.0
        %1818 = vmatprep.subr.mxu0 0.0
        %1819 = vmatpush1.msra.mxu0 0.0
        %1820 = vmatprep.subr.mxu0 0.0
        %1821 = vmatpush1.msra.mxu0 0.0
        %1822 = vmatprep.subr.mxu0 0.0
        %1823 = vmatpush1.msra.mxu0 0.0
        %1824 = vmatprep.subr.mxu0 0.0
        %1825 = vmatpush1.msra.mxu0 0.0
        %1826 = vmatprep.subr.mxu0 0.0
        %1827 = vmatpush1.msra.mxu0 0.0
        %1828 = vmatprep.subr.mxu0 0.0
        %1829 = vmatpush1.msra.mxu0 0.0
        %1830 = vmatprep.subr.mxu0 0.0
        %1831 = vmatpush1.msra.mxu0 0.0
        %1832 = vmatprep.mubr.f32.mxu0 0.0
        %1833 = vmatmul.mubr.f32.gmra.mrb[0].mxu0 %v1739
        %v1834 = vpop.f32.mrb[0].mxu0
        %v1835 = vadd.f32 0.0, %v1834
        %v1836 = vpop.f32.mrb[0].mxu0
        %1837 = vmatprep.mubr.f32.mxu0 0.0
        %1838 = vmatmul.mubr.f32.gmra.mrb[0].mxu0 %v1742
        %v1839 = vpop.f32.mrb[0].mxu0
        %v1840 = vadd.f32 0.0, %v1839
        %v1841 = vpop.f32.mrb[0].mxu0
        %1842 = vmatprep.mubr.f32.mxu0 0.0
        %1843 = vmatmul.mubr.f32.gmra.mrb[0].mxu0 %v1745
        %v1844 = vpop.f32.mrb[0].mxu0
        %v1845 = vadd.f32 0.0, %v1844
        %v1846 = vpop.f32.mrb[0].mxu0
        %1847 = vmatprep.mubr.f32.mxu0 0.0
        %1848 = vmatmul.mubr.f32.gmra.mrb[0].mxu0 %v1748
        %v1849 = vpop.f32.mrb[0].mxu0
        %v1850 = vadd.f32 0.0, %v1849
        %v1851 = vpop.f32.mrb[0].mxu0
        %1852 = vmatprep.mubr.f32.mxu0 0.0
        %1853 = vmatmul.mubr.f32.gmra.mrb[0].mxu0 %v1751
        %v1854 = vpop.f32.mrb[0].mxu0
        %v1855 = vadd.f32 0.0, %v1854
        %v1856 = vpop.f32.mrb[0].mxu0
        %1857 = vmatprep.mubr.f32.mxu0 0.0
        %1858 = vmatmul.mubr.f32.gmra.mrb[0].mxu0 %v1754
        %v1859 = vpop.f32.mrb[0].mxu0
        %v1860 = vadd.f32 0.0, %v1859
        %v1861 = vpop.f32.mrb[0].mxu0
        %1862 = vmatprep.mubr.f32.mxu0 0.0
        %1863 = vmatmul.mubr.f32.gmra.mrb[0].mxu0 %v1757
        %v1864 = vpop.f32.mrb[0].mxu0
        %v1865 = vadd.f32 0.0, %v1864
        %v1866 = vpop.f32.mrb[0].mxu0
        %1867 = vmatprep.mubr.f32.mxu0 0.0
        %1868 = vmatmul.mubr.f32.gmra.mrb[0].mxu0 %v1760
        %v1869 = vpop.f32.mrb[0].mxu0
        %v1870 = vadd.f32 0.0, %v1869
        %v1871 = vpop.f32.mrb[0].mxu0
        %1872 = vmatprep.mubr.f32.mxu0 0.0
        %1873 = vmatmul.mubr.f32.gmra.mrb[0].mxu0 %v1763
        %v1874 = vpop.f32.mrb[0].mxu0
        %v1875 = vadd.f32 0.0, %v1874
        %v1876 = vpop.f32.mrb[0].mxu0
        %1877 = vdwg.mxu0
        %v1878 = vld [vmem:[#allocation2] sm:$0xff]
        %v1879 = vld [vmem:[#allocation2 + $0x8] sm:$0xff]
        %v1880 = vld [vmem:[#allocation2 + $0x10] sm:$0xff]
        %v1881 = vld [vmem:[#allocation2 + $0x18] sm:$0xff]
        %v1882 = vld [vmem:[#allocation2 + $0x20] sm:$0xff]
        %v1883 = vld [vmem:[#allocation2 + $0x28] sm:$0xff]
        %v1884 = vld [vmem:[#allocation2 + $0x30] sm:$0xff]
        %v1885 = vld [vmem:[#allocation2 + $0x38] sm:$0xff]
        %v1886 = vld [vmem:[#allocation2 + $0x40] sm:$0xff]
        %v1887 = vadd.f32 %v1878, %v1835
        %v1888 = vadd.f32 %v1879, %v1840
        %v1889 = vadd.f32 %v1880, %v1845
        %v1890 = vadd.f32 %v1881, %v1850
        %v1891 = vadd.f32 %v1882, %v1855
        %v1892 = vadd.f32 %v1883, %v1860
        %v1893 = vadd.f32 %v1884, %v1865
        %v1894 = vadd.f32 %v1885, %v1870
        %v1895 = vadd.f32 %v1886, %v1875
        %1896 = vst [vmem:[#allocation2] sm:$0xff] %v1887
        %1897 = vst [vmem:[#allocation2 + $0x8] sm:$0xff] %v1888
        %1898 = vst [vmem:[#allocation2 + $0x10] sm:$0xff] %v1889
        %1899 = vst [vmem:[#allocation2 + $0x18] sm:$0xff] %v1890
        %1900 = vst [vmem:[#allocation2 + $0x20] sm:$0xff] %v1891
        %1901 = vst [vmem:[#allocation2 + $0x28] sm:$0xff] %v1892
        %1902 = vst [vmem:[#allocation2 + $0x30] sm:$0xff] %v1893
        %1903 = vst [vmem:[#allocation2 + $0x38] sm:$0xff] %v1894
        %1904 = vst [vmem:[#allocation2 + $0x40] sm:$0xff] %v1895
        %v1905 = vld [vmem:[#allocation2] sm:$0xff]
        %v1906 = vld [vmem:[#allocation2 + $0x8] sm:$0xff]
        %v1907 = vld [vmem:[#allocation2 + $0x10] sm:$0xff]
        %v1908 = vld [vmem:[#allocation2 + $0x18] sm:$0xff]
        %v1909 = vld [vmem:[#allocation2 + $0x20] sm:$0xff]
        %v1910 = vld [vmem:[#allocation2 + $0x28] sm:$0xff]
        %v1911 = vld [vmem:[#allocation2 + $0x30] sm:$0xff]
        %v1912 = vld [vmem:[#allocation2 + $0x38] sm:$0xff]
        %v1913 = vld [vmem:[#allocation2 + $0x40] sm:$0xff]
        %v1914 = vld [vmem:[%s3] sm:$0x1]
        %v1916 = vlaneseq
        %v1917 = vshrl.u32 %v1916, 7
        %v1918 = vsub.s32 0, %v1917
        %v1919 = vrot.slane %v1914, %v1918
        %v1921 = vadd.f32 %v1905, %v1919
        %v1922 = vadd.f32 %v1906, %v1919
        %v1923 = vadd.f32 %v1907, %v1919
        %v1924 = vadd.f32 %v1908, %v1919
        %v1925 = vadd.f32 %v1909, %v1919
        %v1926 = vadd.f32 %v1910, %v1919
        %v1927 = vadd.f32 %v1911, %v1919
        %v1928 = vadd.f32 %v1912, %v1919
        %v1929 = vadd.f32 %v1913, %v1919
        %1930 = vst [vmem:[%s219] sm:$0xff] %v1921
        %1931 = vst [vmem:[%s219 + $0x8] sm:$0xff] %v1922
        %1932 = vst [vmem:[%s219 + $0x10] sm:$0xff] %v1923
        %1933 = vst [vmem:[%s219 + $0x18] sm:$0xff] %v1924
        %1934 = vst [vmem:[%s219 + $0x20] sm:$0xff] %v1925
        %1935 = vst [vmem:[%s219 + $0x28] sm:$0xff] %v1926
        %1936 = vst [vmem:[%s219 + $0x30] sm:$0xff] %v1927
        %1937 = vst [vmem:[%s219 + $0x38] sm:$0xff] %v1928
        %1938 = vst [vmem:[%s219 + $0x40] sm:$0xff] %v1929
        %s1939 = sand.u32 %s134, 1
        %s1940 = scalar_lea.sflag [#allocation4], %s1939
        %s1941 = sand.u32 %s134, 1
        %s1942 = smul.addr %s1941, 72
        %s1943 = scalar_lea.vmem [#allocation3], %s1942
        // Predicated region
        $region37: #{tpu_custom_call.1} parent=35 // pred_check
          %p1944 = pneg %p144
        $region38: #{tpu_custom_call.1} parent=35 // pred_check_branch
          %1946 = sbr.rel (%p1944) target = $region40
        $region39: #{tpu_custom_call.1} parent=35 // pred_region
          %s1947 = smul.u32 9, %s23
          %s1949 = ssub.s32 1152, 1152
          %1950 = vsyncadd %s1940, %s1949
          %s1951 = smul.addr %s22, 9
          %s1952 = sadd.s32 %s1947, %s1951
          %s1953 = smul.addr %s1952, 128
          %s1954 = scalar_lea.hbm %s4, %s1953
          %s1955 = sshll.u32 %s1943, 4
          %s1956 = int_to_ptr.vmem [resolvable:$true] %s1955
          %1961 = dma.vmem_to_hbm [thread:$0]  %s1956, 1152, %s1954, %s1940, 128, 128, 8
        $region40: #{tpu_custom_call.1} parent=35 // pred_fallthru
          _
      $region36: #{tpu_custom_call.1} parent=5 // pred_fallthru
        _
      %p1962 = scmp.le.s32.totalorder 2, %s13
      // Predicated region
      $region41: #{tpu_custom_call.1} parent=5 // pred_check
        %p1963 = pneg %p1962
      $region42: #{tpu_custom_call.1} parent=5 // pred_check_branch
        %1965 = sbr.rel (%p1963) target = $region44
      $region43: #{tpu_custom_call.1} parent=5 // pred_region
        %s1966 = ssub.s32 %s13, 2
        // Predicated region
        $region45: #{tpu_custom_call.1} parent=43 // pred_check
          %p1967 = pneg %p150
        $region46: #{tpu_custom_call.1} parent=43 // pred_check_branch
          %1969 = sbr.rel (%p1967) target = $region48
        $region47: #{tpu_custom_call.1} parent=43 // pred_region
          %s1970 = sand.u32 %s135, 1
          %s1971 = scalar_lea.sflag [#allocation4], %s1970
          %s1972 = sand.u32 %s135, 1
          %s1973 = smul.addr %s1972, 72
          %s1974 = scalar_lea.vmem [#allocation3], %s1973
          %1975 = dma.done %s1971, 1152
        $region48: #{tpu_custom_call.1} parent=43 // pred_fallthru
          _
      $region44: #{tpu_custom_call.1} parent=5 // pred_fallthru
        _
    $region6: #{tpu_custom_call.1} parent=1 // loop_footer
      %s17 = sadd.s32 1, %s13
    $region7: #{tpu_custom_call.1} parent=1 // loop_footer_branch
      %12 = sbr.rel target = $region3
    $region8: #{tpu_custom_call.1} parent=1 // loop_exit
      _
    %1976 = vsyncpa [#allocation4], 1
    %s1977 = scalar_lea.sflag [#allocation4], 1
    %1978 = vsyncpa %s1977, 1

// kernel: tpu_custom_call.1
$region0: #{tpu_custom_call.1}
  #allocation0 [shape = 'u32[]', space=smem, size = 0x4, offset = 0x4, fixed_abs, tag = 'smem constant byte address 0x4 - core index']
  #allocation1 [shape = 'u32[144,128]{1,0:T(1,128)}', space=vmem, size = 0x12000, scoped, tag = 'internal scratch']
  #allocation2 [shape = 'f32[72,128]{1,0:T(8,128)}', space=vmem, size = 0x9000, scoped, tag = 'scratch operand']
  %s0 = inlined_call_operand.vmem [shape: f32[2,180,4], index: 0, kind: input, shape index: {}]
  %s1 = inlined_call_operand.vmem [shape: f32[2,180,4], index: 1, kind: input, shape index: {}]
  %s2 = inlined_call_operand.vmem [shape: f32[9,4,128], index: 2, kind: input, shape index: {}]
  %s3 = inlined_call_operand.vmem [shape: f32[1,128], index: 3, kind: input, shape index: {}]
  %s4 = inlined_call_operand.hbm [shape: f32[2,72,128], index: 4, kind: output, shape index: {}]
  %s5 = sld [smem:[#allocation0]]
  $region49: #{tpu_custom_call.1} parent=0
    _
  %s7 = ssub.s32 1, %s5
  %s8 = scalar_select 0, %s7, %s5
  $region1: #{tpu_custom_call.1} parent=0
    #allocation3 [shape = 'u8[73728]{0}', space=vmem, size = 0x12000, scoped, tag = 'output window, operand 0']
    #allocation4 [shape = 's32[2]{0}', space=sflag, size = 0x8, scoped, tag = 'scoped memory for tpu_custom_call.1']
    %9 = vsyncpa [#allocation4], 0
    %s10 = scalar_lea.sflag [#allocation4], 1
    %11 = vsyncpa %s10, 0
    loop: start=0, step=1, limit=4
    $region2: #{tpu_custom_call.1} parent=1 // loop_pre_header
      _
    $region3: #{tpu_custom_call.1} parent=1 // loop_header
      %s13 = sphi 0, %s17
      %p14 = scmp.ge.s32.totalorder %s13, 4
      %s20 = sphi 0, %s32
      %s21 = sphi 0, %s28
      %s22 = sphi 0, %s20
      %s23 = sphi 0, %s21
      %s24 = sphi 0, %s22
      %s25 = sphi 0, %s23
      %s35 = sphi 0, %s37
      %s38 = sphi 0, %s35
      %s39 = sphi 0, %s38
      %s55 = sphi 0, %s39
      %s61 = sphi 0, %s63
      %s64 = sphi 0, %s61
      %s65 = sphi 0, %s64
      %s81 = sphi 0, %s65
      %s85 = sphi 0, %s85
      %s87 = sphi 0, %s85
      %s88 = sphi 0, %s87
      %s102 = sphi 0, %s88
      %s106 = sphi 0, %s106
      %s108 = sphi 0, %s106
      %s109 = sphi 0, %s108
      %s123 = sphi 0, %s109
      %s131 = sphi 0, %s133
      %s134 = sphi 0, %s131
      %s135 = sphi 0, %s134
      %s151 = sphi 0, %s135
    $region4: #{tpu_custom_call.1} parent=1 // loop_header_branch
      %16 = sbr.rel (%p14) target = $region8
    $region5: #{tpu_custom_call.1} parent=1 // loop_body
      %s18 = ssub.s32 %s13, 1
      %s19 = ssub.s32 %s13, 2
      %s26 = sadd.s32 1, %s21
      %p27 = scmp.ge.s32.totalorder %s26, 1
      %s28 = scalar_select %p27, 0, %s26
      %s29 = sadd.s32 1, %s20
      %s30 = scalar_select %p27, %s29, %s20
      %p31 = scmp.ge.s32.totalorder %s30, 2
      %s32 = scalar_select %p31, 0, %s30
      %s33 = ssub.s32 %s20, %s32
      %p34 = scmp.eq.s32.totalorder %s33, 0
      %s36 = sadd.s32 %s35, 1
      %s37 = scalar_select %p34, %s35, %s36
      %p40 = pneg %p34
      %p41 = scmp.eq.s32.totalorder %s13, 1
      %p42 = por %p40, %p41
      %p43 = scmp.ne.s32.totalorder %s35, %s38
      %p44 = scmp.eq.s32.totalorder %s13, 0
      %p45 = por %p43, %p44
      %p46 = scmp.ne.s32.totalorder %s35, %s38
      %p47 = scmp.eq.s32.totalorder %s18, 1
      %p48 = por %p46, %p47
      %p49 = scmp.ne.s32.totalorder %s38, %s39
      %p50 = scmp.eq.s32.totalorder %s18, 0
      %p51 = por %p49, %p50
      %p52 = scmp.ne.s32.totalorder %s38, %s39
      %p53 = scmp.eq.s32.totalorder %s19, 1
      %p54 = por %p52, %p53
      %p56 = scmp.ne.s32.totalorder %s39, %s55
      %p57 = scmp.eq.s32.totalorder %s19, 0
      %p58 = por %p56, %p57
      %s59 = ssub.s32 %s20, %s32
      %p60 = scmp.eq.s32.totalorder %s59, 0
      %s62 = sadd.s32 %s61, 1
      %s63 = scalar_select %p60, %s61, %s62
      %p66 = pneg %p60
      %p67 = scmp.eq.s32.totalorder %s13, 1
      %p68 = por %p66, %p67
      %p69 = scmp.ne.s32.totalorder %s61, %s64
      %p70 = scmp.eq.s32.totalorder %s13, 0
      %p71 = por %p69, %p70
      %p72 = scmp.ne.s32.totalorder %s61, %s64
      %p73 = scmp.eq.s32.totalorder %s18, 1
      %p74 = por %p72, %p73
      %p75 = scmp.ne.s32.totalorder %s64, %s65
      %p76 = scmp.eq.s32.totalorder %s18, 0
      %p77 = por %p75, %p76
      %p78 = scmp.ne.s32.totalorder %s64, %s65
      %p79 = scmp.eq.s32.totalorder %s19, 1
      %p80 = por %p78, %p79
      %p82 = scmp.ne.s32.totalorder %s65, %s81
      %p83 = scmp.eq.s32.totalorder %s19, 0
      %p84 = por %p82, %p83
      %s86 = sadd.s32 %s85, 1
      %p89 = scmp.eq.s32.totalorder %s13, 1
      %p90 = scmp.ne.s32.totalorder %s85, %s87
      %p91 = scmp.eq.s32.totalorder %s13, 0
      %p92 = por %p90, %p91
      %p93 = scmp.ne.s32.totalorder %s85, %s87
      %p94 = scmp.eq.s32.totalorder %s18, 1
      %p95 = por %p93, %p94
      %p96 = scmp.ne.s32.totalorder %s87, %s88
      %p97 = scmp.eq.s32.totalorder %s18, 0
      %p98 = por %p96, %p97
      %p99 = scmp.ne.s32.totalorder %s87, %s88
      %p100 = scmp.eq.s32.totalorder %s19, 1
      %p101 = por %p99, %p100
      %p103 = scmp.ne.s32.totalorder %s88, %s102
      %p104 = scmp.eq.s32.totalorder %s19, 0
      %p105 = por %p103, %p104
      %s107 = sadd.s32 %s106, 1
      %p110 = scmp.eq.s32.totalorder %s13, 1
      %p111 = scmp.ne.s32.totalorder %s106, %s108
      %p112 = scmp.eq.s32.totalorder %s13, 0
      %p113 = por %p111, %p112
      %p114 = scmp.ne.s32.totalorder %s106, %s108
      %p115 = scmp.eq.s32.totalorder %s18, 1
      %p116 = por %p114, %p115
      %p117 = scmp.ne.s32.totalorder %s108, %s109
      %p118 = scmp.eq.s32.totalorder %s18, 0
      %p119 = por %p117, %p118
      %p120 = scmp.ne.s32.totalorder %s108, %s109
      %p121 = scmp.eq.s32.totalorder %s19, 1
      %p122 = por %p120, %p121
      %p124 = scmp.ne.s32.totalorder %s109, %s123
      %p125 = scmp.eq.s32.totalorder %s19, 0
      %p126 = por %p124, %p125
      %s127 = ssub.s32 %s20, %s32
      %s128 = ssub.s32 %s21, %s28
      %s129 = sor.u32 %s127, %s128
      %p130 = scmp.eq.s32.totalorder %s129, 0
      %s132 = sadd.s32 %s131, 1
      %s133 = scalar_select %p130, %s131, %s132
      %p136 = pneg %p130
      %p137 = scmp.eq.s32.totalorder %s13, 1
      %p138 = por %p136, %p137
      %p139 = scmp.ne.s32.totalorder %s131, %s134
      %p140 = scmp.eq.s32.totalorder %s13, 0
      %p141 = por %p139, %p140
      %p142 = scmp.ne.s32.totalorder %s131, %s134
      %p143 = scmp.eq.s32.totalorder %s18, 1
      %p144 = por %p142, %p143
      %p145 = scmp.ne.s32.totalorder %s134, %s135
      %p146 = scmp.eq.s32.totalorder %s18, 0
      %p147 = por %p145, %p146
      %p148 = scmp.ne.s32.totalorder %s134, %s135
      %p149 = scmp.eq.s32.totalorder %s19, 1
      %p150 = por %p148, %p149
      %p152 = scmp.ne.s32.totalorder %s135, %s151
      %p153 = scmp.eq.s32.totalorder %s19, 0
      %p154 = por %p152, %p153
      %p155 = scmp.le.s32.totalorder 1, %s13
      %p156 = scmp.lt.s32.totalorder %s13, 3
      %p157 = pnand %p155, %p156
      %p158 = pneg %p157
      // Predicated region
      $region9: #{tpu_custom_call.1} parent=5 // pred_check
        _
      $region10: #{tpu_custom_call.1} parent=5 // pred_check_branch
        %160 = sbr.rel (%p157) target = $region12
      $region11: #{tpu_custom_call.1} parent=5 // pred_region
        %s161 = ssub.s32 %s13, 1
        // Predicated region
        $region13: #{tpu_custom_call.1} parent=11 // pred_check
          %p162 = pneg %p98
        $region14: #{tpu_custom_call.1} parent=11 // pred_check_branch
          %164 = sbr.rel (%p162) target = $region16
        $region15: #{tpu_custom_call.1} parent=11 // pred_region
          _
        $region16: #{tpu_custom_call.1} parent=11 // pred_fallthru
          _
        // Predicated region
        $region17: #{tpu_custom_call.1} parent=11 // pred_check
          %p165 = pneg %p119
        $region18: #{tpu_custom_call.1} parent=11 // pred_check_branch
          %167 = sbr.rel (%p165) target = $region20
        $region19: #{tpu_custom_call.1} parent=11 // pred_region
          _
        $region20: #{tpu_custom_call.1} parent=11 // pred_fallthru
          _
      $region12: #{tpu_custom_call.1} parent=5 // pred_fallthru
        _
      %p168 = scmp.lt.s32.totalorder %s13, 2
      // Predicated region
      $region21: #{tpu_custom_call.1} parent=5 // pred_check
        %p169 = pneg %p168
      $region22: #{tpu_custom_call.1} parent=5 // pred_check_branch
        %171 = sbr.rel (%p169) target = $region24
      $region23: #{tpu_custom_call.1} parent=5 // pred_region
        // Predicated region
        $region25: #{tpu_custom_call.1} parent=23 // pred_check
          %p172 = pneg %p45
        $region26: #{tpu_custom_call.1} parent=23 // pred_check_branch
          %174 = sbr.rel (%p172) target = $region28
        $region27: #{tpu_custom_call.1} parent=23 // pred_region
          %p175 = scmp.lt.s32.totalorder %s20, 1
          %s176 = scalar_select %p175, %s20, 1
          %s177 = smul.addr %s176, 23
          %s178 = smul.addr %s177, 8
          %s179 = scalar_lea.vmem %s0, %s178
        $region28: #{tpu_custom_call.1} parent=23 // pred_fallthru
          _
        // Predicated region
        $region29: #{tpu_custom_call.1} parent=23 // pred_check
          %p180 = pneg %p71
        $region30: #{tpu_custom_call.1} parent=23 // pred_check_branch
          %182 = sbr.rel (%p180) target = $region32
        $region31: #{tpu_custom_call.1} parent=23 // pred_region
          %p183 = scmp.lt.s32.totalorder %s20, 1
          %s184 = scalar_select %p183, %s20, 1
          %s185 = smul.addr %s184, 23
          %s186 = smul.addr %s185, 8
          %s187 = scalar_lea.vmem %s1, %s186
        $region32: #{tpu_custom_call.1} parent=23 // pred_fallthru
          _
      $region24: #{tpu_custom_call.1} parent=5 // pred_fallthru
        _
      %p188 = scmp.le.s32.totalorder 1, %s13
      %p189 = scmp.lt.s32.totalorder %s13, 3
      %p190 = pnand %p188, %p189
      %p191 = pneg %p190
      // Predicated region
      $region33: #{tpu_custom_call.1} parent=5 // pred_check
        _
      $region34: #{tpu_custom_call.1} parent=5 // pred_check_branch
        %193 = sbr.rel (%p190) target = $region36
      $region35: #{tpu_custom_call.1} parent=5 // pred_region
        %s194 = ssub.s32 %s13, 1
        %p195 = scmp.lt.s32.totalorder %s22, 1
        %s196 = scalar_select %p195, %s22, 1
        %s197 = smul.addr %s196, 23
        %s198 = smul.addr %s197, 8
        %s199 = scalar_lea.vmem %s0, %s198
        %p200 = pneg %p51
        %p201 = pneg %p48
        %p202 = scmp.lt.s32.totalorder %s22, 1
        %s203 = scalar_select %p202, %s22, 1
        %s204 = smul.addr %s203, 23
        %s205 = smul.addr %s204, 8
        %s206 = scalar_lea.vmem %s1, %s205
        %p207 = pneg %p77
        %p208 = pneg %p74
        %p209 = pneg %p98
        %p210 = pneg %p95
        %p211 = pneg %p119
        %p212 = pneg %p116
        %p213 = pneg %p147
        %p214 = pneg %p144
        %s215 = sand.u32 %s134, 1
        %s216 = scalar_lea.sflag [#allocation4], %s215
        %s217 = sand.u32 %s134, 1
        %s218 = smul.addr %s217, 72
        %s219 = scalar_lea.vmem [#allocation3], %s218
        %p220 = scmp.lt.s32.totalorder %s22, 1
        %s221 = scalar_select %p220, %s22, 1
        %s222 = smul.addr %s221, 23
        %s223 = smul.addr %s222, 8
        %s224 = scalar_lea.vmem %s0, %s223
        %p225 = scmp.lt.s32.totalorder %s22, 1
        %s226 = scalar_select %p225, %s22, 1
        %s227 = smul.addr %s226, 23
        %s228 = smul.addr %s227, 8
        %s229 = scalar_lea.vmem %s1, %s228
        %s230 = smul.u32 9, %s23
        %s231 = smul.u32 %s23, 8
        %s232 = smul.u32 %s23, 144
        %s233 = scalar_lea.vmem %s224, %s232
        %v234 = vld [vmem:[%s233] ss:$2 sm:$0xff]
        %s235 = scalar_lea.vmem %s233, 16
        %v236 = vld [vmem:[%s235] ss:$2 sm:$0xff]
        %s237 = scalar_lea.vmem %s233, 32
        %v238 = vld [vmem:[%s237] ss:$2 sm:$0xff]
        %s239 = scalar_lea.vmem %s233, 48
        %v240 = vld [vmem:[%s239] ss:$2 sm:$0xff]
        %s241 = scalar_lea.vmem %s233, 64
        %v242 = vld [vmem:[%s241] ss:$2 sm:$0xff]
        %s243 = scalar_lea.vmem %s233, 80
        %v244 = vld [vmem:[%s243] ss:$2 sm:$0xff]
        %s245 = scalar_lea.vmem %s233, 96
        %v246 = vld [vmem:[%s245] ss:$2 sm:$0xff]
        %s247 = scalar_lea.vmem %s233, 112
        %v248 = vld [vmem:[%s247] ss:$2 sm:$0xff]
        %s249 = scalar_lea.vmem %s233, 128
        %v250 = vld [vmem:[%s249] ss:$2 sm:$0xff]
        %v251 = vld [vmem:[%s2] sm:$0xf]
        %vm252 = vcmask 31744
        %v254 = vsel %vm252, %v234, 0
        %v257 = vsel %vm252, %v236, 0
        %v260 = vsel %vm252, %v238, 0
        %v263 = vsel %vm252, %v240, 0
        %v266 = vsel %vm252, %v242, 0
        %v269 = vsel %vm252, %v244, 0
        %v272 = vsel %vm252, %v246, 0
        %v275 = vsel %vm252, %v248, 0
        %v278 = vsel %vm252, %v250, 0
        %vm280 = vcmask 1043456
        %v282 = vsel %vm280, %v251, 0
        %284 = vmatprep.subr.mxu0 0.0
        %285 = vmatpush1.msra.mxu0 %v282
        %286 = vmatprep.subr.mxu0 0.0
        %287 = vmatpush1.msra.mxu0 0.0
        %288 = vmatprep.subr.mxu0 0.0
        %289 = vmatpush1.msra.mxu0 0.0
        %290 = vmatprep.subr.mxu0 0.0
        %291 = vmatpush1.msra.mxu0 0.0
        %292 = vmatprep.subr.mxu0 0.0
        %293 = vmatpush1.msra.mxu0 0.0
        %294 = vmatprep.subr.mxu0 0.0
        %295 = vmatpush1.msra.mxu0 0.0
        %296 = vmatprep.subr.mxu0 0.0
        %297 = vmatpush1.msra.mxu0 0.0
        %298 = vmatprep.subr.mxu0 0.0
        %299 = vmatpush1.msra.mxu0 0.0
        %300 = vmatprep.subr.mxu0 0.0
        %301 = vmatpush1.msra.mxu0 0.0
        %302 = vmatprep.subr.mxu0 0.0
        %303 = vmatpush1.msra.mxu0 0.0
        %304 = vmatprep.subr.mxu0 0.0
        %305 = vmatpush1.msra.mxu0 0.0
        %306 = vmatprep.subr.mxu0 0.0
        %307 = vmatpush1.msra.mxu0 0.0
        %308 = vmatprep.subr.mxu0 0.0
        %309 = vmatpush1.msra.mxu0 0.0
        %310 = vmatprep.subr.mxu0 0.0
        %311 = vmatpush1.msra.mxu0 0.0
        %312 = vmatprep.subr.mxu0 0.0
        %313 = vmatpush1.msra.mxu0 0.0
        %314 = vmatprep.subr.mxu0 0.0
        %315 = vmatpush1.msra.mxu0 0.0
        %316 = vmatprep.subr.mxu0 0.0
        %317 = vmatpush1.msra.mxu0 0.0
        %318 = vmatprep.subr.mxu0 0.0
        %319 = vmatpush1.msra.mxu0 0.0
        %320 = vmatprep.subr.mxu0 0.0
        %321 = vmatpush1.msra.mxu0 0.0
        %322 = vmatprep.subr.mxu0 0.0
        %323 = vmatpush1.msra.mxu0 0.0
        %324 = vmatprep.subr.mxu0 0.0
        %325 = vmatpush1.msra.mxu0 0.0
        %326 = vmatprep.subr.mxu0 0.0
        %327 = vmatpush1.msra.mxu0 0.0
        %328 = vmatprep.subr.mxu0 0.0
        %329 = vmatpush1.msra.mxu0 0.0
        %330 = vmatprep.subr.mxu0 0.0
        %331 = vmatpush1.msra.mxu0 0.0
        %332 = vmatprep.subr.mxu0 0.0
        %333 = vmatpush1.msra.mxu0 0.0
        %334 = vmatprep.subr.mxu0 0.0
        %335 = vmatpush1.msra.mxu0 0.0
        %336 = vmatprep.subr.mxu0 0.0
        %337 = vmatpush1.msra.mxu0 0.0
        %338 = vmatprep.subr.mxu0 0.0
        %339 = vmatpush1.msra.mxu0 0.0
        %340 = vmatprep.subr.mxu0 0.0
        %341 = vmatpush1.msra.mxu0 0.0
        %342 = vmatprep.subr.mxu0 0.0
        %343 = vmatpush1.msra.mxu0 0.0
        %344 = vmatprep.subr.mxu0 0.0
        %345 = vmatpush1.msra.mxu0 0.0
        %346 = vmatprep.subr.mxu0 0.0
        %347 = vmatpush1.msra.mxu0 0.0
        %348 = vmatprep.mubr.f32.mxu0 0.0
        %349 = vmatmul.mubr.f32.gmra.mrb[0].mxu0 %v254
        %v350 = vpop.f32.mrb[0].mxu0
        %v351 = vadd.f32 0.0, %v350
        %v352 = vpop.f32.mrb[0].mxu0
        %353 = vmatprep.mubr.f32.mxu0 0.0
        %354 = vmatmul.mubr.f32.gmra.mrb[0].mxu0 %v257
        %v355 = vpop.f32.mrb[0].mxu0
        %v356 = vadd.f32 0.0, %v355
        %v357 = vpop.f32.mrb[0].mxu0
        %358 = vmatprep.mubr.f32.mxu0 0.0
        %359 = vmatmul.mubr.f32.gmra.mrb[0].mxu0 %v260
        %v360 = vpop.f32.mrb[0].mxu0
        %v361 = vadd.f32 0.0, %v360
        %v362 = vpop.f32.mrb[0].mxu0
        %363 = vmatprep.mubr.f32.mxu0 0.0
        %364 = vmatmul.mubr.f32.gmra.mrb[0].mxu0 %v263
        %v365 = vpop.f32.mrb[0].mxu0
        %v366 = vadd.f32 0.0, %v365
        %v367 = vpop.f32.mrb[0].mxu0
        %368 = vmatprep.mubr.f32.mxu0 0.0
        %369 = vmatmul.mubr.f32.gmra.mrb[0].mxu0 %v266
        %v370 = vpop.f32.mrb[0].mxu0
        %v371 = vadd.f32 0.0, %v370
        %v372 = vpop.f32.mrb[0].mxu0
        %373 = vmatprep.mubr.f32.mxu0 0.0
        %374 = vmatmul.mubr.f32.gmra.mrb[0].mxu0 %v269
        %v375 = vpop.f32.mrb[0].mxu0
        %v376 = vadd.f32 0.0, %v375
        %v377 = vpop.f32.mrb[0].mxu0
        %378 = vmatprep.mubr.f32.mxu0 0.0
        %379 = vmatmul.mubr.f32.gmra.mrb[0].mxu0 %v272
        %v380 = vpop.f32.mrb[0].mxu0
        %v381 = vadd.f32 0.0, %v380
        %v382 = vpop.f32.mrb[0].mxu0
        %383 = vmatprep.mubr.f32.mxu0 0.0
        %384 = vmatmul.mubr.f32.gmra.mrb[0].mxu0 %v275
        %v385 = vpop.f32.mrb[0].mxu0
        %v386 = vadd.f32 0.0, %v385
        %v387 = vpop.f32.mrb[0].mxu0
        %388 = vmatprep.mubr.f32.mxu0 0.0
        %389 = vmatmul.mubr.f32.gmra.mrb[0].mxu0 %v278
        %v390 = vpop.f32.mrb[0].mxu0
        %v391 = vadd.f32 0.0, %v390
        %v392 = vpop.f32.mrb[0].mxu0
        %393 = vdwg.mxu0
        %394 = vst [vmem:[#allocation2] sm:$0xff] %v351
        %395 = vst [vmem:[#allocation2 + $0x8] sm:$0xff] %v356
        %396 = vst [vmem:[#allocation2 + $0x10] sm:$0xff] %v361
        %397 = vst [vmem:[#allocation2 + $0x18] sm:$0xff] %v366
        %398 = vst [vmem:[#allocation2 + $0x20] sm:$0xff] %v371
        %399 = vst [vmem:[#allocation2 + $0x28] sm:$0xff] %v376
        %400 = vst [vmem:[#allocation2 + $0x30] sm:$0xff] %v381
        %401 = vst [vmem:[#allocation2 + $0x38] sm:$0xff] %v386
        %402 = vst [vmem:[#allocation2 + $0x40] sm:$0xff] %v391
        %s403 = sadd.s32 %s232, 1
        %s404 = scalar_lea.vmem %s224, %s403
        %v405 = vld [vmem:[%s404] ss:$2 sm:$0xff]
        %s406 = scalar_lea.vmem %s404, 16
        %v407 = vld [vmem:[%s406] ss:$2 sm:$0xff]
        %s408 = scalar_lea.vmem %s404, 32
        %v409 = vld [vmem:[%s408] ss:$2 sm:$0xff]
        %s410 = scalar_lea.vmem %s404, 48
        %v411 = vld [vmem:[%s410] ss:$2 sm:$0xff]
        %s412 = scalar_lea.vmem %s404, 64
        %v413 = vld [vmem:[%s412] ss:$2 sm:$0xff]
        %s414 = scalar_lea.vmem %s404, 80
        %v415 = vld [vmem:[%s414] ss:$2 sm:$0xff]
        %s416 = scalar_lea.vmem %s404, 96
        %v417 = vld [vmem:[%s416] ss:$2 sm:$0xff]
        %s418 = scalar_lea.vmem %s404, 112
        %v419 = vld [vmem:[%s418] ss:$2 sm:$0xff]
        %s420 = scalar_lea.vmem %s404, 128
        %v421 = vld [vmem:[%s420] ss:$2 sm:$0xff]
        %s422 = scalar_lea.vmem %s2, 4
        %v423 = vld [vmem:[%s422] sm:$0xf]
        %v425 = vsel %vm252, %v405, 0
        %v428 = vsel %vm252, %v407, 0
        %v431 = vsel %vm252, %v409, 0
        %v434 = vsel %vm252, %v411, 0
        %v437 = vsel %vm252, %v413, 0
        %v440 = vsel %vm252, %v415, 0
        %v443 = vsel %vm252, %v417, 0
        %v446 = vsel %vm252, %v419, 0
        %v449 = vsel %vm252, %v421, 0
        %v452 = vsel %vm280, %v423, 0
        %454 = vmatprep.subr.mxu0 0.0
        %455 = vmatpush1.msra.mxu0 %v452
        %456 = vmatprep.subr.mxu0 0.0
        %457 = vmatpush1.msra.mxu0 0.0
        %458 = vmatprep.subr.mxu0 0.0
        %459 = vmatpush1.msra.mxu0 0.0
        %460 = vmatprep.subr.mxu0 0.0
        %461 = vmatpush1.msra.mxu0 0.0
        %462 = vmatprep.subr.mxu0 0.0
        %463 = vmatpush1.msra.mxu0 0.0
        %464 = vmatprep.subr.mxu0 0.0
        %465 = vmatpush1.msra.mxu0 0.0
        %466 = vmatprep.subr.mxu0 0.0
        %467 = vmatpush1.msra.mxu0 0.0
        %468 = vmatprep.subr.mxu0 0.0
        %469 = vmatpush1.msra.mxu0 0.0
        %470 = vmatprep.subr.mxu0 0.0
        %471 = vmatpush1.msra.mxu0 0.0
        %472 = vmatprep.subr.mxu0 0.0
        %473 = vmatpush1.msra.mxu0 0.0
        %474 = vmatprep.subr.mxu0 0.0
        %475 = vmatpush1.msra.mxu0 0.0
        %476 = vmatprep.subr.mxu0 0.0
        %477 = vmatpush1.msra.mxu0 0.0
        %478 = vmatprep.subr.mxu0 0.0
        %479 = vmatpush1.msra.mxu0 0.0
        %480 = vmatprep.subr.mxu0 0.0
        %481 = vmatpush1.msra.mxu0 0.0
        %482 = vmatprep.subr.mxu0 0.0
        %483 = vmatpush1.msra.mxu0 0.0
        %484 = vmatprep.subr.mxu0 0.0
        %485 = vmatpush1.msra.mxu0 0.0
        %486 = vmatprep.subr.mxu0 0.0
        %487 = vmatpush1.msra.mxu0 0.0
        %488 = vmatprep.subr.mxu0 0.0
        %489 = vmatpush1.msra.mxu0 0.0
        %490 = vmatprep.subr.mxu0 0.0
        %491 = vmatpush1.msra.mxu0 0.0
        %492 = vmatprep.subr.mxu0 0.0
        %493 = vmatpush1.msra.mxu0 0.0
        %494 = vmatprep.subr.mxu0 0.0
        %495 = vmatpush1.msra.mxu0 0.0
        %496 = vmatprep.subr.mxu0 0.0
        %497 = vmatpush1.msra.mxu0 0.0
        %498 = vmatprep.subr.mxu0 0.0
        %499 = vmatpush1.msra.mxu0 0.0
        %500 = vmatprep.subr.mxu0 0.0
        %501 = vmatpush1.msra.mxu0 0.0
        %502 = vmatprep.subr.mxu0 0.0
        %503 = vmatpush1.msra.mxu0 0.0
        %504 = vmatprep.subr.mxu0 0.0
        %505 = vmatpush1.msra.mxu0 0.0
        %506 = vmatprep.subr.mxu0 0.0
        %507 = vmatpush1.msra.mxu0 0.0
        %508 = vmatprep.subr.mxu0 0.0
        %509 = vmatpush1.msra.mxu0 0.0
        %510 = vmatprep.subr.mxu0 0.0
        %511 = vmatpush1.msra.mxu0 0.0
        %512 = vmatprep.subr.mxu0 0.0
        %513 = vmatpush1.msra.mxu0 0.0
        %514 = vmatprep.subr.mxu0 0.0
        %515 = vmatpush1.msra.mxu0 0.0
        %516 = vmatprep.subr.mxu0 0.0
        %517 = vmatpush1.msra.mxu0 0.0
        %518 = vmatprep.mubr.f32.mxu0 0.0
        %519 = vmatmul.mubr.f32.gmra.mrb[0].mxu0 %v425
        %v520 = vpop.f32.mrb[0].mxu0
        %v521 = vadd.f32 0.0, %v520
        %v522 = vpop.f32.mrb[0].mxu0
        %523 = vmatprep.mubr.f32.mxu0 0.0
        %524 = vmatmul.mubr.f32.gmra.mrb[0].mxu0 %v428
        %v525 = vpop.f32.mrb[0].mxu0
        %v526 = vadd.f32 0.0, %v525
        %v527 = vpop.f32.mrb[0].mxu0
        %528 = vmatprep.mubr.f32.mxu0 0.0
        %529 = vmatmul.mubr.f32.gmra.mrb[0].mxu0 %v431
        %v530 = vpop.f32.mrb[0].mxu0
        %v531 = vadd.f32 0.0, %v530
        %v532 = vpop.f32.mrb[0].mxu0
        %533 = vmatprep.mubr.f32.mxu0 0.0
        %534 = vmatmul.mubr.f32.gmra.mrb[0].mxu0 %v434
        %v535 = vpop.f32.mrb[0].mxu0
        %v536 = vadd.f32 0.0, %v535
        %v537 = vpop.f32.mrb[0].mxu0
        %538 = vmatprep.mubr.f32.mxu0 0.0
        %539 = vmatmul.mubr.f32.gmra.mrb[0].mxu0 %v437
        %v540 = vpop.f32.mrb[0].mxu0
        %v541 = vadd.f32 0.0, %v540
        %v542 = vpop.f32.mrb[0].mxu0
        %543 = vmatprep.mubr.f32.mxu0 0.0
        %544 = vmatmul.mubr.f32.gmra.mrb[0].mxu0 %v440
        %v545 = vpop.f32.mrb[0].mxu0
        %v546 = vadd.f32 0.0, %v545
        %v547 = vpop.f32.mrb[0].mxu0
        %548 = vmatprep.mubr.f32.mxu0 0.0
        %549 = vmatmul.mubr.f32.gmra.mrb[0].mxu0 %v443
        %v550 = vpop.f32.mrb[0].mxu0
        %v551 = vadd.f32 0.0, %v550
        %v552 = vpop.f32.mrb[0].mxu0
        %553 = vmatprep.mubr.f32.mxu0 0.0
        %554 = vmatmul.mubr.f32.gmra.mrb[0].mxu0 %v446
        %v555 = vpop.f32.mrb[0].mxu0
        %v556 = vadd.f32 0.0, %v555
        %v557 = vpop.f32.mrb[0].mxu0
        %558 = vmatprep.mubr.f32.mxu0 0.0
        %559 = vmatmul.mubr.f32.gmra.mrb[0].mxu0 %v449
        %v560 = vpop.f32.mrb[0].mxu0
        %v561 = vadd.f32 0.0, %v560
        %v562 = vpop.f32.mrb[0].mxu0
        %563 = vdwg.mxu0
        %v564 = vld [vmem:[#allocation2] sm:$0xff]
        %v565 = vld [vmem:[#allocation2 + $0x8] sm:$0xff]
        %v566 = vld [vmem:[#allocation2 + $0x10] sm:$0xff]
        %v567 = vld [vmem:[#allocation2 + $0x18] sm:$0xff]
        %v568 = vld [vmem:[#allocation2 + $0x20] sm:$0xff]
        %v569 = vld [vmem:[#allocation2 + $0x28] sm:$0xff]
        %v570 = vld [vmem:[#allocation2 + $0x30] sm:$0xff]
        %v571 = vld [vmem:[#allocation2 + $0x38] sm:$0xff]
        %v572 = vld [vmem:[#allocation2 + $0x40] sm:$0xff]
        %v573 = vadd.f32 %v564, %v521
        %v574 = vadd.f32 %v565, %v526
        %v575 = vadd.f32 %v566, %v531
        %v576 = vadd.f32 %v567, %v536
        %v577 = vadd.f32 %v568, %v541
        %v578 = vadd.f32 %v569, %v546
        %v579 = vadd.f32 %v570, %v551
        %v580 = vadd.f32 %v571, %v556
        %v581 = vadd.f32 %v572, %v561
        %582 = vst [vmem:[#allocation2] sm:$0xff] %v573
        %583 = vst [vmem:[#allocation2 + $0x8] sm:$0xff] %v574
        %584 = vst [vmem:[#allocation2 + $0x10] sm:$0xff] %v575
        %585 = vst [vmem:[#allocation2 + $0x18] sm:$0xff] %v576
        %586 = vst [vmem:[#allocation2 + $0x20] sm:$0xff] %v577
        %587 = vst [vmem:[#allocation2 + $0x28] sm:$0xff] %v578
        %588 = vst [vmem:[#allocation2 + $0x30] sm:$0xff] %v579
        %589 = vst [vmem:[#allocation2 + $0x38] sm:$0xff] %v580
        %590 = vst [vmem:[#allocation2 + $0x40] sm:$0xff] %v581
        %s591 = sadd.s32 %s232, 2
        %s592 = scalar_lea.vmem %s224, %s591
        %v593 = vld [vmem:[%s592] ss:$2 sm:$0xff]
        %s594 = scalar_lea.vmem %s592, 16
        %v595 = vld [vmem:[%s594] ss:$2 sm:$0xff]
        %s596 = scalar_lea.vmem %s592, 32
        %v597 = vld [vmem:[%s596] ss:$2 sm:$0xff]
        %s598 = scalar_lea.vmem %s592, 48
        %v599 = vld [vmem:[%s598] ss:$2 sm:$0xff]
        %s600 = scalar_lea.vmem %s592, 64
        %v601 = vld [vmem:[%s600] ss:$2 sm:$0xff]
        %s602 = scalar_lea.vmem %s592, 80
        %v603 = vld [vmem:[%s602] ss:$2 sm:$0xff]
        %s604 = scalar_lea.vmem %s592, 96
        %v605 = vld [vmem:[%s604] ss:$2 sm:$0xff]
        %s606 = scalar_lea.vmem %s592, 112
        %v607 = vld [vmem:[%s606] ss:$2 sm:$0xff]
        %s608 = scalar_lea.vmem %s592, 128
        %v609 = vld [vmem:[%s608] ss:$2 sm:$0xff]
        %s610 = scalar_lea.vmem %s2, 8
        %v611 = vld [vmem:[%s610] sm:$0xf]
        %v613 = vsel %vm252, %v593, 0
        %v616 = vsel %vm252, %v595, 0
        %v619 = vsel %vm252, %v597, 0
        %v622 = vsel %vm252, %v599, 0
        %v625 = vsel %vm252, %v601, 0
        %v628 = vsel %vm252, %v603, 0
        %v631 = vsel %vm252, %v605, 0
        %v634 = vsel %vm252, %v607, 0
        %v637 = vsel %vm252, %v609, 0
        %v640 = vsel %vm280, %v611, 0
        %642 = vmatprep.subr.mxu0 0.0
        %643 = vmatpush1.msra.mxu0 %v640
        %644 = vmatprep.subr.mxu0 0.0
        %645 = vmatpush1.msra.mxu0 0.0
        %646 = vmatprep.subr.mxu0 0.0
        %647 = vmatpush1.msra.mxu0 0.0
        %648 = vmatprep.subr.mxu0 0.0
        %649 = vmatpush1.msra.mxu0 0.0
        %650 = vmatprep.subr.mxu0 0.0
        %651 = vmatpush1.msra.mxu0 0.0
        %652 = vmatprep.subr.mxu0 0.0
        %653 = vmatpush1.msra.mxu0 0.0
        %654 = vmatprep.subr.mxu0 0.0
        %655 = vmatpush1.msra.mxu0 0.0
        %656 = vmatprep.subr.mxu0 0.0
        %657 = vmatpush1.msra.mxu0 0.0
        %658 = vmatprep.subr.mxu0 0.0
        %659 = vmatpush1.msra.mxu0 0.0
        %660 = vmatprep.subr.mxu0 0.0
        %661 = vmatpush1.msra.mxu0 0.0
        %662 = vmatprep.subr.mxu0 0.0
        %663 = vmatpush1.msra.mxu0 0.0
        %664 = vmatprep.subr.mxu0 0.0
        %665 = vmatpush1.msra.mxu0 0.0
        %666 = vmatprep.subr.mxu0 0.0
        %667 = vmatpush1.msra.mxu0 0.0
        %668 = vmatprep.subr.mxu0 0.0
        %669 = vmatpush1.msra.mxu0 0.0
        %670 = vmatprep.subr.mxu0 0.0
        %671 = vmatpush1.msra.mxu0 0.0
        %672 = vmatprep.subr.mxu0 0.0
        %673 = vmatpush1.msra.mxu0 0.0
        %674 = vmatprep.subr.mxu0 0.0
        %675 = vmatpush1.msra.mxu0 0.0
        %676 = vmatprep.subr.mxu0 0.0
        %677 = vmatpush1.msra.mxu0 0.0
        %678 = vmatprep.subr.mxu0 0.0
        %679 = vmatpush1.msra.mxu0 0.0
        %680 = vmatprep.subr.mxu0 0.0
        %681 = vmatpush1.msra.mxu0 0.0
        %682 = vmatprep.subr.mxu0 0.0
        %683 = vmatpush1.msra.mxu0 0.0
        %684 = vmatprep.subr.mxu0 0.0
        %685 = vmatpush1.msra.mxu0 0.0
        %686 = vmatprep.subr.mxu0 0.0
        %687 = vmatpush1.msra.mxu0 0.0
        %688 = vmatprep.subr.mxu0 0.0
        %689 = vmatpush1.msra.mxu0 0.0
        %690 = vmatprep.subr.mxu0 0.0
        %691 = vmatpush1.msra.mxu0 0.0
        %692 = vmatprep.subr.mxu0 0.0
        %693 = vmatpush1.msra.mxu0 0.0
        %694 = vmatprep.subr.mxu0 0.0
        %695 = vmatpush1.msra.mxu0 0.0
        %696 = vmatprep.subr.mxu0 0.0
        %697 = vmatpush1.msra.mxu0 0.0
        %698 = vmatprep.subr.mxu0 0.0
        %699 = vmatpush1.msra.mxu0 0.0
        %700 = vmatprep.subr.mxu0 0.0
        %701 = vmatpush1.msra.mxu0 0.0
        %702 = vmatprep.subr.mxu0 0.0
        %703 = vmatpush1.msra.mxu0 0.0
        %704 = vmatprep.subr.mxu0 0.0
        %705 = vmatpush1.msra.mxu0 0.0
        %706 = vmatprep.mubr.f32.mxu0 0.0
        %707 = vmatmul.mubr.f32.gmra.mrb[0].mxu0 %v613
        %v708 = vpop.f32.mrb[0].mxu0
        %v709 = vadd.f32 0.0, %v708
        %v710 = vpop.f32.mrb[0].mxu0
        %711 = vmatprep.mubr.f32.mxu0 0.0
        %712 = vmatmul.mubr.f32.gmra.mrb[0].mxu0 %v616
        %v713 = vpop.f32.mrb[0].mxu0
        %v714 = vadd.f32 0.0, %v713
        %v715 = vpop.f32.mrb[0].mxu0
        %716 = vmatprep.mubr.f32.mxu0 0.0
        %717 = vmatmul.mubr.f32.gmra.mrb[0].mxu0 %v619
        %v718 = vpop.f32.mrb[0].mxu0
        %v719 = vadd.f32 0.0, %v718
        %v720 = vpop.f32.mrb[0].mxu0
        %721 = vmatprep.mubr.f32.mxu0 0.0
        %722 = vmatmul.mubr.f32.gmra.mrb[0].mxu0 %v622
        %v723 = vpop.f32.mrb[0].mxu0
        %v724 = vadd.f32 0.0, %v723
        %v725 = vpop.f32.mrb[0].mxu0
        %726 = vmatprep.mubr.f32.mxu0 0.0
        %727 = vmatmul.mubr.f32.gmra.mrb[0].mxu0 %v625
        %v728 = vpop.f32.mrb[0].mxu0
        %v729 = vadd.f32 0.0, %v728
        %v730 = vpop.f32.mrb[0].mxu0
        %731 = vmatprep.mubr.f32.mxu0 0.0
        %732 = vmatmul.mubr.f32.gmra.mrb[0].mxu0 %v628
        %v733 = vpop.f32.mrb[0].mxu0
        %v734 = vadd.f32 0.0, %v733
        %v735 = vpop.f32.mrb[0].mxu0
        %736 = vmatprep.mubr.f32.mxu0 0.0
        %737 = vmatmul.mubr.f32.gmra.mrb[0].mxu0 %v631
        %v738 = vpop.f32.mrb[0].mxu0
        %v739 = vadd.f32 0.0, %v738
        %v740 = vpop.f32.mrb[0].mxu0
        %741 = vmatprep.mubr.f32.mxu0 0.0
        %742 = vmatmul.mubr.f32.gmra.mrb[0].mxu0 %v634
        %v743 = vpop.f32.mrb[0].mxu0
        %v744 = vadd.f32 0.0, %v743
        %v745 = vpop.f32.mrb[0].mxu0
        %746 = vmatprep.mubr.f32.mxu0 0.0
        %747 = vmatmul.mubr.f32.gmra.mrb[0].mxu0 %v637
        %v748 = vpop.f32.mrb[0].mxu0
        %v749 = vadd.f32 0.0, %v748
        %v750 = vpop.f32.mrb[0].mxu0
        %751 = vdwg.mxu0
        %v752 = vld [vmem:[#allocation2] sm:$0xff]
        %v753 = vld [vmem:[#allocation2 + $0x8] sm:$0xff]
        %v754 = vld [vmem:[#allocation2 + $0x10] sm:$0xff]
        %v755 = vld [vmem:[#allocation2 + $0x18] sm:$0xff]
        %v756 = vld [vmem:[#allocation2 + $0x20] sm:$0xff]
        %v757 = vld [vmem:[#allocation2 + $0x28] sm:$0xff]
        %v758 = vld [vmem:[#allocation2 + $0x30] sm:$0xff]
        %v759 = vld [vmem:[#allocation2 + $0x38] sm:$0xff]
        %v760 = vld [vmem:[#allocation2 + $0x40] sm:$0xff]
        %v761 = vadd.f32 %v752, %v709
        %v762 = vadd.f32 %v753, %v714
        %v763 = vadd.f32 %v754, %v719
        %v764 = vadd.f32 %v755, %v724
        %v765 = vadd.f32 %v756, %v729
        %v766 = vadd.f32 %v757, %v734
        %v767 = vadd.f32 %v758, %v739
        %v768 = vadd.f32 %v759, %v744
        %v769 = vadd.f32 %v760, %v749
        %770 = vst [vmem:[#allocation2] sm:$0xff] %v761
        %771 = vst [vmem:[#allocation2 + $0x8] sm:$0xff] %v762
        %772 = vst [vmem:[#allocation2 + $0x10] sm:$0xff] %v763
        %773 = vst [vmem:[#allocation2 + $0x18] sm:$0xff] %v764
        %774 = vst [vmem:[#allocation2 + $0x20] sm:$0xff] %v765
        %775 = vst [vmem:[#allocation2 + $0x28] sm:$0xff] %v766
        %776 = vst [vmem:[#allocation2 + $0x30] sm:$0xff] %v767
        %777 = vst [vmem:[#allocation2 + $0x38] sm:$0xff] %v768
        %778 = vst [vmem:[#allocation2 + $0x40] sm:$0xff] %v769
        %s779 = scalar_lea.vmem %s229, %s232
        %v780 = vld [vmem:[%s779] ss:$2 sm:$0xff]
        %s781 = scalar_lea.vmem %s779, 16
        %v782 = vld [vmem:[%s781] ss:$2 sm:$0xff]
        %s783 = scalar_lea.vmem %s779, 32
        %v784 = vld [vmem:[%s783] ss:$2 sm:$0xff]
        %s785 = scalar_lea.vmem %s779, 48
        %v786 = vld [vmem:[%s785] ss:$2 sm:$0xff]
        %s787 = scalar_lea.vmem %s779, 64
        %v788 = vld [vmem:[%s787] ss:$2 sm:$0xff]
        %s789 = scalar_lea.vmem %s779, 80
        %v790 = vld [vmem:[%s789] ss:$2 sm:$0xff]
        %s791 = scalar_lea.vmem %s779, 96
        %v792 = vld [vmem:[%s791] ss:$2 sm:$0xff]
        %s793 = scalar_lea.vmem %s779, 112
        %v794 = vld [vmem:[%s793] ss:$2 sm:$0xff]
        %s795 = scalar_lea.vmem %s779, 128
        %v796 = vld [vmem:[%s795] ss:$2 sm:$0xff]
        %s797 = scalar_lea.vmem %s2, 12
        %v798 = vld [vmem:[%s797] sm:$0xf]
        %v800 = vsel %vm252, %v780, 0
        %v803 = vsel %vm252, %v782, 0
        %v806 = vsel %vm252, %v784, 0
        %v809 = vsel %vm252, %v786, 0
        %v812 = vsel %vm252, %v788, 0
        %v815 = vsel %vm252, %v790, 0
        %v818 = vsel %vm252, %v792, 0
        %v821 = vsel %vm252, %v794, 0
        %v824 = vsel %vm252, %v796, 0
        %v827 = vsel %vm280, %v798, 0
        %829 = vmatprep.subr.mxu0 0.0
        %830 = vmatpush1.msra.mxu0 %v827
        %831 = vmatprep.subr.mxu0 0.0
        %832 = vmatpush1.msra.mxu0 0.0
        %833 = vmatprep.subr.mxu0 0.0
        %834 = vmatpush1.msra.mxu0 0.0
        %835 = vmatprep.subr.mxu0 0.0
        %836 = vmatpush1.msra.mxu0 0.0
        %837 = vmatprep.subr.mxu0 0.0
        %838 = vmatpush1.msra.mxu0 0.0
        %839 = vmatprep.subr.mxu0 0.0
        %840 = vmatpush1.msra.mxu0 0.0
        %841 = vmatprep.subr.mxu0 0.0
        %842 = vmatpush1.msra.mxu0 0.0
        %843 = vmatprep.subr.mxu0 0.0
        %844 = vmatpush1.msra.mxu0 0.0
        %845 = vmatprep.subr.mxu0 0.0
        %846 = vmatpush1.msra.mxu0 0.0
        %847 = vmatprep.subr.mxu0 0.0
        %848 = vmatpush1.msra.mxu0 0.0
        %849 = vmatprep.subr.mxu0 0.0
        %850 = vmatpush1.msra.mxu0 0.0
        %851 = vmatprep.subr.mxu0 0.0
        %852 = vmatpush1.msra.mxu0 0.0
        %853 = vmatprep.subr.mxu0 0.0
        %854 = vmatpush1.msra.mxu0 0.0
        %855 = vmatprep.subr.mxu0 0.0
        %856 = vmatpush1.msra.mxu0 0.0
        %857 = vmatprep.subr.mxu0 0.0
        %858 = vmatpush1.msra.mxu0 0.0
        %859 = vmatprep.subr.mxu0 0.0
        %860 = vmatpush1.msra.mxu0 0.0
        %861 = vmatprep.subr.mxu0 0.0
        %862 = vmatpush1.msra.mxu0 0.0
        %863 = vmatprep.subr.mxu0 0.0
        %864 = vmatpush1.msra.mxu0 0.0
        %865 = vmatprep.subr.mxu0 0.0
        %866 = vmatpush1.msra.mxu0 0.0
        %867 = vmatprep.subr.mxu0 0.0
        %868 = vmatpush1.msra.mxu0 0.0
        %869 = vmatprep.subr.mxu0 0.0
        %870 = vmatpush1.msra.mxu0 0.0
        %871 = vmatprep.subr.mxu0 0.0
        %872 = vmatpush1.msra.mxu0 0.0
        %873 = vmatprep.subr.mxu0 0.0
        %874 = vmatpush1.msra.mxu0 0.0
        %875 = vmatprep.subr.mxu0 0.0
        %876 = vmatpush1.msra.mxu0 0.0
        %877 = vmatprep.subr.mxu0 0.0
        %878 = vmatpush1.msra.mxu0 0.0
        %879 = vmatprep.subr.mxu0 0.0
        %880 = vmatpush1.msra.mxu0 0.0
        %881 = vmatprep.subr.mxu0 0.0
        %882 = vmatpush1.msra.mxu0 0.0
        %883 = vmatprep.subr.mxu0 0.0
        %884 = vmatpush1.msra.mxu0 0.0
        %885 = vmatprep.subr.mxu0 0.0
        %886 = vmatpush1.msra.mxu0 0.0
        %887 = vmatprep.subr.mxu0 0.0
        %888 = vmatpush1.msra.mxu0 0.0
        %889 = vmatprep.subr.mxu0 0.0
        %890 = vmatpush1.msra.mxu0 0.0
        %891 = vmatprep.subr.mxu0 0.0
        %892 = vmatpush1.msra.mxu0 0.0
        %893 = vmatprep.mubr.f32.mxu0 0.0
        %894 = vmatmul.mubr.f32.gmra.mrb[0].mxu0 %v800
        %v895 = vpop.f32.mrb[0].mxu0
        %v896 = vadd.f32 0.0, %v895
        %v897 = vpop.f32.mrb[0].mxu0
        %898 = vmatprep.mubr.f32.mxu0 0.0
        %899 = vmatmul.mubr.f32.gmra.mrb[0].mxu0 %v803
        %v900 = vpop.f32.mrb[0].mxu0
        %v901 = vadd.f32 0.0, %v900
        %v902 = vpop.f32.mrb[0].mxu0
        %903 = vmatprep.mubr.f32.mxu0 0.0
        %904 = vmatmul.mubr.f32.gmra.mrb[0].mxu0 %v806
        %v905 = vpop.f32.mrb[0].mxu0
        %v906 = vadd.f32 0.0, %v905
        %v907 = vpop.f32.mrb[0].mxu0
        %908 = vmatprep.mubr.f32.mxu0 0.0
        %909 = vmatmul.mubr.f32.gmra.mrb[0].mxu0 %v809
        %v910 = vpop.f32.mrb[0].mxu0
        %v911 = vadd.f32 0.0, %v910
        %v912 = vpop.f32.mrb[0].mxu0
        %913 = vmatprep.mubr.f32.mxu0 0.0
        %914 = vmatmul.mubr.f32.gmra.mrb[0].mxu0 %v812
        %v915 = vpop.f32.mrb[0].mxu0
        %v916 = vadd.f32 0.0, %v915
        %v917 = vpop.f32.mrb[0].mxu0
        %918 = vmatprep.mubr.f32.mxu0 0.0
        %919 = vmatmul.mubr.f32.gmra.mrb[0].mxu0 %v815
        %v920 = vpop.f32.mrb[0].mxu0
        %v921 = vadd.f32 0.0, %v920
        %v922 = vpop.f32.mrb[0].mxu0
        %923 = vmatprep.mubr.f32.mxu0 0.0
        %924 = vmatmul.mubr.f32.gmra.mrb[0].mxu0 %v818
        %v925 = vpop.f32.mrb[0].mxu0
        %v926 = vadd.f32 0.0, %v925
        %v927 = vpop.f32.mrb[0].mxu0
        %928 = vmatprep.mubr.f32.mxu0 0.0
        %929 = vmatmul.mubr.f32.gmra.mrb[0].mxu0 %v821
        %v930 = vpop.f32.mrb[0].mxu0
        %v931 = vadd.f32 0.0, %v930
        %v932 = vpop.f32.mrb[0].mxu0
        %933 = vmatprep.mubr.f32.mxu0 0.0
        %934 = vmatmul.mubr.f32.gmra.mrb[0].mxu0 %v824
        %v935 = vpop.f32.mrb[0].mxu0
        %v936 = vadd.f32 0.0, %v935
        %v937 = vpop.f32.mrb[0].mxu0
        %938 = vdwg.mxu0
        %v939 = vld [vmem:[#allocation2] sm:$0xff]
        %v940 = vld [vmem:[#allocation2 + $0x8] sm:$0xff]
        %v941 = vld [vmem:[#allocation2 + $0x10] sm:$0xff]
        %v942 = vld [vmem:[#allocation2 + $0x18] sm:$0xff]
        %v943 = vld [vmem:[#allocation2 + $0x20] sm:$0xff]
        %v944 = vld [vmem:[#allocation2 + $0x28] sm:$0xff]
        %v945 = vld [vmem:[#allocation2 + $0x30] sm:$0xff]
        %v946 = vld [vmem:[#allocation2 + $0x38] sm:$0xff]
        %v947 = vld [vmem:[#allocation2 + $0x40] sm:$0xff]
        %v948 = vadd.f32 %v939, %v896
        %v949 = vadd.f32 %v940, %v901
        %v950 = vadd.f32 %v941, %v906
        %v951 = vadd.f32 %v942, %v911
        %v952 = vadd.f32 %v943, %v916
        %v953 = vadd.f32 %v944, %v921
        %v954 = vadd.f32 %v945, %v926
        %v955 = vadd.f32 %v946, %v931
        %v956 = vadd.f32 %v947, %v936
        %957 = vst [vmem:[#allocation2] sm:$0xff] %v948
        %958 = vst [vmem:[#allocation2 + $0x8] sm:$0xff] %v949
        %959 = vst [vmem:[#allocation2 + $0x10] sm:$0xff] %v950
        %960 = vst [vmem:[#allocation2 + $0x18] sm:$0xff] %v951
        %961 = vst [vmem:[#allocation2 + $0x20] sm:$0xff] %v952
        %962 = vst [vmem:[#allocation2 + $0x28] sm:$0xff] %v953
        %963 = vst [vmem:[#allocation2 + $0x30] sm:$0xff] %v954
        %964 = vst [vmem:[#allocation2 + $0x38] sm:$0xff] %v955
        %965 = vst [vmem:[#allocation2 + $0x40] sm:$0xff] %v956
        %s966 = scalar_lea.vmem %s229, %s403
        %v967 = vld [vmem:[%s966] ss:$2 sm:$0xff]
        %s968 = scalar_lea.vmem %s966, 16
        %v969 = vld [vmem:[%s968] ss:$2 sm:$0xff]
        %s970 = scalar_lea.vmem %s966, 32
        %v971 = vld [vmem:[%s970] ss:$2 sm:$0xff]
        %s972 = scalar_lea.vmem %s966, 48
        %v973 = vld [vmem:[%s972] ss:$2 sm:$0xff]
        %s974 = scalar_lea.vmem %s966, 64
        %v975 = vld [vmem:[%s974] ss:$2 sm:$0xff]
        %s976 = scalar_lea.vmem %s966, 80
        %v977 = vld [vmem:[%s976] ss:$2 sm:$0xff]
        %s978 = scalar_lea.vmem %s966, 96
        %v979 = vld [vmem:[%s978] ss:$2 sm:$0xff]
        %s980 = scalar_lea.vmem %s966, 112
        %v981 = vld [vmem:[%s980] ss:$2 sm:$0xff]
        %s982 = scalar_lea.vmem %s966, 128
        %v983 = vld [vmem:[%s982] ss:$2 sm:$0xff]
        %s984 = scalar_lea.vmem %s2, 16
        %v985 = vld [vmem:[%s984] sm:$0xf]
        %v987 = vsel %vm252, %v967, 0
        %v990 = vsel %vm252, %v969, 0
        %v993 = vsel %vm252, %v971, 0
        %v996 = vsel %vm252, %v973, 0
        %v999 = vsel %vm252, %v975, 0
        %v1002 = vsel %vm252, %v977, 0
        %v1005 = vsel %vm252, %v979, 0
        %v1008 = vsel %vm252, %v981, 0
        %v1011 = vsel %vm252, %v983, 0
        %v1014 = vsel %vm280, %v985, 0
        %1016 = vmatprep.subr.mxu0 0.0
        %1017 = vmatpush1.msra.mxu0 %v1014
        %1018 = vmatprep.subr.mxu0 0.0
        %1019 = vmatpush1.msra.mxu0 0.0
        %1020 = vmatprep.subr.mxu0 0.0
        %1021 = vmatpush1.msra.mxu0 0.0
        %1022 = vmatprep.subr.mxu0 0.0
        %1023 = vmatpush1.msra.mxu0 0.0
        %1024 = vmatprep.subr.mxu0 0.0
        %1025 = vmatpush1.msra.mxu0 0.0
        %1026 = vmatprep.subr.mxu0 0.0
        %1027 = vmatpush1.msra.mxu0 0.0
        %1028 = vmatprep.subr.mxu0 0.0
        %1029 = vmatpush1.msra.mxu0 0.0
        %1030 = vmatprep.subr.mxu0 0.0
        %1031 = vmatpush1.msra.mxu0 0.0
        %1032 = vmatprep.subr.mxu0 0.0
        %1033 = vmatpush1.msra.mxu0 0.0
        %1034 = vmatprep.subr.mxu0 0.0
        %1035 = vmatpush1.msra.mxu0 0.0
        %1036 = vmatprep.subr.mxu0 0.0
        %1037 = vmatpush1.msra.mxu0 0.0
        %1038 = vmatprep.subr.mxu0 0.0
        %1039 = vmatpush1.msra.mxu0 0.0
        %1040 = vmatprep.subr.mxu0 0.0
        %1041 = vmatpush1.msra.mxu0 0.0
        %1042 = vmatprep.subr.mxu0 0.0
        %1043 = vmatpush1.msra.mxu0 0.0
        %1044 = vmatprep.subr.mxu0 0.0
        %1045 = vmatpush1.msra.mxu0 0.0
        %1046 = vmatprep.subr.mxu0 0.0
        %1047 = vmatpush1.msra.mxu0 0.0
        %1048 = vmatprep.subr.mxu0 0.0
        %1049 = vmatpush1.msra.mxu0 0.0
        %1050 = vmatprep.subr.mxu0 0.0
        %1051 = vmatpush1.msra.mxu0 0.0
        %1052 = vmatprep.subr.mxu0 0.0
        %1053 = vmatpush1.msra.mxu0 0.0
        %1054 = vmatprep.subr.mxu0 0.0
        %1055 = vmatpush1.msra.mxu0 0.0
        %1056 = vmatprep.subr.mxu0 0.0
        %1057 = vmatpush1.msra.mxu0 0.0
        %1058 = vmatprep.subr.mxu0 0.0
        %1059 = vmatpush1.msra.mxu0 0.0
        %1060 = vmatprep.subr.mxu0 0.0
        %1061 = vmatpush1.msra.mxu0 0.0
        %1062 = vmatprep.subr.mxu0 0.0
        %1063 = vmatpush1.msra.mxu0 0.0
        %1064 = vmatprep.subr.mxu0 0.0
        %1065 = vmatpush1.msra.mxu0 0.0
        %1066 = vmatprep.subr.mxu0 0.0
        %1067 = vmatpush1.msra.mxu0 0.0
        %1068 = vmatprep.subr.mxu0 0.0
        %1069 = vmatpush1.msra.mxu0 0.0
        %1070 = vmatprep.subr.mxu0 0.0
        %1071 = vmatpush1.msra.mxu0 0.0
        %1072 = vmatprep.subr.mxu0 0.0
        %1073 = vmatpush1.msra.mxu0 0.0
        %1074 = vmatprep.subr.mxu0 0.0
        %1075 = vmatpush1.msra.mxu0 0.0
        %1076 = vmatprep.subr.mxu0 0.0
        %1077 = vmatpush1.msra.mxu0 0.0
        %1078 = vmatprep.subr.mxu0 0.0
        %1079 = vmatpush1.msra.mxu0 0.0
        %1080 = vmatprep.mubr.f32.mxu0 0.0
        %1081 = vmatmul.mubr.f32.gmra.mrb[0].mxu0 %v987
        %v1082 = vpop.f32.mrb[0].mxu0
        %v1083 = vadd.f32 0.0, %v1082
        %v1084 = vpop.f32.mrb[0].mxu0
        %1085 = vmatprep.mubr.f32.mxu0 0.0
        %1086 = vmatmul.mubr.f32.gmra.mrb[0].mxu0 %v990
        %v1087 = vpop.f32.mrb[0].mxu0
        %v1088 = vadd.f32 0.0, %v1087
        %v1089 = vpop.f32.mrb[0].mxu0
        %1090 = vmatprep.mubr.f32.mxu0 0.0
        %1091 = vmatmul.mubr.f32.gmra.mrb[0].mxu0 %v993
        %v1092 = vpop.f32.mrb[0].mxu0
        %v1093 = vadd.f32 0.0, %v1092
        %v1094 = vpop.f32.mrb[0].mxu0
        %1095 = vmatprep.mubr.f32.mxu0 0.0
        %1096 = vmatmul.mubr.f32.gmra.mrb[0].mxu0 %v996
        %v1097 = vpop.f32.mrb[0].mxu0
        %v1098 = vadd.f32 0.0, %v1097
        %v1099 = vpop.f32.mrb[0].mxu0
        %1100 = vmatprep.mubr.f32.mxu0 0.0
        %1101 = vmatmul.mubr.f32.gmra.mrb[0].mxu0 %v999
        %v1102 = vpop.f32.mrb[0].mxu0
        %v1103 = vadd.f32 0.0, %v1102
        %v1104 = vpop.f32.mrb[0].mxu0
        %1105 = vmatprep.mubr.f32.mxu0 0.0
        %1106 = vmatmul.mubr.f32.gmra.mrb[0].mxu0 %v1002
        %v1107 = vpop.f32.mrb[0].mxu0
        %v1108 = vadd.f32 0.0, %v1107
        %v1109 = vpop.f32.mrb[0].mxu0
        %1110 = vmatprep.mubr.f32.mxu0 0.0
        %1111 = vmatmul.mubr.f32.gmra.mrb[0].mxu0 %v1005
        %v1112 = vpop.f32.mrb[0].mxu0
        %v1113 = vadd.f32 0.0, %v1112
        %v1114 = vpop.f32.mrb[0].mxu0
        %1115 = vmatprep.mubr.f32.mxu0 0.0
        %1116 = vmatmul.mubr.f32.gmra.mrb[0].mxu0 %v1008
        %v1117 = vpop.f32.mrb[0].mxu0
        %v1118 = vadd.f32 0.0, %v1117
        %v1119 = vpop.f32.mrb[0].mxu0
        %1120 = vmatprep.mubr.f32.mxu0 0.0
        %1121 = vmatmul.mubr.f32.gmra.mrb[0].mxu0 %v1011
        %v1122 = vpop.f32.mrb[0].mxu0
        %v1123 = vadd.f32 0.0, %v1122
        %v1124 = vpop.f32.mrb[0].mxu0
        %1125 = vdwg.mxu0
        %v1126 = vld [vmem:[#allocation2] sm:$0xff]
        %v1127 = vld [vmem:[#allocation2 + $0x8] sm:$0xff]
        %v1128 = vld [vmem:[#allocation2 + $0x10] sm:$0xff]
        %v1129 = vld [vmem:[#allocation2 + $0x18] sm:$0xff]
        %v1130 = vld [vmem:[#allocation2 + $0x20] sm:$0xff]
        %v1131 = vld [vmem:[#allocation2 + $0x28] sm:$0xff]
        %v1132 = vld [vmem:[#allocation2 + $0x30] sm:$0xff]
        %v1133 = vld [vmem:[#allocation2 + $0x38] sm:$0xff]
        %v1134 = vld [vmem:[#allocation2 + $0x40] sm:$0xff]
        %v1135 = vadd.f32 %v1126, %v1083
        %v1136 = vadd.f32 %v1127, %v1088
        %v1137 = vadd.f32 %v1128, %v1093
        %v1138 = vadd.f32 %v1129, %v1098
        %v1139 = vadd.f32 %v1130, %v1103
        %v1140 = vadd.f32 %v1131, %v1108
        %v1141 = vadd.f32 %v1132, %v1113
        %v1142 = vadd.f32 %v1133, %v1118
        %v1143 = vadd.f32 %v1134, %v1123
        %1144 = vst [vmem:[#allocation2] sm:$0xff] %v1135
        %1145 = vst [vmem:[#allocation2 + $0x8] sm:$0xff] %v1136
        %1146 = vst [vmem:[#allocation2 + $0x10] sm:$0xff] %v1137
        %1147 = vst [vmem:[#allocation2 + $0x18] sm:$0xff] %v1138
        %1148 = vst [vmem:[#allocation2 + $0x20] sm:$0xff] %v1139
        %1149 = vst [vmem:[#allocation2 + $0x28] sm:$0xff] %v1140
        %1150 = vst [vmem:[#allocation2 + $0x30] sm:$0xff] %v1141
        %1151 = vst [vmem:[#allocation2 + $0x38] sm:$0xff] %v1142
        %1152 = vst [vmem:[#allocation2 + $0x40] sm:$0xff] %v1143
        %s1153 = scalar_lea.vmem %s229, %s591
        %v1154 = vld [vmem:[%s1153] ss:$2 sm:$0xff]
        %s1155 = scalar_lea.vmem %s1153, 16
        %v1156 = vld [vmem:[%s1155] ss:$2 sm:$0xff]
        %s1157 = scalar_lea.vmem %s1153, 32
        %v1158 = vld [vmem:[%s1157] ss:$2 sm:$0xff]
        %s1159 = scalar_lea.vmem %s1153, 48
        %v1160 = vld [vmem:[%s1159] ss:$2 sm:$0xff]
        %s1161 = scalar_lea.vmem %s1153, 64
        %v1162 = vld [vmem:[%s1161] ss:$2 sm:$0xff]
        %s1163 = scalar_lea.vmem %s1153, 80
        %v1164 = vld [vmem:[%s1163] ss:$2 sm:$0xff]
        %s1165 = scalar_lea.vmem %s1153, 96
        %v1166 = vld [vmem:[%s1165] ss:$2 sm:$0xff]
        %s1167 = scalar_lea.vmem %s1153, 112
        %v1168 = vld [vmem:[%s1167] ss:$2 sm:$0xff]
        %s1169 = scalar_lea.vmem %s1153, 128
        %v1170 = vld [vmem:[%s1169] ss:$2 sm:$0xff]
        %s1171 = scalar_lea.vmem %s2, 20
        %v1172 = vld [vmem:[%s1171] sm:$0xf]
        %v1174 = vsel %vm252, %v1154, 0
        %v1177 = vsel %vm252, %v1156, 0
        %v1180 = vsel %vm252, %v1158, 0
        %v1183 = vsel %vm252, %v1160, 0
        %v1186 = vsel %vm252, %v1162, 0
        %v1189 = vsel %vm252, %v1164, 0
        %v1192 = vsel %vm252, %v1166, 0
        %v1195 = vsel %vm252, %v1168, 0
        %v1198 = vsel %vm252, %v1170, 0
        %v1201 = vsel %vm280, %v1172, 0
        %1203 = vmatprep.subr.mxu0 0.0
        %1204 = vmatpush1.msra.mxu0 %v1201
        %1205 = vmatprep.subr.mxu0 0.0
        %1206 = vmatpush1.msra.mxu0 0.0
        %1207 = vmatprep.subr.mxu0 0.0
        %1208 = vmatpush1.msra.mxu0 0.0
        %1209 = vmatprep.subr.mxu0 0.0
        %1210 = vmatpush1.msra.mxu0 0.0
        %1211 = vmatprep.subr.mxu0 0.0
        %1212 = vmatpush1.msra.mxu0 0.0
        %1213 = vmatprep.subr.mxu0 0.0
        %1214 = vmatpush1.msra.mxu0 0.0
        %1215 = vmatprep.subr.mxu0 0.0
        %1216 = vmatpush1.msra.mxu0 0.0
        %1217 = vmatprep.subr.mxu0 0.0
        %1218 = vmatpush1.msra.mxu0 0.0
        %1219 = vmatprep.subr.mxu0 0.0
        %1220 = vmatpush1.msra.mxu0 0.0
        %1221 = vmatprep.subr.mxu0 0.0
        %1222 = vmatpush1.msra.mxu0 0.0
        %1223 = vmatprep.subr.mxu0 0.0
        %1224 = vmatpush1.msra.mxu0 0.0
        %1225 = vmatprep.subr.mxu0 0.0
        %1226 = vmatpush1.msra.mxu0 0.0
        %1227 = vmatprep.subr.mxu0 0.0
        %1228 = vmatpush1.msra.mxu0 0.0
        %1229 = vmatprep.subr.mxu0 0.0
        %1230 = vmatpush1.msra.mxu0 0.0
        %1231 = vmatprep.subr.mxu0 0.0
        %1232 = vmatpush1.msra.mxu0 0.0
        %1233 = vmatprep.subr.mxu0 0.0
        %1234 = vmatpush1.msra.mxu0 0.0
        %1235 = vmatprep.subr.mxu0 0.0
        %1236 = vmatpush1.msra.mxu0 0.0
        %1237 = vmatprep.subr.mxu0 0.0
        %1238 = vmatpush1.msra.mxu0 0.0
        %1239 = vmatprep.subr.mxu0 0.0
        %1240 = vmatpush1.msra.mxu0 0.0
        %1241 = vmatprep.subr.mxu0 0.0
        %1242 = vmatpush1.msra.mxu0 0.0
        %1243 = vmatprep.subr.mxu0 0.0
        %1244 = vmatpush1.msra.mxu0 0.0
        %1245 = vmatprep.subr.mxu0 0.0
        %1246 = vmatpush1.msra.mxu0 0.0
        %1247 = vmatprep.subr.mxu0 0.0
        %1248 = vmatpush1.msra.mxu0 0.0
        %1249 = vmatprep.subr.mxu0 0.0
        %1250 = vmatpush1.msra.mxu0 0.0
        %1251 = vmatprep.subr.mxu0 0.0
        %1252 = vmatpush1.msra.mxu0 0.0
        %1253 = vmatprep.subr.mxu0 0.0
        %1254 = vmatpush1.msra.mxu0 0.0
        %1255 = vmatprep.subr.mxu0 0.0
        %1256 = vmatpush1.msra.mxu0 0.0
        %1257 = vmatprep.subr.mxu0 0.0
        %1258 = vmatpush1.msra.mxu0 0.0
        %1259 = vmatprep.subr.mxu0 0.0
        %1260 = vmatpush1.msra.mxu0 0.0
        %1261 = vmatprep.subr.mxu0 0.0
        %1262 = vmatpush1.msra.mxu0 0.0
        %1263 = vmatprep.subr.mxu0 0.0
        %1264 = vmatpush1.msra.mxu0 0.0
        %1265 = vmatprep.subr.mxu0 0.0
        %1266 = vmatpush1.msra.mxu0 0.0
        %1267 = vmatprep.mubr.f32.mxu0 0.0
        %1268 = vmatmul.mubr.f32.gmra.mrb[0].mxu0 %v1174
        %v1269 = vpop.f32.mrb[0].mxu0
        %v1270 = vadd.f32 0.0, %v1269
        %v1271 = vpop.f32.mrb[0].mxu0
        %1272 = vmatprep.mubr.f32.mxu0 0.0
        %1273 = vmatmul.mubr.f32.gmra.mrb[0].mxu0 %v1177
        %v1274 = vpop.f32.mrb[0].mxu0
        %v1275 = vadd.f32 0.0, %v1274
        %v1276 = vpop.f32.mrb[0].mxu0
        %1277 = vmatprep.mubr.f32.mxu0 0.0
        %1278 = vmatmul.mubr.f32.gmra.mrb[0].mxu0 %v1180
        %v1279 = vpop.f32.mrb[0].mxu0
        %v1280 = vadd.f32 0.0, %v1279
        %v1281 = vpop.f32.mrb[0].mxu0
        %1282 = vmatprep.mubr.f32.mxu0 0.0
        %1283 = vmatmul.mubr.f32.gmra.mrb[0].mxu0 %v1183
        %v1284 = vpop.f32.mrb[0].mxu0
        %v1285 = vadd.f32 0.0, %v1284
        %v1286 = vpop.f32.mrb[0].mxu0
        %1287 = vmatprep.mubr.f32.mxu0 0.0
        %1288 = vmatmul.mubr.f32.gmra.mrb[0].mxu0 %v1186
        %v1289 = vpop.f32.mrb[0].mxu0
        %v1290 = vadd.f32 0.0, %v1289
        %v1291 = vpop.f32.mrb[0].mxu0
        %1292 = vmatprep.mubr.f32.mxu0 0.0
        %1293 = vmatmul.mubr.f32.gmra.mrb[0].mxu0 %v1189
        %v1294 = vpop.f32.mrb[0].mxu0
        %v1295 = vadd.f32 0.0, %v1294
        %v1296 = vpop.f32.mrb[0].mxu0
        %1297 = vmatprep.mubr.f32.mxu0 0.0
        %1298 = vmatmul.mubr.f32.gmra.mrb[0].mxu0 %v1192
        %v1299 = vpop.f32.mrb[0].mxu0
        %v1300 = vadd.f32 0.0, %v1299
        %v1301 = vpop.f32.mrb[0].mxu0
        %1302 = vmatprep.mubr.f32.mxu0 0.0
        %1303 = vmatmul.mubr.f32.gmra.mrb[0].mxu0 %v1195
        %v1304 = vpop.f32.mrb[0].mxu0
        %v1305 = vadd.f32 0.0, %v1304
        %v1306 = vpop.f32.mrb[0].mxu0
        %1307 = vmatprep.mubr.f32.mxu0 0.0
        %1308 = vmatmul.mubr.f32.gmra.mrb[0].mxu0 %v1198
        %v1309 = vpop.f32.mrb[0].mxu0
        %v1310 = vadd.f32 0.0, %v1309
        %v1311 = vpop.f32.mrb[0].mxu0
        %1312 = vdwg.mxu0
        %v1313 = vld [vmem:[#allocation2] sm:$0xff]
        %v1314 = vld [vmem:[#allocation2 + $0x8] sm:$0xff]
        %v1315 = vld [vmem:[#allocation2 + $0x10] sm:$0xff]
        %v1316 = vld [vmem:[#allocation2 + $0x18] sm:$0xff]
        %v1317 = vld [vmem:[#allocation2 + $0x20] sm:$0xff]
        %v1318 = vld [vmem:[#allocation2 + $0x28] sm:$0xff]
        %v1319 = vld [vmem:[#allocation2 + $0x30] sm:$0xff]
        %v1320 = vld [vmem:[#allocation2 + $0x38] sm:$0xff]
        %v1321 = vld [vmem:[#allocation2 + $0x40] sm:$0xff]
        %v1322 = vadd.f32 %v1313, %v1270
        %v1323 = vadd.f32 %v1314, %v1275
        %v1324 = vadd.f32 %v1315, %v1280
        %v1325 = vadd.f32 %v1316, %v1285
        %v1326 = vadd.f32 %v1317, %v1290
        %v1327 = vadd.f32 %v1318, %v1295
        %v1328 = vadd.f32 %v1319, %v1300
        %v1329 = vadd.f32 %v1320, %v1305
        %v1330 = vadd.f32 %v1321, %v1310
        %1331 = vst [vmem:[#allocation2] sm:$0xff] %v1322
        %1332 = vst [vmem:[#allocation2 + $0x8] sm:$0xff] %v1323
        %1333 = vst [vmem:[#allocation2 + $0x10] sm:$0xff] %v1324
        %1334 = vst [vmem:[#allocation2 + $0x18] sm:$0xff] %v1325
        %1335 = vst [vmem:[#allocation2 + $0x20] sm:$0xff] %v1326
        %1336 = vst [vmem:[#allocation2 + $0x28] sm:$0xff] %v1327
        %1337 = vst [vmem:[#allocation2 + $0x30] sm:$0xff] %v1328
        %1338 = vst [vmem:[#allocation2 + $0x38] sm:$0xff] %v1329
        %1339 = vst [vmem:[#allocation2 + $0x40] sm:$0xff] %v1330
        %s1340 = sadd.s32 %s231, 1
        %s1341 = smul.u32 %s1340, 18
        %s1342 = scalar_lea.vmem %s224, %s1341
        %v1343 = vld [vmem:[%s1342] ss:$2 sm:$0xff]
        %s1344 = scalar_lea.vmem %s1342, 16
        %v1345 = vld [vmem:[%s1344] ss:$2 sm:$0xff]
        %s1346 = scalar_lea.vmem %s1342, 32
        %v1347 = vld [vmem:[%s1346] ss:$2 sm:$0xff]
        %s1348 = scalar_lea.vmem %s1342, 48
        %v1349 = vld [vmem:[%s1348] ss:$2 sm:$0xff]
        %s1350 = scalar_lea.vmem %s1342, 64
        %v1351 = vld [vmem:[%s1350] ss:$2 sm:$0xff]
        %s1352 = scalar_lea.vmem %s1342, 80
        %v1353 = vld [vmem:[%s1352] ss:$2 sm:$0xff]
        %s1354 = scalar_lea.vmem %s1342, 96
        %v1355 = vld [vmem:[%s1354] ss:$2 sm:$0xff]
        %s1356 = scalar_lea.vmem %s1342, 112
        %v1357 = vld [vmem:[%s1356] ss:$2 sm:$0xff]
        %s1358 = scalar_lea.vmem %s1342, 128
        %v1359 = vld [vmem:[%s1358] ss:$2 sm:$0xff]
        %s1360 = scalar_lea.vmem %s2, 24
        %v1361 = vld [vmem:[%s1360] sm:$0xf]
        %v1363 = vsel %vm252, %v1343, 0
        %v1366 = vsel %vm252, %v1345, 0
        %v1369 = vsel %vm252, %v1347, 0
        %v1372 = vsel %vm252, %v1349, 0
        %v1375 = vsel %vm252, %v1351, 0
        %v1378 = vsel %vm252, %v1353, 0
        %v1381 = vsel %vm252, %v1355, 0
        %v1384 = vsel %vm252, %v1357, 0
        %v1387 = vsel %vm252, %v1359, 0
        %v1390 = vsel %vm280, %v1361, 0
        %1392 = vmatprep.subr.mxu0 0.0
        %1393 = vmatpush1.msra.mxu0 %v1390
        %1394 = vmatprep.subr.mxu0 0.0
        %1395 = vmatpush1.msra.mxu0 0.0
        %1396 = vmatprep.subr.mxu0 0.0
        %1397 = vmatpush1.msra.mxu0 0.0
        %1398 = vmatprep.subr.mxu0 0.0
        %1399 = vmatpush1.msra.mxu0 0.0
        %1400 = vmatprep.subr.mxu0 0.0
        %1401 = vmatpush1.msra.mxu0 0.0
        %1402 = vmatprep.subr.mxu0 0.0
        %1403 = vmatpush1.msra.mxu0 0.0
        %1404 = vmatprep.subr.mxu0 0.0
        %1405 = vmatpush1.msra.mxu0 0.0
        %1406 = vmatprep.subr.mxu0 0.0
        %1407 = vmatpush1.msra.mxu0 0.0
        %1408 = vmatprep.subr.mxu0 0.0
        %1409 = vmatpush1.msra.mxu0 0.0
        %1410 = vmatprep.subr.mxu0 0.0
        %1411 = vmatpush1.msra.mxu0 0.0
        %1412 = vmatprep.subr.mxu0 0.0
        %1413 = vmatpush1.msra.mxu0 0.0
        %1414 = vmatprep.subr.mxu0 0.0
        %1415 = vmatpush1.msra.mxu0 0.0
        %1416 = vmatprep.subr.mxu0 0.0
        %1417 = vmatpush1.msra.mxu0 0.0
        %1418 = vmatprep.subr.mxu0 0.0
        %1419 = vmatpush1.msra.mxu0 0.0
        %1420 = vmatprep.subr.mxu0 0.0
        %1421 = vmatpush1.msra.mxu0 0.0
        %1422 = vmatprep.subr.mxu0 0.0
        %1423 = vmatpush1.msra.mxu0 0.0
        %1424 = vmatprep.subr.mxu0 0.0
        %1425 = vmatpush1.msra.mxu0 0.0
        %1426 = vmatprep.subr.mxu0 0.0
        %1427 = vmatpush1.msra.mxu0 0.0
        %1428 = vmatprep.subr.mxu0 0.0
        %1429 = vmatpush1.msra.mxu0 0.0
        %1430 = vmatprep.subr.mxu0 0.0
        %1431 = vmatpush1.msra.mxu0 0.0
        %1432 = vmatprep.subr.mxu0 0.0
        %1433 = vmatpush1.msra.mxu0 0.0
        %1434 = vmatprep.subr.mxu0 0.0
        %1435 = vmatpush1.msra.mxu0 0.0
        %1436 = vmatprep.subr.mxu0 0.0
        %1437 = vmatpush1.msra.mxu0 0.0
        %1438 = vmatprep.subr.mxu0 0.0
        %1439 = vmatpush1.msra.mxu0 0.0
        %1440 = vmatprep.subr.mxu0 0.0
        %1441 = vmatpush1.msra.mxu0 0.0
        %1442 = vmatprep.subr.mxu0 0.0
        %1443 = vmatpush1.msra.mxu0 0.0
        %1444 = vmatprep.subr.mxu0 0.0
        %1445 = vmatpush1.msra.mxu0 0.0
        %1446 = vmatprep.subr.mxu0 0.0
        %1447 = vmatpush1.msra.mxu0 0.0
        %1448 = vmatprep.subr.mxu0 0.0
        %1449 = vmatpush1.msra.mxu0 0.0
        %1450 = vmatprep.subr.mxu0 0.0
        %1451 = vmatpush1.msra.mxu0 0.0
        %1452 = vmatprep.subr.mxu0 0.0
        %1453 = vmatpush1.msra.mxu0 0.0
        %1454 = vmatprep.subr.mxu0 0.0
        %1455 = vmatpush1.msra.mxu0 0.0
        %1456 = vmatprep.mubr.f32.mxu0 0.0
        %1457 = vmatmul.mubr.f32.gmra.mrb[0].mxu0 %v1363
        %v1458 = vpop.f32.mrb[0].mxu0
        %v1459 = vadd.f32 0.0, %v1458
        %v1460 = vpop.f32.mrb[0].mxu0
        %1461 = vmatprep.mubr.f32.mxu0 0.0
        %1462 = vmatmul.mubr.f32.gmra.mrb[0].mxu0 %v1366
        %v1463 = vpop.f32.mrb[0].mxu0
        %v1464 = vadd.f32 0.0, %v1463
        %v1465 = vpop.f32.mrb[0].mxu0
        %1466 = vmatprep.mubr.f32.mxu0 0.0
        %1467 = vmatmul.mubr.f32.gmra.mrb[0].mxu0 %v1369
        %v1468 = vpop.f32.mrb[0].mxu0
        %v1469 = vadd.f32 0.0, %v1468
        %v1470 = vpop.f32.mrb[0].mxu0
        %1471 = vmatprep.mubr.f32.mxu0 0.0
        %1472 = vmatmul.mubr.f32.gmra.mrb[0].mxu0 %v1372
        %v1473 = vpop.f32.mrb[0].mxu0
        %v1474 = vadd.f32 0.0, %v1473
        %v1475 = vpop.f32.mrb[0].mxu0
        %1476 = vmatprep.mubr.f32.mxu0 0.0
        %1477 = vmatmul.mubr.f32.gmra.mrb[0].mxu0 %v1375
        %v1478 = vpop.f32.mrb[0].mxu0
        %v1479 = vadd.f32 0.0, %v1478
        %v1480 = vpop.f32.mrb[0].mxu0
        %1481 = vmatprep.mubr.f32.mxu0 0.0
        %1482 = vmatmul.mubr.f32.gmra.mrb[0].mxu0 %v1378
        %v1483 = vpop.f32.mrb[0].mxu0
        %v1484 = vadd.f32 0.0, %v1483
        %v1485 = vpop.f32.mrb[0].mxu0
        %1486 = vmatprep.mubr.f32.mxu0 0.0
        %1487 = vmatmul.mubr.f32.gmra.mrb[0].mxu0 %v1381
        %v1488 = vpop.f32.mrb[0].mxu0
        %v1489 = vadd.f32 0.0, %v1488
        %v1490 = vpop.f32.mrb[0].mxu0
        %1491 = vmatprep.mubr.f32.mxu0 0.0
        %1492 = vmatmul.mubr.f32.gmra.mrb[0].mxu0 %v1384
        %v1493 = vpop.f32.mrb[0].mxu0
        %v1494 = vadd.f32 0.0, %v1493
        %v1495 = vpop.f32.mrb[0].mxu0
        %1496 = vmatprep.mubr.f32.mxu0 0.0
        %1497 = vmatmul.mubr.f32.gmra.mrb[0].mxu0 %v1387
        %v1498 = vpop.f32.mrb[0].mxu0
        %v1499 = vadd.f32 0.0, %v1498
        %v1500 = vpop.f32.mrb[0].mxu0
        %1501 = vdwg.mxu0
        %v1502 = vld [vmem:[#allocation2] sm:$0xff]
        %v1503 = vld [vmem:[#allocation2 + $0x8] sm:$0xff]
        %v1504 = vld [vmem:[#allocation2 + $0x10] sm:$0xff]
        %v1505 = vld [vmem:[#allocation2 + $0x18] sm:$0xff]
        %v1506 = vld [vmem:[#allocation2 + $0x20] sm:$0xff]
        %v1507 = vld [vmem:[#allocation2 + $0x28] sm:$0xff]
        %v1508 = vld [vmem:[#allocation2 + $0x30] sm:$0xff]
        %v1509 = vld [vmem:[#allocation2 + $0x38] sm:$0xff]
        %v1510 = vld [vmem:[#allocation2 + $0x40] sm:$0xff]
        %v1511 = vadd.f32 %v1502, %v1459
        %v1512 = vadd.f32 %v1503, %v1464
        %v1513 = vadd.f32 %v1504, %v1469
        %v1514 = vadd.f32 %v1505, %v1474
        %v1515 = vadd.f32 %v1506, %v1479
        %v1516 = vadd.f32 %v1507, %v1484
        %v1517 = vadd.f32 %v1508, %v1489
        %v1518 = vadd.f32 %v1509, %v1494
        %v1519 = vadd.f32 %v1510, %v1499
        %1520 = vst [vmem:[#allocation2] sm:$0xff] %v1511
        %1521 = vst [vmem:[#allocation2 + $0x8] sm:$0xff] %v1512
        %1522 = vst [vmem:[#allocation2 + $0x10] sm:$0xff] %v1513
        %1523 = vst [vmem:[#allocation2 + $0x18] sm:$0xff] %v1514
        %1524 = vst [vmem:[#allocation2 + $0x20] sm:$0xff] %v1515
        %1525 = vst [vmem:[#allocation2 + $0x28] sm:$0xff] %v1516
        %1526 = vst [vmem:[#allocation2 + $0x30] sm:$0xff] %v1517
        %1527 = vst [vmem:[#allocation2 + $0x38] sm:$0xff] %v1518
        %1528 = vst [vmem:[#allocation2 + $0x40] sm:$0xff] %v1519
        %s1529 = sadd.s32 %s1341, 1
        %s1530 = scalar_lea.vmem %s224, %s1529
        %v1531 = vld [vmem:[%s1530] ss:$2 sm:$0xff]
        %s1532 = scalar_lea.vmem %s1530, 16
        %v1533 = vld [vmem:[%s1532] ss:$2 sm:$0xff]
        %s1534 = scalar_lea.vmem %s1530, 32
        %v1535 = vld [vmem:[%s1534] ss:$2 sm:$0xff]
        %s1536 = scalar_lea.vmem %s1530, 48
        %v1537 = vld [vmem:[%s1536] ss:$2 sm:$0xff]
        %s1538 = scalar_lea.vmem %s1530, 64
        %v1539 = vld [vmem:[%s1538] ss:$2 sm:$0xff]
        %s1540 = scalar_lea.vmem %s1530, 80
        %v1541 = vld [vmem:[%s1540] ss:$2 sm:$0xff]
        %s1542 = scalar_lea.vmem %s1530, 96
        %v1543 = vld [vmem:[%s1542] ss:$2 sm:$0xff]
        %s1544 = scalar_lea.vmem %s1530, 112
        %v1545 = vld [vmem:[%s1544] ss:$2 sm:$0xff]
        %s1546 = scalar_lea.vmem %s1530, 128
        %v1547 = vld [vmem:[%s1546] ss:$2 sm:$0xff]
        %s1548 = scalar_lea.vmem %s2, 28
        %v1549 = vld [vmem:[%s1548] sm:$0xf]
        %v1551 = vsel %vm252, %v1531, 0
        %v1554 = vsel %vm252, %v1533, 0
        %v1557 = vsel %vm252, %v1535, 0
        %v1560 = vsel %vm252, %v1537, 0
        %v1563 = vsel %vm252, %v1539, 0
        %v1566 = vsel %vm252, %v1541, 0
        %v1569 = vsel %vm252, %v1543, 0
        %v1572 = vsel %vm252, %v1545, 0
        %v1575 = vsel %vm252, %v1547, 0
        %v1578 = vsel %vm280, %v1549, 0
        %1580 = vmatprep.subr.mxu0 0.0
        %1581 = vmatpush1.msra.mxu0 %v1578
        %1582 = vmatprep.subr.mxu0 0.0
        %1583 = vmatpush1.msra.mxu0 0.0
        %1584 = vmatprep.subr.mxu0 0.0
        %1585 = vmatpush1.msra.mxu0 0.0
        %1586 = vmatprep.subr.mxu0 0.0
        %1587 = vmatpush1.msra.mxu0 0.0
        %1588 = vmatprep.subr.mxu0 0.0
        %1589 = vmatpush1.msra.mxu0 0.0
        %1590 = vmatprep.subr.mxu0 0.0
        %1591 = vmatpush1.msra.mxu0 0.0
        %1592 = vmatprep.subr.mxu0 0.0
        %1593 = vmatpush1.msra.mxu0 0.0
        %1594 = vmatprep.subr.mxu0 0.0
        %1595 = vmatpush1.msra.mxu0 0.0
        %1596 = vmatprep.subr.mxu0 0.0
        %1597 = vmatpush1.msra.mxu0 0.0
        %1598 = vmatprep.subr.mxu0 0.0
        %1599 = vmatpush1.msra.mxu0 0.0
        %1600 = vmatprep.subr.mxu0 0.0
        %1601 = vmatpush1.msra.mxu0 0.0
        %1602 = vmatprep.subr.mxu0 0.0
        %1603 = vmatpush1.msra.mxu0 0.0
        %1604 = vmatprep.subr.mxu0 0.0
        %1605 = vmatpush1.msra.mxu0 0.0
        %1606 = vmatprep.subr.mxu0 0.0
        %1607 = vmatpush1.msra.mxu0 0.0
        %1608 = vmatprep.subr.mxu0 0.0
        %1609 = vmatpush1.msra.mxu0 0.0
        %1610 = vmatprep.subr.mxu0 0.0
        %1611 = vmatpush1.msra.mxu0 0.0
        %1612 = vmatprep.subr.mxu0 0.0
        %1613 = vmatpush1.msra.mxu0 0.0
        %1614 = vmatprep.subr.mxu0 0.0
        %1615 = vmatpush1.msra.mxu0 0.0
        %1616 = vmatprep.subr.mxu0 0.0
        %1617 = vmatpush1.msra.mxu0 0.0
        %1618 = vmatprep.subr.mxu0 0.0
        %1619 = vmatpush1.msra.mxu0 0.0
        %1620 = vmatprep.subr.mxu0 0.0
        %1621 = vmatpush1.msra.mxu0 0.0
        %1622 = vmatprep.subr.mxu0 0.0
        %1623 = vmatpush1.msra.mxu0 0.0
        %1624 = vmatprep.subr.mxu0 0.0
        %1625 = vmatpush1.msra.mxu0 0.0
        %1626 = vmatprep.subr.mxu0 0.0
        %1627 = vmatpush1.msra.mxu0 0.0
        %1628 = vmatprep.subr.mxu0 0.0
        %1629 = vmatpush1.msra.mxu0 0.0
        %1630 = vmatprep.subr.mxu0 0.0
        %1631 = vmatpush1.msra.mxu0 0.0
        %1632 = vmatprep.subr.mxu0 0.0
        %1633 = vmatpush1.msra.mxu0 0.0
        %1634 = vmatprep.subr.mxu0 0.0
        %1635 = vmatpush1.msra.mxu0 0.0
        %1636 = vmatprep.subr.mxu0 0.0
        %1637 = vmatpush1.msra.mxu0 0.0
        %1638 = vmatprep.subr.mxu0 0.0
        %1639 = vmatpush1.msra.mxu0 0.0
        %1640 = vmatprep.subr.mxu0 0.0
        %1641 = vmatpush1.msra.mxu0 0.0
        %1642 = vmatprep.subr.mxu0 0.0
        %1643 = vmatpush1.msra.mxu0 0.0
        %1644 = vmatprep.mubr.f32.mxu0 0.0
        %1645 = vmatmul.mubr.f32.gmra.mrb[0].mxu0 %v1551
        %v1646 = vpop.f32.mrb[0].mxu0
        %v1647 = vadd.f32 0.0, %v1646
        %v1648 = vpop.f32.mrb[0].mxu0
        %1649 = vmatprep.mubr.f32.mxu0 0.0
        %1650 = vmatmul.mubr.f32.gmra.mrb[0].mxu0 %v1554
        %v1651 = vpop.f32.mrb[0].mxu0
        %v1652 = vadd.f32 0.0, %v1651
        %v1653 = vpop.f32.mrb[0].mxu0
        %1654 = vmatprep.mubr.f32.mxu0 0.0
        %1655 = vmatmul.mubr.f32.gmra.mrb[0].mxu0 %v1557
        %v1656 = vpop.f32.mrb[0].mxu0
        %v1657 = vadd.f32 0.0, %v1656
        %v1658 = vpop.f32.mrb[0].mxu0
        %1659 = vmatprep.mubr.f32.mxu0 0.0
        %1660 = vmatmul.mubr.f32.gmra.mrb[0].mxu0 %v1560
        %v1661 = vpop.f32.mrb[0].mxu0
        %v1662 = vadd.f32 0.0, %v1661
        %v1663 = vpop.f32.mrb[0].mxu0
        %1664 = vmatprep.mubr.f32.mxu0 0.0
        %1665 = vmatmul.mubr.f32.gmra.mrb[0].mxu0 %v1563
        %v1666 = vpop.f32.mrb[0].mxu0
        %v1667 = vadd.f32 0.0, %v1666
        %v1668 = vpop.f32.mrb[0].mxu0
        %1669 = vmatprep.mubr.f32.mxu0 0.0
        %1670 = vmatmul.mubr.f32.gmra.mrb[0].mxu0 %v1566
        %v1671 = vpop.f32.mrb[0].mxu0
        %v1672 = vadd.f32 0.0, %v1671
        %v1673 = vpop.f32.mrb[0].mxu0
        %1674 = vmatprep.mubr.f32.mxu0 0.0
        %1675 = vmatmul.mubr.f32.gmra.mrb[0].mxu0 %v1569
        %v1676 = vpop.f32.mrb[0].mxu0
        %v1677 = vadd.f32 0.0, %v1676
        %v1678 = vpop.f32.mrb[0].mxu0
        %1679 = vmatprep.mubr.f32.mxu0 0.0
        %1680 = vmatmul.mubr.f32.gmra.mrb[0].mxu0 %v1572
        %v1681 = vpop.f32.mrb[0].mxu0
        %v1682 = vadd.f32 0.0, %v1681
        %v1683 = vpop.f32.mrb[0].mxu0
        %1684 = vmatprep.mubr.f32.mxu0 0.0
        %1685 = vmatmul.mubr.f32.gmra.mrb[0].mxu0 %v1575
        %v1686 = vpop.f32.mrb[0].mxu0
        %v1687 = vadd.f32 0.0, %v1686
        %v1688 = vpop.f32.mrb[0].mxu0
        %1689 = vdwg.mxu0
        %v1690 = vld [vmem:[#allocation2] sm:$0xff]
        %v1691 = vld [vmem:[#allocation2 + $0x8] sm:$0xff]
        %v1692 = vld [vmem:[#allocation2 + $0x10] sm:$0xff]
        %v1693 = vld [vmem:[#allocation2 + $0x18] sm:$0xff]
        %v1694 = vld [vmem:[#allocation2 + $0x20] sm:$0xff]
        %v1695 = vld [vmem:[#allocation2 + $0x28] sm:$0xff]
        %v1696 = vld [vmem:[#allocation2 + $0x30] sm:$0xff]
        %v1697 = vld [vmem:[#allocation2 + $0x38] sm:$0xff]
        %v1698 = vld [vmem:[#allocation2 + $0x40] sm:$0xff]
        %v1699 = vadd.f32 %v1690, %v1647
        %v1700 = vadd.f32 %v1691, %v1652
        %v1701 = vadd.f32 %v1692, %v1657
        %v1702 = vadd.f32 %v1693, %v1662
        %v1703 = vadd.f32 %v1694, %v1667
        %v1704 = vadd.f32 %v1695, %v1672
        %v1705 = vadd.f32 %v1696, %v1677
        %v1706 = vadd.f32 %v1697, %v1682
        %v1707 = vadd.f32 %v1698, %v1687
        %1708 = vst [vmem:[#allocation2] sm:$0xff] %v1699
        %1709 = vst [vmem:[#allocation2 + $0x8] sm:$0xff] %v1700
        %1710 = vst [vmem:[#allocation2 + $0x10] sm:$0xff] %v1701
        %1711 = vst [vmem:[#allocation2 + $0x18] sm:$0xff] %v1702
        %1712 = vst [vmem:[#allocation2 + $0x20] sm:$0xff] %v1703
        %1713 = vst [vmem:[#allocation2 + $0x28] sm:$0xff] %v1704
        %1714 = vst [vmem:[#allocation2 + $0x30] sm:$0xff] %v1705
        %1715 = vst [vmem:[#allocation2 + $0x38] sm:$0xff] %v1706
        %1716 = vst [vmem:[#allocation2 + $0x40] sm:$0xff] %v1707
        %s1717 = sadd.s32 %s1341, 2
        %s1718 = scalar_lea.vmem %s224, %s1717
        %v1719 = vld [vmem:[%s1718] ss:$2 sm:$0xff]
        %s1720 = scalar_lea.vmem %s1718, 16
        %v1721 = vld [vmem:[%s1720] ss:$2 sm:$0xff]
        %s1722 = scalar_lea.vmem %s1718, 32
        %v1723 = vld [vmem:[%s1722] ss:$2 sm:$0xff]
        %s1724 = scalar_lea.vmem %s1718, 48
        %v1725 = vld [vmem:[%s1724] ss:$2 sm:$0xff]
        %s1726 = scalar_lea.vmem %s1718, 64
        %v1727 = vld [vmem:[%s1726] ss:$2 sm:$0xff]
        %s1728 = scalar_lea.vmem %s1718, 80
        %v1729 = vld [vmem:[%s1728] ss:$2 sm:$0xff]
        %s1730 = scalar_lea.vmem %s1718, 96
        %v1731 = vld [vmem:[%s1730] ss:$2 sm:$0xff]
        %s1732 = scalar_lea.vmem %s1718, 112
        %v1733 = vld [vmem:[%s1732] ss:$2 sm:$0xff]
        %s1734 = scalar_lea.vmem %s1718, 128
        %v1735 = vld [vmem:[%s1734] ss:$2 sm:$0xff]
        %s1736 = scalar_lea.vmem %s2, 32
        %v1737 = vld [vmem:[%s1736] sm:$0xf]
        %v1739 = vsel %vm252, %v1719, 0
        %v1742 = vsel %vm252, %v1721, 0
        %v1745 = vsel %vm252, %v1723, 0
        %v1748 = vsel %vm252, %v1725, 0
        %v1751 = vsel %vm252, %v1727, 0
        %v1754 = vsel %vm252, %v1729, 0
        %v1757 = vsel %vm252, %v1731, 0
        %v1760 = vsel %vm252, %v1733, 0
        %v1763 = vsel %vm252, %v1735, 0
        %v1766 = vsel %vm280, %v1737, 0
        %1768 = vmatprep.subr.mxu0 0.0
        %1769 = vmatpush1.msra.mxu0 %v1766
        %1770 = vmatprep.subr.mxu0 0.0
        %1771 = vmatpush1.msra.mxu0 0.0
        %1772 = vmatprep.subr.mxu0 0.0
        %1773 = vmatpush1.msra.mxu0 0.0
        %1774 = vmatprep.subr.mxu0 0.0
        %1775 = vmatpush1.msra.mxu0 0.0
        %1776 = vmatprep.subr.mxu0 0.0
        %1777 = vmatpush1.msra.mxu0 0.0
        %1778 = vmatprep.subr.mxu0 0.0
        %1779 = vmatpush1.msra.mxu0 0.0
        %1780 = vmatprep.subr.mxu0 0.0
        %1781 = vmatpush1.msra.mxu0 0.0
        %1782 = vmatprep.subr.mxu0 0.0
        %1783 = vmatpush1.msra.mxu0 0.0
        %1784 = vmatprep.subr.mxu0 0.0
        %1785 = vmatpush1.msra.mxu0 0.0
        %1786 = vmatprep.subr.mxu0 0.0
        %1787 = vmatpush1.msra.mxu0 0.0
        %1788 = vmatprep.subr.mxu0 0.0
        %1789 = vmatpush1.msra.mxu0 0.0
        %1790 = vmatprep.subr.mxu0 0.0
        %1791 = vmatpush1.msra.mxu0 0.0
        %1792 = vmatprep.subr.mxu0 0.0
        %1793 = vmatpush1.msra.mxu0 0.0
        %1794 = vmatprep.subr.mxu0 0.0
        %1795 = vmatpush1.msra.mxu0 0.0
        %1796 = vmatprep.subr.mxu0 0.0
        %1797 = vmatpush1.msra.mxu0 0.0
        %1798 = vmatprep.subr.mxu0 0.0
        %1799 = vmatpush1.msra.mxu0 0.0
        %1800 = vmatprep.subr.mxu0 0.0
        %1801 = vmatpush1.msra.mxu0 0.0
        %1802 = vmatprep.subr.mxu0 0.0
        %1803 = vmatpush1.msra.mxu0 0.0
        %1804 = vmatprep.subr.mxu0 0.0
        %1805 = vmatpush1.msra.mxu0 0.0
        %1806 = vmatprep.subr.mxu0 0.0
        %1807 = vmatpush1.msra.mxu0 0.0
        %1808 = vmatprep.subr.mxu0 0.0
        %1809 = vmatpush1.msra.mxu0 0.0
        %1810 = vmatprep.subr.mxu0 0.0
        %1811 = vmatpush1.msra.mxu0 0.0
        %1812 = vmatprep.subr.mxu0 0.0
        %1813 = vmatpush1.msra.mxu0 0.0
        %1814 = vmatprep.subr.mxu0 0.0
        %1815 = vmatpush1.msra.mxu0 0.0
        %1816 = vmatprep.subr.mxu0 0.0
        %1817 = vmatpush1.msra.mxu0 0.0
        %1818 = vmatprep.subr.mxu0 0.0
        %1819 = vmatpush1.msra.mxu0 0.0
        %1820 = vmatprep.subr.mxu0 0.0
        %1821 = vmatpush1.msra.mxu0 0.0
        %1822 = vmatprep.subr.mxu0 0.0
        %1823 = vmatpush1.msra.mxu0 0.0
        %1824 = vmatprep.subr.mxu0 0.0
        %1825 = vmatpush1.msra.mxu0 0.0
        %1826 = vmatprep.subr.mxu0 0.0
        %1827 = vmatpush1.msra.mxu0 0.0
        %1828 = vmatprep.subr.mxu0 0.0
        %1829 = vmatpush1.msra.mxu0 0.0
        %1830 = vmatprep.subr.mxu0 0.0
        %1831 = vmatpush1.msra.mxu0 0.0
        %1832 = vmatprep.mubr.f32.mxu0 0.0
        %1833 = vmatmul.mubr.f32.gmra.mrb[0].mxu0 %v1739
        %v1834 = vpop.f32.mrb[0].mxu0
        %v1835 = vadd.f32 0.0, %v1834
        %v1836 = vpop.f32.mrb[0].mxu0
        %1837 = vmatprep.mubr.f32.mxu0 0.0
        %1838 = vmatmul.mubr.f32.gmra.mrb[0].mxu0 %v1742
        %v1839 = vpop.f32.mrb[0].mxu0
        %v1840 = vadd.f32 0.0, %v1839
        %v1841 = vpop.f32.mrb[0].mxu0
        %1842 = vmatprep.mubr.f32.mxu0 0.0
        %1843 = vmatmul.mubr.f32.gmra.mrb[0].mxu0 %v1745
        %v1844 = vpop.f32.mrb[0].mxu0
        %v1845 = vadd.f32 0.0, %v1844
        %v1846 = vpop.f32.mrb[0].mxu0
        %1847 = vmatprep.mubr.f32.mxu0 0.0
        %1848 = vmatmul.mubr.f32.gmra.mrb[0].mxu0 %v1748
        %v1849 = vpop.f32.mrb[0].mxu0
        %v1850 = vadd.f32 0.0, %v1849
        %v1851 = vpop.f32.mrb[0].mxu0
        %1852 = vmatprep.mubr.f32.mxu0 0.0
        %1853 = vmatmul.mubr.f32.gmra.mrb[0].mxu0 %v1751
        %v1854 = vpop.f32.mrb[0].mxu0
        %v1855 = vadd.f32 0.0, %v1854
        %v1856 = vpop.f32.mrb[0].mxu0
        %1857 = vmatprep.mubr.f32.mxu0 0.0
        %1858 = vmatmul.mubr.f32.gmra.mrb[0].mxu0 %v1754
        %v1859 = vpop.f32.mrb[0].mxu0
        %v1860 = vadd.f32 0.0, %v1859
        %v1861 = vpop.f32.mrb[0].mxu0
        %1862 = vmatprep.mubr.f32.mxu0 0.0
        %1863 = vmatmul.mubr.f32.gmra.mrb[0].mxu0 %v1757
        %v1864 = vpop.f32.mrb[0].mxu0
        %v1865 = vadd.f32 0.0, %v1864
        %v1866 = vpop.f32.mrb[0].mxu0
        %1867 = vmatprep.mubr.f32.mxu0 0.0
        %1868 = vmatmul.mubr.f32.gmra.mrb[0].mxu0 %v1760
        %v1869 = vpop.f32.mrb[0].mxu0
        %v1870 = vadd.f32 0.0, %v1869
        %v1871 = vpop.f32.mrb[0].mxu0
        %1872 = vmatprep.mubr.f32.mxu0 0.0
        %1873 = vmatmul.mubr.f32.gmra.mrb[0].mxu0 %v1763
        %v1874 = vpop.f32.mrb[0].mxu0
        %v1875 = vadd.f32 0.0, %v1874
        %v1876 = vpop.f32.mrb[0].mxu0
        %1877 = vdwg.mxu0
        %v1878 = vld [vmem:[#allocation2] sm:$0xff]
        %v1879 = vld [vmem:[#allocation2 + $0x8] sm:$0xff]
        %v1880 = vld [vmem:[#allocation2 + $0x10] sm:$0xff]
        %v1881 = vld [vmem:[#allocation2 + $0x18] sm:$0xff]
        %v1882 = vld [vmem:[#allocation2 + $0x20] sm:$0xff]
        %v1883 = vld [vmem:[#allocation2 + $0x28] sm:$0xff]
        %v1884 = vld [vmem:[#allocation2 + $0x30] sm:$0xff]
        %v1885 = vld [vmem:[#allocation2 + $0x38] sm:$0xff]
        %v1886 = vld [vmem:[#allocation2 + $0x40] sm:$0xff]
        %v1887 = vadd.f32 %v1878, %v1835
        %v1888 = vadd.f32 %v1879, %v1840
        %v1889 = vadd.f32 %v1880, %v1845
        %v1890 = vadd.f32 %v1881, %v1850
        %v1891 = vadd.f32 %v1882, %v1855
        %v1892 = vadd.f32 %v1883, %v1860
        %v1893 = vadd.f32 %v1884, %v1865
        %v1894 = vadd.f32 %v1885, %v1870
        %v1895 = vadd.f32 %v1886, %v1875
        %1896 = vst [vmem:[#allocation2] sm:$0xff] %v1887
        %1897 = vst [vmem:[#allocation2 + $0x8] sm:$0xff] %v1888
        %1898 = vst [vmem:[#allocation2 + $0x10] sm:$0xff] %v1889
        %1899 = vst [vmem:[#allocation2 + $0x18] sm:$0xff] %v1890
        %1900 = vst [vmem:[#allocation2 + $0x20] sm:$0xff] %v1891
        %1901 = vst [vmem:[#allocation2 + $0x28] sm:$0xff] %v1892
        %1902 = vst [vmem:[#allocation2 + $0x30] sm:$0xff] %v1893
        %1903 = vst [vmem:[#allocation2 + $0x38] sm:$0xff] %v1894
        %1904 = vst [vmem:[#allocation2 + $0x40] sm:$0xff] %v1895
        %v1905 = vld [vmem:[#allocation2] sm:$0xff]
        %v1906 = vld [vmem:[#allocation2 + $0x8] sm:$0xff]
        %v1907 = vld [vmem:[#allocation2 + $0x10] sm:$0xff]
        %v1908 = vld [vmem:[#allocation2 + $0x18] sm:$0xff]
        %v1909 = vld [vmem:[#allocation2 + $0x20] sm:$0xff]
        %v1910 = vld [vmem:[#allocation2 + $0x28] sm:$0xff]
        %v1911 = vld [vmem:[#allocation2 + $0x30] sm:$0xff]
        %v1912 = vld [vmem:[#allocation2 + $0x38] sm:$0xff]
        %v1913 = vld [vmem:[#allocation2 + $0x40] sm:$0xff]
        %v1914 = vld [vmem:[%s3] sm:$0x1]
        %v1916 = vlaneseq
        %v1917 = vshrl.u32 %v1916, 7
        %v1918 = vsub.s32 0, %v1917
        %v1919 = vrot.slane %v1914, %v1918
        %v1921 = vadd.f32 %v1905, %v1919
        %v1922 = vadd.f32 %v1906, %v1919
        %v1923 = vadd.f32 %v1907, %v1919
        %v1924 = vadd.f32 %v1908, %v1919
        %v1925 = vadd.f32 %v1909, %v1919
        %v1926 = vadd.f32 %v1910, %v1919
        %v1927 = vadd.f32 %v1911, %v1919
        %v1928 = vadd.f32 %v1912, %v1919
        %v1929 = vadd.f32 %v1913, %v1919
        %1930 = vst [vmem:[%s219] sm:$0xff] %v1921
        %1931 = vst [vmem:[%s219 + $0x8] sm:$0xff] %v1922
        %1932 = vst [vmem:[%s219 + $0x10] sm:$0xff] %v1923
        %1933 = vst [vmem:[%s219 + $0x18] sm:$0xff] %v1924
        %1934 = vst [vmem:[%s219 + $0x20] sm:$0xff] %v1925
        %1935 = vst [vmem:[%s219 + $0x28] sm:$0xff] %v1926
        %1936 = vst [vmem:[%s219 + $0x30] sm:$0xff] %v1927
        %1937 = vst [vmem:[%s219 + $0x38] sm:$0xff] %v1928
        %1938 = vst [vmem:[%s219 + $0x40] sm:$0xff] %v1929
        %s1939 = sand.u32 %s134, 1
        %s1940 = scalar_lea.sflag [#allocation4], %s1939
        %s1941 = sand.u32 %s134, 1
        %s1942 = smul.addr %s1941, 72
        %s1943 = scalar_lea.vmem [#allocation3], %s1942
        // Predicated region
        $region37: #{tpu_custom_call.1} parent=35 // pred_check
          %p1944 = pneg %p144
        $region38: #{tpu_custom_call.1} parent=35 // pred_check_branch
          %1946 = sbr.rel (%p1944) target = $region40
        $region39: #{tpu_custom_call.1} parent=35 // pred_region
          %s1947 = smul.u32 9, %s23
          %s1949 = ssub.s32 1152, 1152
          %1950 = vsyncadd %s1940, %s1949
          %s1951 = smul.addr %s22, 9
          %s1952 = sadd.s32 %s1947, %s1951
          %s1953 = smul.addr %s1952, 128
          %s1954 = scalar_lea.hbm %s4, %s1953
          %s1955 = sshll.u32 %s1943, 4
          %s1956 = int_to_ptr.vmem [resolvable:$true] %s1955
          %1961 = dma.vmem_to_hbm [thread:$0]  %s1956, 1152, %s1954, %s1940, 128, 128, 8
        $region40: #{tpu_custom_call.1} parent=35 // pred_fallthru
          _
      $region36: #{tpu_custom_call.1} parent=5 // pred_fallthru
        _
      %p1962 = scmp.le.s32.totalorder 2, %s13
      // Predicated region
      $region41: #{tpu_custom_call.1} parent=5 // pred_check
        %p1963 = pneg %p1962
      $region42: #{tpu_custom_call.1} parent=5 // pred_check_branch
        %1965 = sbr.rel (%p1963) target = $region44
      $region43: #{tpu_custom_call.1} parent=5 // pred_region
        %s1966 = ssub.s32 %s13, 2
        // Predicated region
        $region45: #{tpu_custom_call.1} parent=43 // pred_check
          %p1967 = pneg %p150
        $region46: #{tpu_custom_call.1} parent=43 // pred_check_branch
          %1969 = sbr.rel (%p1967) target = $region48
        $region47: #{tpu_custom_call.1} parent=43 // pred_region
          %s1970 = sand.u32 %s135, 1
          %s1971 = scalar_lea.sflag [#allocation4], %s1970
          %s1972 = sand.u32 %s135, 1
          %s1973 = smul.addr %s1972, 72
          %s1974 = scalar_lea.vmem [#allocation3], %s1973
          %1975 = dma.done %s1971, 1152
        $region48: #{tpu_custom_call.1} parent=43 // pred_fallthru
          _
      $region44: #{tpu_custom_call.1} parent=5 // pred_fallthru
        _
    $region6: #{tpu_custom_call.1} parent=1 // loop_footer
      %s17 = sadd.s32 1, %s13
    $region7: #{tpu_custom_call.1} parent=1 // loop_footer_branch
      %12 = sbr.rel target = $region3
    $region8: #{tpu_custom_call.1} parent=1 // loop_exit
      _
    %1976 = vsyncpa [#allocation4], 1
    %s1977 = scalar_lea.sflag [#allocation4], 1
    %1978 = vsyncpa %s1977, 1

</llo_original>
